<compile_context>
chip_gen: v5e
topology: v5e:2x2
jax: 0.10.0
libtpu: 0.0.40
codegen_flags: <defaults>
</compile_context>

<pallas_src>
import functools

import jax
import jax.numpy as jnp
from jax.experimental import pallas as pl
from jax.experimental.pallas import tpu as pltpu


def _mhsa_kernel(x_ref, wq_ref, bq_ref, wk_ref, bk_ref, wv_ref, bv_ref,
                 o_ref, q_scr, k_scr, v_scr, *, heads, n_valid):
    # Per grid step (b, qi):
    #   x_ref : (1, C, N_pad)  whole (padded) image of batch b
    #   w*_ref: (C, C)         full 1x1-conv weight
    #   b*_ref: (C, 1)         bias (f32)
    #   o_ref : (1, C, TQ)     lane-dense output tile (all heads, query tile qi)
    #   q_scr/k_scr/v_scr: (C, N_pad) scratch, valid for the current batch b
    qi = pl.program_id(1)
    C = o_ref.shape[1]
    tq = o_ref.shape[2]
    n_pad = k_scr.shape[1]
    D = C // heads
    f32 = jnp.float32

    # Q / K / V depend only on b: compute once per batch with full-C-row MXU
    # matmuls, reuse for every query tile.  Safe because qi is the innermost
    # "arbitrary" grid axis (each core runs qi==0 for every batch it owns).
    @pl.when(qi == 0)
    def _():
        x_full = x_ref[0]                                            # (C, N_pad)
        q_scr[...] = (jnp.dot(wq_ref[...], x_full, preferred_element_type=f32)
                      + bq_ref[...]).astype(q_scr.dtype)
        k_scr[...] = (jnp.dot(wk_ref[...], x_full, preferred_element_type=f32)
                      + bk_ref[...]).astype(k_scr.dtype)
        v_scr[...] = (jnp.dot(wv_ref[...], x_full, preferred_element_type=f32)
                      + bv_ref[...]).astype(v_scr.dtype)

    start = pl.multiple_of(qi * tq, tq)

    for h in range(heads):                      # static unroll over heads
        rows = pl.ds(h * D, D)                  # sublane-aligned head slice
        q_h = q_scr[rows, pl.ds(start, tq)]     # (D, TQ)
        k_h = k_scr[rows, :]                    # (D, N_pad)
        v_h = v_scr[rows, :]                    # (D, N_pad)

        # energy^T[j, i] = sum_d k[d, j] * q[d, i]   (reference has no 1/sqrt(D))
        # Transposed layout: keys on sublanes, queries on lanes, so the softmax
        # statistics come out as (1, TQ) and broadcast freely onto the output.
        energy = jax.lax.dot_general(
            k_h, q_h, dimension_numbers=(((0,), (0,)), ((), ())),
            preferred_element_type=f32)                              # (N_pad, TQ)

        if n_valid < n_pad:                      # mask padded keys (static branch)
            key_idx = jax.lax.broadcasted_iota(jnp.int32, (n_pad, tq), 0)
            energy = jnp.where(key_idx < n_valid, energy, -1e30)

        # numerically-stable softmax; normalization deferred past the PV matmul
        m = jnp.max(energy, axis=0, keepdims=True)                   # (1, TQ)
        p = jnp.exp(energy - m)                                      # (N_pad, TQ)
        l = jnp.sum(p, axis=0, keepdims=True)                        # (1, TQ)

        # out[d, i] = (sum_j v[d, j] * p[j, i]) / l[i]
        out = jnp.dot(v_h, p.astype(v_h.dtype),
                      preferred_element_type=f32)                    # (D, TQ)
        out = out * (1.0 / l)   # TQ divides only (exact, keeps 1e-4 tolerance)
        o_ref[0, rows, :] = out.astype(o_ref.dtype)


def mhsa(x, wq, bq, wk, bk, wv, bv, *, heads):
    """x: (B, C, H, W); wq/wk/wv: (C, C) 1x1-conv weights; bq/bk/bv: (C,)."""
    B, C, H, W = x.shape
    assert C % heads == 0, "n_dims must be divisible by heads"
    D = C // heads
    assert D % 8 == 0, "head_dim (C // heads) must be a multiple of 8 on TPU"
    N = H * W
    N_pad = ((N + 127) // 128) * 128             # lane-align the spatial axis

    # bf16 inputs keep scratch / matmul operands in bf16 (f32 accumulation);
    # f32 inputs stay f32 end-to-end so the tight reference check holds.
    kv_dtype = jnp.bfloat16 if x.dtype == jnp.bfloat16 else jnp.float32

    xf = x.reshape(B, C, N)
    if N_pad != N:
        xf = jnp.pad(xf, ((0, 0), (0, 0), (0, N_pad - N)))

    wq = wq.astype(x.dtype)
    wk = wk.astype(x.dtype)
    wv = wv.astype(x.dtype)
    bq2 = bq.astype(jnp.float32).reshape(C, 1)
    bk2 = bk.astype(jnp.float32).reshape(C, 1)
    bv2 = bv.astype(jnp.float32).reshape(C, 1)

    # Lane-dense query tile; cap at 256 for large feature maps (v7x VMEM).
    max_tq = 512 if N_pad <= 2048 else 256
    tq = 128
    for cand in (512, 256, 128):
        if cand <= max_tq and N_pad % cand == 0:
            tq = cand
            break
    nq = N_pad // tq

    # Explicit VMEM budget: x / out blocks (double-buffered), weights, Q/K/V
    # scratch, live (N_pad, TQ) softmax temps, plus 2x headroom.
    isz = jnp.dtype(x.dtype).itemsize
    est = (2 * C * N_pad * isz                                  # x block
           + 2 * C * tq * isz                                   # output block
           + 2 * 3 * (C * C * isz + C * 4)                      # weights + biases
           + 3 * C * N_pad * jnp.dtype(kv_dtype).itemsize       # Q/K/V scratch
           + 4 * N_pad * tq * 4)                                # energy/p temps
    vmem_limit = int(min(128 * 1024 * 1024, max(8 * 1024 * 1024, 2 * est)))

    kernel = functools.partial(_mhsa_kernel, heads=heads, n_valid=N)

    w_spec = pl.BlockSpec((C, C), lambda b, qi: (0, 0))
    bias_spec = pl.BlockSpec((C, 1), lambda b, qi: (0, 0))

    out = pl.pallas_call(
        kernel,
        out_shape=jax.ShapeDtypeStruct((B, C, N_pad), x.dtype),
        grid_spec=pltpu.PrefetchScalarGridSpec(
            num_scalar_prefetch=0,
            grid=(B, nq),
            in_specs=[
                pl.BlockSpec((1, C, N_pad), lambda b, qi: (b, 0, 0)),
                w_spec, bias_spec,    # query projection
                w_spec, bias_spec,    # key projection
                w_spec, bias_spec,    # value projection
            ],
            out_specs=pl.BlockSpec((1, C, tq), lambda b, qi: (b, 0, qi)),
            scratch_shapes=[
                pltpu.VMEM((C, N_pad), kv_dtype),   # Q for current batch
                pltpu.VMEM((C, N_pad), kv_dtype),   # K for current batch
                pltpu.VMEM((C, N_pad), kv_dtype),   # V for current batch
            ],
        ),
        compiler_params=pltpu.CompilerParams(
            dimension_semantics=("parallel", "arbitrary"),
            vmem_limit_bytes=vmem_limit),
    )(xf, wq, bq2, wk, bk2, wv, bv2)

    if N_pad != N:
        out = out[:, :, :N]
    return out.reshape(B, C, H, W)


def mhsa_ref(x, wq, bq, wk, bk, wv, bv, *, heads):
    """Pure-JAX reference mirroring the PyTorch MHSA.forward (pos_emb=False)."""
    B, C, H, W = x.shape
    D = C // heads
    N = H * W
    hp = jax.lax.Precision.HIGHEST
    xf = x.reshape(B, C, N)
    q = jnp.einsum('oc,bcn->bon', wq, xf, precision=hp) + bq[None, :, None]
    k = jnp.einsum('oc,bcn->bon', wk, xf, precision=hp) + bk[None, :, None]
    v = jnp.einsum('oc,bcn->bon', wv, xf, precision=hp) + bv[None, :, None]
    q = q.reshape(B, heads, D, N)
    k = k.reshape(B, heads, D, N)
    v = v.reshape(B, heads, D, N)
    energy = jnp.einsum('bhdi,bhdj->bhij', q, k, precision=hp)
    attn = jax.nn.softmax(energy, axis=-1)
    out = jnp.einsum('bhdj,bhij->bhdi', v, attn, precision=hp)
    return out.reshape(B, C, H, W)


if __name__ == "__main__":
    key = jax.random.PRNGKey(0)
    kx, kwq, kbq, kwk, kbk, kwv, kbv = jax.random.split(key, 7)

    # Small but TPU-friendly shapes: n_dims=32, heads=4 -> head_dim=8,
    # spatial 16x16 -> N=256 (lane-dense, multiple of 128).
    B, C, H, W, heads = 2, 32, 16, 16, 4
    scale = C ** -0.5

    x = jax.random.normal(kx, (B, C, H, W), dtype=jnp.float32)
    wq = jax.random.normal(kwq, (C, C), dtype=jnp.float32) * scale
    bq = jax.random.normal(kbq, (C,), dtype=jnp.float32) * 0.1
    wk = jax.random.normal(kwk, (C, C), dtype=jnp.float32) * scale
    bk = jax.random.normal(kbk, (C,), dtype=jnp.float32) * 0.1
    wv = jax.random.normal(kwv, (C, C), dtype=jnp.float32) * scale
    bv = jax.random.normal(kbv, (C,), dtype=jnp.float32) * 0.1

    out = mhsa(x, wq, bq, wk, bk, wv, bv, heads=heads)
    out = jax.block_until_ready(out)

    ref = mhsa_ref(x, wq, bq, wk, bk, wv, bv, heads=heads)
    assert out.shape == (B, C, H, W)
    err = float(jnp.max(jnp.abs(out - ref)))
    assert jnp.allclose(out, ref, atol=1e-4, rtol=1e-4), \
        f"mismatch vs reference (max abs err={err})"

    print("KERNEL_OK")
</pallas_src>

<mosaic_0001>
module attributes {stable_mosaic.version = 11 : i64} {
  func.func @_mhsa_kernel(%arg0: i32, %arg1: i32, %arg2: memref<1x32x256xf32, #tpu.memory_space<vmem>>, %arg3: memref<32x32xf32, #tpu.memory_space<vmem>>, %arg4: memref<32x1xf32, #tpu.memory_space<vmem>>, %arg5: memref<32x32xf32, #tpu.memory_space<vmem>>, %arg6: memref<32x1xf32, #tpu.memory_space<vmem>>, %arg7: memref<32x32xf32, #tpu.memory_space<vmem>>, %arg8: memref<32x1xf32, #tpu.memory_space<vmem>>, %arg9: memref<1x32x256xf32, #tpu.memory_space<vmem>>, %arg10: memref<32x256xf32, #tpu.memory_space<vmem>>, %arg11: memref<32x256xf32, #tpu.memory_space<vmem>>, %arg12: memref<32x256xf32, #tpu.memory_space<vmem>>) attributes {dimension_semantics = [#tpu.dimension_semantics<parallel>, #tpu.dimension_semantics<arbitrary>], iteration_bounds = array<i64: 2, 1>, scalar_prefetch = 0 : i64, scratch_operands = 3 : i64, tpu.core_type = #tpu.core_type<tc>, window_params = [{transform_indices = @transform_0, window_bounds = array<i64: 1, 32, 256>}, {pipeline_mode = #tpu.pipeline_mode<synchronous>, transform_indices = @transform_1, window_bounds = array<i64: 32, 32>}, {pipeline_mode = #tpu.pipeline_mode<synchronous>, transform_indices = @transform_2, window_bounds = array<i64: 32, 1>}, {pipeline_mode = #tpu.pipeline_mode<synchronous>, transform_indices = @transform_3, window_bounds = array<i64: 32, 32>}, {pipeline_mode = #tpu.pipeline_mode<synchronous>, transform_indices = @transform_4, window_bounds = array<i64: 32, 1>}, {pipeline_mode = #tpu.pipeline_mode<synchronous>, transform_indices = @transform_5, window_bounds = array<i64: 32, 32>}, {pipeline_mode = #tpu.pipeline_mode<synchronous>, transform_indices = @transform_6, window_bounds = array<i64: 32, 1>}, {transform_indices = @transform_7, window_bounds = array<i64: 1, 32, 256>}]} {
    %c0_i32 = arith.constant 0 : i32
    %0 = arith.cmpi eq, %arg1, %c0_i32 : i32
    %1 = arith.extui %0 : i1 to i32
    %c0_i32_0 = arith.constant 0 : i32
    %2 = arith.cmpi ne, %1, %c0_i32_0 : i32
    scf.if %2 {
      %c0_48 = arith.constant 0 : index
      %c0_49 = arith.constant 0 : index
      %c0_50 = arith.constant 0 : index
      %85 = vector.load %arg2[%c0_48, %c0_49, %c0_50] : memref<1x32x256xf32, #tpu.memory_space<vmem>>, vector<1x32x256xf32>
      %86 = vector.shape_cast %85 : vector<1x32x256xf32> to vector<32x256xf32>
      %c0_51 = arith.constant 0 : index
      %c0_52 = arith.constant 0 : index
      %87 = vector.load %arg3[%c0_51, %c0_52] : memref<32x32xf32, #tpu.memory_space<vmem>>, vector<32x32xf32>
      %cst_53 = arith.constant dense<0.000000e+00> : vector<32x256xf32>
      %88 = tpu.matmul %87, %86, %cst_53 {dimension_numbers = #tpu.dot_dimension_numbers<[1], [0], [0], [1], [0, 0, 1, 1], [], []>} : vector<32x32xf32>, vector<32x256xf32>, vector<32x256xf32> -> vector<32x256xf32>
      %c0_54 = arith.constant 0 : index
      %c0_55 = arith.constant 0 : index
      %89 = vector.load %arg4[%c0_54, %c0_55] : memref<32x1xf32, #tpu.memory_space<vmem>>, vector<32x1xf32>
      %90 = vector.broadcast %89 : vector<32x1xf32> to vector<32x256xf32>
      %91 = arith.addf %88, %90 : vector<32x256xf32>
      %c0_56 = arith.constant 0 : index
      %c0_57 = arith.constant 0 : index
      %92 = vector.load %arg10[%c0_56, %c0_57] : memref<32x256xf32, #tpu.memory_space<vmem>>, vector<32x256xf32>
      tpu.vector_store %arg10[%c0_56, %c0_57], %91 {strides = array<i32>} : memref<32x256xf32, #tpu.memory_space<vmem>>, vector<32x256xf32>,
      %c0_58 = arith.constant 0 : index
      %c0_59 = arith.constant 0 : index
      %93 = vector.load %arg5[%c0_58, %c0_59] : memref<32x32xf32, #tpu.memory_space<vmem>>, vector<32x32xf32>
      %cst_60 = arith.constant dense<0.000000e+00> : vector<32x256xf32>
      %94 = tpu.matmul %93, %86, %cst_60 {dimension_numbers = #tpu.dot_dimension_numbers<[1], [0], [0], [1], [0, 0, 1, 1], [], []>} : vector<32x32xf32>, vector<32x256xf32>, vector<32x256xf32> -> vector<32x256xf32>
      %c0_61 = arith.constant 0 : index
      %c0_62 = arith.constant 0 : index
      %95 = vector.load %arg6[%c0_61, %c0_62] : memref<32x1xf32, #tpu.memory_space<vmem>>, vector<32x1xf32>
      %96 = vector.broadcast %95 : vector<32x1xf32> to vector<32x256xf32>
      %97 = arith.addf %94, %96 : vector<32x256xf32>
      %c0_63 = arith.constant 0 : index
      %c0_64 = arith.constant 0 : index
      %98 = vector.load %arg11[%c0_63, %c0_64] : memref<32x256xf32, #tpu.memory_space<vmem>>, vector<32x256xf32>
      tpu.vector_store %arg11[%c0_63, %c0_64], %97 {strides = array<i32>} : memref<32x256xf32, #tpu.memory_space<vmem>>, vector<32x256xf32>,
      %c0_65 = arith.constant 0 : index
      %c0_66 = arith.constant 0 : index
      %99 = vector.load %arg7[%c0_65, %c0_66] : memref<32x32xf32, #tpu.memory_space<vmem>>, vector<32x32xf32>
      %cst_67 = arith.constant dense<0.000000e+00> : vector<32x256xf32>
      %100 = tpu.matmul %99, %86, %cst_67 {dimension_numbers = #tpu.dot_dimension_numbers<[1], [0], [0], [1], [0, 0, 1, 1], [], []>} : vector<32x32xf32>, vector<32x256xf32>, vector<32x256xf32> -> vector<32x256xf32>
      %c0_68 = arith.constant 0 : index
      %c0_69 = arith.constant 0 : index
      %101 = vector.load %arg8[%c0_68, %c0_69] : memref<32x1xf32, #tpu.memory_space<vmem>>, vector<32x1xf32>
      %102 = vector.broadcast %101 : vector<32x1xf32> to vector<32x256xf32>
      %103 = arith.addf %100, %102 : vector<32x256xf32>
      %c0_70 = arith.constant 0 : index
      %c0_71 = arith.constant 0 : index
      %104 = vector.load %arg12[%c0_70, %c0_71] : memref<32x256xf32, #tpu.memory_space<vmem>>, vector<32x256xf32>
      tpu.vector_store %arg12[%c0_70, %c0_71], %103 {strides = array<i32>} : memref<32x256xf32, #tpu.memory_space<vmem>>, vector<32x256xf32>,
    } else {
    }
    %c256_i32 = arith.constant 256 : i32
    %3 = arith.muli %arg1, %c256_i32 : i32
    %4 = tpu.assume_multiple %3, 256 : i32
    %c0 = arith.constant 0 : index
    %5 = arith.index_cast %4 : i32 to index
    %6 = vector.load %arg10[%c0, %5] : memref<32x256xf32, #tpu.memory_space<vmem>>, vector<8x256xf32>
    %c0_1 = arith.constant 0 : index
    %c0_2 = arith.constant 0 : index
    %7 = vector.load %arg11[%c0_1, %c0_2] : memref<32x256xf32, #tpu.memory_space<vmem>>, vector<8x256xf32>
    %c0_3 = arith.constant 0 : index
    %c0_4 = arith.constant 0 : index
    %8 = vector.load %arg12[%c0_3, %c0_4] : memref<32x256xf32, #tpu.memory_space<vmem>>, vector<8x256xf32>
    %cst = arith.constant dense<0.000000e+00> : vector<256x256xf32>
    %9 = tpu.matmul %7, %6, %cst {dimension_numbers = #tpu.dot_dimension_numbers<[0], [0], [1], [1], [0, 1, 1, 1], [], []>} : vector<8x256xf32>, vector<8x256xf32>, vector<256x256xf32> -> vector<256x256xf32>
    %cst_5 = arith.constant dense<0xFF800000> : vector<256xf32>
    %10 = vector.multi_reduction <maximumf>, %9, %cst_5 [0] : vector<256x256xf32> to vector<256xf32>
    %11 = vector.shape_cast %10 : vector<256xf32> to vector<1x256xf32>
    %12 = vector.broadcast %11 : vector<1x256xf32> to vector<256x256xf32>
    %13 = arith.subf %9, %12 : vector<256x256xf32>
    %14 = math.exp %13 : vector<256x256xf32>
    %cst_6 = arith.constant dense<0.000000e+00> : vector<256xf32>
    %15 = vector.multi_reduction <add>, %14, %cst_6 [0] : vector<256x256xf32> to vector<256xf32>
    %16 = vector.shape_cast %15 : vector<256xf32> to vector<1x256xf32>
    %cst_7 = arith.constant dense<0.000000e+00> : vector<8x256xf32>
    %17 = tpu.matmul %8, %14, %cst_7 {dimension_numbers = #tpu.dot_dimension_numbers<[1], [0], [0], [1], [0, 0, 1, 1], [], []>} : vector<8x256xf32>, vector<256x256xf32>, vector<8x256xf32> -> vector<8x256xf32>
    %cst_8 = arith.constant 1.000000e+00 : f32
    %18 = vector.broadcast %cst_8 : f32 to vector<1x256xf32>
    %19 = arith.divf %18, %16 : vector<1x256xf32>
    %20 = vector.broadcast %19 : vector<1x256xf32> to vector<8x256xf32>
    %21 = arith.mulf %17, %20 : vector<8x256xf32>
    %c0_9 = arith.constant 0 : index
    %c0_10 = arith.constant 0 : index
    %c0_11 = arith.constant 0 : index
    %22 = vector.load %arg9[%c0_9, %c0_10, %c0_11] : memref<1x32x256xf32, #tpu.memory_space<vmem>>, vector<1x8x256xf32>
    %23 = vector.shape_cast %22 : vector<1x8x256xf32> to vector<8x256xf32>
    %24 = vector.shape_cast %21 : vector<8x256xf32> to vector<1x8x256xf32>
    tpu.vector_store %arg9[%c0_9, %c0_10, %c0_11], %24 {strides = array<i32>} : memref<1x32x256xf32, #tpu.memory_space<vmem>>, vector<1x8x256xf32>,
    %c8 = arith.constant 8 : index
    %25 = arith.index_cast %4 : i32 to index
    %26 = vector.load %arg10[%c8, %25] : memref<32x256xf32, #tpu.memory_space<vmem>>, vector<8x256xf32>
    %c8_12 = arith.constant 8 : index
    %c0_13 = arith.constant 0 : index
    %27 = vector.load %arg11[%c8_12, %c0_13] : memref<32x256xf32, #tpu.memory_space<vmem>>, vector<8x256xf32>
    %c8_14 = arith.constant 8 : index
    %c0_15 = arith.constant 0 : index
    %28 = vector.load %arg12[%c8_14, %c0_15] : memref<32x256xf32, #tpu.memory_space<vmem>>, vector<8x256xf32>
    %cst_16 = arith.constant dense<0.000000e+00> : vector<256x256xf32>
    %29 = tpu.matmul %27, %26, %cst_16 {dimension_numbers = #tpu.dot_dimension_numbers<[0], [0], [1], [1], [0, 1, 1, 1], [], []>} : vector<8x256xf32>, vector<8x256xf32>, vector<256x256xf32> -> vector<256x256xf32>
    %cst_17 = arith.constant dense<0xFF800000> : vector<256xf32>
    %30 = vector.multi_reduction <maximumf>, %29, %cst_17 [0] : vector<256x256xf32> to vector<256xf32>
    %31 = vector.shape_cast %30 : vector<256xf32> to vector<1x256xf32>
    %32 = vector.broadcast %31 : vector<1x256xf32> to vector<256x256xf32>
    %33 = arith.subf %29, %32 : vector<256x256xf32>
    %34 = math.exp %33 : vector<256x256xf32>
    %cst_18 = arith.constant dense<0.000000e+00> : vector<256xf32>
    %35 = vector.multi_reduction <add>, %34, %cst_18 [0] : vector<256x256xf32> to vector<256xf32>
    %36 = vector.shape_cast %35 : vector<256xf32> to vector<1x256xf32>
    %cst_19 = arith.constant dense<0.000000e+00> : vector<8x256xf32>
    %37 = tpu.matmul %28, %34, %cst_19 {dimension_numbers = #tpu.dot_dimension_numbers<[1], [0], [0], [1], [0, 0, 1, 1], [], []>} : vector<8x256xf32>, vector<256x256xf32>, vector<8x256xf32> -> vector<8x256xf32>
    %cst_20 = arith.constant 1.000000e+00 : f32
    %38 = vector.broadcast %cst_20 : f32 to vector<1x256xf32>
    %39 = arith.divf %38, %36 : vector<1x256xf32>
    %40 = vector.broadcast %39 : vector<1x256xf32> to vector<8x256xf32>
    %41 = arith.mulf %37, %40 : vector<8x256xf32>
    %c0_21 = arith.constant 0 : index
    %c8_22 = arith.constant 8 : index
    %c0_23 = arith.constant 0 : index
    %42 = vector.load %arg9[%c0_21, %c8_22, %c0_23] : memref<1x32x256xf32, #tpu.memory_space<vmem>>, vector<1x8x256xf32>
    %43 = vector.shape_cast %42 : vector<1x8x256xf32> to vector<8x256xf32>
    %44 = vector.shape_cast %41 : vector<8x256xf32> to vector<1x8x256xf32>
    tpu.vector_store %arg9[%c0_21, %c8_22, %c0_23], %44 {strides = array<i32>} : memref<1x32x256xf32, #tpu.memory_space<vmem>>, vector<1x8x256xf32>,
    %c16 = arith.constant 16 : index
    %45 = arith.index_cast %4 : i32 to index
    %46 = vector.load %arg10[%c16, %45] : memref<32x256xf32, #tpu.memory_space<vmem>>, vector<8x256xf32>
    %c16_24 = arith.constant 16 : index
    %c0_25 = arith.constant 0 : index
    %47 = vector.load %arg11[%c16_24, %c0_25] : memref<32x256xf32, #tpu.memory_space<vmem>>, vector<8x256xf32>
    %c16_26 = arith.constant 16 : index
    %c0_27 = arith.constant 0 : index
    %48 = vector.load %arg12[%c16_26, %c0_27] : memref<32x256xf32, #tpu.memory_space<vmem>>, vector<8x256xf32>
    %cst_28 = arith.constant dense<0.000000e+00> : vector<256x256xf32>
    %49 = tpu.matmul %47, %46, %cst_28 {dimension_numbers = #tpu.dot_dimension_numbers<[0], [0], [1], [1], [0, 1, 1, 1], [], []>} : vector<8x256xf32>, vector<8x256xf32>, vector<256x256xf32> -> vector<256x256xf32>
    %cst_29 = arith.constant dense<0xFF800000> : vector<256xf32>
    %50 = vector.multi_reduction <maximumf>, %49, %cst_29 [0] : vector<256x256xf32> to vector<256xf32>
    %51 = vector.shape_cast %50 : vector<256xf32> to vector<1x256xf32>
    %52 = vector.broadcast %51 : vector<1x256xf32> to vector<256x256xf32>
    %53 = arith.subf %49, %52 : vector<256x256xf32>
    %54 = math.exp %53 : vector<256x256xf32>
    %cst_30 = arith.constant dense<0.000000e+00> : vector<256xf32>
    %55 = vector.multi_reduction <add>, %54, %cst_30 [0] : vector<256x256xf32> to vector<256xf32>
    %56 = vector.shape_cast %55 : vector<256xf32> to vector<1x256xf32>
    %cst_31 = arith.constant dense<0.000000e+00> : vector<8x256xf32>
    %57 = tpu.matmul %48, %54, %cst_31 {dimension_numbers = #tpu.dot_dimension_numbers<[1], [0], [0], [1], [0, 0, 1, 1], [], []>} : vector<8x256xf32>, vector<256x256xf32>, vector<8x256xf32> -> vector<8x256xf32>
    %cst_32 = arith.constant 1.000000e+00 : f32
    %58 = vector.broadcast %cst_32 : f32 to vector<1x256xf32>
    %59 = arith.divf %58, %56 : vector<1x256xf32>
    %60 = vector.broadcast %59 : vector<1x256xf32> to vector<8x256xf32>
    %61 = arith.mulf %57, %60 : vector<8x256xf32>
    %c0_33 = arith.constant 0 : index
    %c16_34 = arith.constant 16 : index
    %c0_35 = arith.constant 0 : index
    %62 = vector.load %arg9[%c0_33, %c16_34, %c0_35] : memref<1x32x256xf32, #tpu.memory_space<vmem>>, vector<1x8x256xf32>
    %63 = vector.shape_cast %62 : vector<1x8x256xf32> to vector<8x256xf32>
    %64 = vector.shape_cast %61 : vector<8x256xf32> to vector<1x8x256xf32>
    tpu.vector_store %arg9[%c0_33, %c16_34, %c0_35], %64 {strides = array<i32>} : memref<1x32x256xf32, #tpu.memory_space<vmem>>, vector<1x8x256xf32>,
    %c24 = arith.constant 24 : index
    %65 = arith.index_cast %4 : i32 to index
    %66 = vector.load %arg10[%c24, %65] : memref<32x256xf32, #tpu.memory_space<vmem>>, vector<8x256xf32>
    %c24_36 = arith.constant 24 : index
    %c0_37 = arith.constant 0 : index
    %67 = vector.load %arg11[%c24_36, %c0_37] : memref<32x256xf32, #tpu.memory_space<vmem>>, vector<8x256xf32>
    %c24_38 = arith.constant 24 : index
    %c0_39 = arith.constant 0 : index
    %68 = vector.load %arg12[%c24_38, %c0_39] : memref<32x256xf32, #tpu.memory_space<vmem>>, vector<8x256xf32>
    %cst_40 = arith.constant dense<0.000000e+00> : vector<256x256xf32>
    %69 = tpu.matmul %67, %66, %cst_40 {dimension_numbers = #tpu.dot_dimension_numbers<[0], [0], [1], [1], [0, 1, 1, 1], [], []>} : vector<8x256xf32>, vector<8x256xf32>, vector<256x256xf32> -> vector<256x256xf32>
    %cst_41 = arith.constant dense<0xFF800000> : vector<256xf32>
    %70 = vector.multi_reduction <maximumf>, %69, %cst_41 [0] : vector<256x256xf32> to vector<256xf32>
    %71 = vector.shape_cast %70 : vector<256xf32> to vector<1x256xf32>
    %72 = vector.broadcast %71 : vector<1x256xf32> to vector<256x256xf32>
    %73 = arith.subf %69, %72 : vector<256x256xf32>
    %74 = math.exp %73 : vector<256x256xf32>
    %cst_42 = arith.constant dense<0.000000e+00> : vector<256xf32>
    %75 = vector.multi_reduction <add>, %74, %cst_42 [0] : vector<256x256xf32> to vector<256xf32>
    %76 = vector.shape_cast %75 : vector<256xf32> to vector<1x256xf32>
    %cst_43 = arith.constant dense<0.000000e+00> : vector<8x256xf32>
    %77 = tpu.matmul %68, %74, %cst_43 {dimension_numbers = #tpu.dot_dimension_numbers<[1], [0], [0], [1], [0, 0, 1, 1], [], []>} : vector<8x256xf32>, vector<256x256xf32>, vector<8x256xf32> -> vector<8x256xf32>
    %cst_44 = arith.constant 1.000000e+00 : f32
    %78 = vector.broadcast %cst_44 : f32 to vector<1x256xf32>
    %79 = arith.divf %78, %76 : vector<1x256xf32>
    %80 = vector.broadcast %79 : vector<1x256xf32> to vector<8x256xf32>
    %81 = arith.mulf %77, %80 : vector<8x256xf32>
    %c0_45 = arith.constant 0 : index
    %c24_46 = arith.constant 24 : index
    %c0_47 = arith.constant 0 : index
    %82 = vector.load %arg9[%c0_45, %c24_46, %c0_47] : memref<1x32x256xf32, #tpu.memory_space<vmem>>, vector<1x8x256xf32>
    %83 = vector.shape_cast %82 : vector<1x8x256xf32> to vector<8x256xf32>
    %84 = vector.shape_cast %81 : vector<8x256xf32> to vector<1x8x256xf32>
    tpu.vector_store %arg9[%c0_45, %c24_46, %c0_47], %84 {strides = array<i32>} : memref<1x32x256xf32, #tpu.memory_space<vmem>>, vector<1x8x256xf32>,
    return
  }
  func.func @transform_0(%arg0: i32, %arg1: i32) -> (i32, i32, i32) {
    %c0_i32 = arith.constant 0 : i32
    %c0_i32_0 = arith.constant 0 : i32
    %c0_i32_1 = arith.constant 0 : i32
    return %arg0, %c0_i32, %c0_i32_0 : i32, i32, i32
  }
  func.func @transform_1(%arg0: i32, %arg1: i32) -> (i32, i32) {
    %c0_i32 = arith.constant 0 : i32
    %c0_i32_0 = arith.constant 0 : i32
    %c0_i32_1 = arith.constant 0 : i32
    return %c0_i32, %c0_i32_0 : i32, i32
  }
  func.func @transform_2(%arg0: i32, %arg1: i32) -> (i32, i32) {
    %c0_i32 = arith.constant 0 : i32
    %c0_i32_0 = arith.constant 0 : i32
    %c0_i32_1 = arith.constant 0 : i32
    return %c0_i32, %c0_i32_0 : i32, i32
  }
  func.func @transform_3(%arg0: i32, %arg1: i32) -> (i32, i32) {
    %c0_i32 = arith.constant 0 : i32
    %c0_i32_0 = arith.constant 0 : i32
    %c0_i32_1 = arith.constant 0 : i32
    return %c0_i32, %c0_i32_0 : i32, i32
  }
  func.func @transform_4(%arg0: i32, %arg1: i32) -> (i32, i32) {
    %c0_i32 = arith.constant 0 : i32
    %c0_i32_0 = arith.constant 0 : i32
    %c0_i32_1 = arith.constant 0 : i32
    return %c0_i32, %c0_i32_0 : i32, i32
  }
  func.func @transform_5(%arg0: i32, %arg1: i32) -> (i32, i32) {
    %c0_i32 = arith.constant 0 : i32
    %c0_i32_0 = arith.constant 0 : i32
    %c0_i32_1 = arith.constant 0 : i32
    return %c0_i32, %c0_i32_0 : i32, i32
  }
  func.func @transform_6(%arg0: i32, %arg1: i32) -> (i32, i32) {
    %c0_i32 = arith.constant 0 : i32
    %c0_i32_0 = arith.constant 0 : i32
    %c0_i32_1 = arith.constant 0 : i32
    return %c0_i32, %c0_i32_0 : i32, i32
  }
  func.func @transform_7(%arg0: i32, %arg1: i32) -> (i32, i32, i32) {
    %c0_i32 = arith.constant 0 : i32
    %c0_i32_0 = arith.constant 0 : i32
    return %arg0, %c0_i32, %arg1 : i32, i32, i32
  }
}

</mosaic_0001>

<llo_original>
// kernel: tpu_custom_call.1
$region0: #{tpu_custom_call.1}
  #allocation0 [shape = 'u32[]', space=smem, size = 0x4, offset = 0x4, fixed_abs, tag = 'smem constant byte address 0x4 - core index']
  #allocation1 [shape = 'u32[72,128]{1,0:T(1,128)}', space=vmem, size = 0x9000, scoped, tag = 'internal scratch']
  #allocation2 [shape = 'f32[32,256]{1,0:T(8,128)}', space=vmem, size = 0x8000, scoped, tag = 'scratch operand']
  #allocation3 [shape = 'f32[32,256]{1,0:T(8,128)}', space=vmem, size = 0x8000, scoped, tag = 'scratch operand']
  #allocation4 [shape = 'f32[32,256]{1,0:T(8,128)}', space=vmem, size = 0x8000, scoped, tag = 'scratch operand']
  %s0 = inlined_call_operand.hbm [shape: f32[2,32,256], index: 0, kind: input, shape index: {}]
  %s1 = inlined_call_operand.vmem [shape: f32[32,32], index: 1, kind: input, shape index: {}]
  %s2 = inlined_call_operand.vmem [shape: f32[32,1], index: 2, kind: input, shape index: {}]
  %s3 = inlined_call_operand.vmem [shape: f32[32,32], index: 3, kind: input, shape index: {}]
  %s4 = inlined_call_operand.vmem [shape: f32[32,1], index: 4, kind: input, shape index: {}]
  %s5 = inlined_call_operand.vmem [shape: f32[32,32], index: 5, kind: input, shape index: {}]
  %s6 = inlined_call_operand.vmem [shape: f32[32,1], index: 6, kind: input, shape index: {}]
  %s7 = inlined_call_operand.hbm [shape: f32[2,32,256], index: 7, kind: output, shape index: {}]
  %s8 = sld [smem:[#allocation0]]
  $region69: #{tpu_custom_call.1} parent=0
    _
  %s10 = ssub.s32 1, %s8
  %s11 = scalar_select 0, %s10, %s8
  $region1: #{tpu_custom_call.1} parent=0
    #allocation5 [shape = 'u8[65536]{0}', space=vmem, size = 0x10000, scoped, tag = 'input window, operand 0']
    #allocation6 [shape = 's32[2]{0}', space=sflag, size = 0x8, scoped, tag = 'scoped memory for tpu_custom_call.1']
    #allocation7 [shape = 's32[2]{0}', space=sflag, size = 0x8, scoped, tag = 'scoped memory for tpu_custom_call.1']
    #allocation8 [shape = 'u8[65536]{0}', space=vmem, size = 0x10000, scoped, tag = 'output window, operand 0']
    %12 = vsyncpa [#allocation6], 0
    %s13 = scalar_lea.sflag [#allocation6], 1
    %14 = vsyncpa %s13, 0
    %15 = vsyncpa [#allocation7], 0
    %s16 = scalar_lea.sflag [#allocation7], 1
    %17 = vsyncpa %s16, 0
    loop: start=0, step=1, limit=4
    $region2: #{tpu_custom_call.1} parent=1 // loop_pre_header
      _
    $region3: #{tpu_custom_call.1} parent=1 // loop_header
      %s19 = sphi 0, %s23
      %p20 = scmp.ge.s32.totalorder %s19, 4
      %s26 = sphi 0, %s38
      %s27 = sphi 0, %s34
      %s28 = sphi 0, %s26
      %s29 = sphi 0, %s27
      %s30 = sphi 0, %s28
      %s31 = sphi 0, %s29
      %s41 = sphi 0, %s43
      %s44 = sphi 0, %s41
      %s45 = sphi 0, %s44
      %s61 = sphi 0, %s45
      %s65 = sphi 0, %s65
      %s67 = sphi 0, %s65
      %s68 = sphi 0, %s67
      %s82 = sphi 0, %s68
      %s86 = sphi 0, %s86
      %s88 = sphi 0, %s86
      %s89 = sphi 0, %s88
      %s103 = sphi 0, %s89
      %s107 = sphi 0, %s107
      %s109 = sphi 0, %s107
      %s110 = sphi 0, %s109
      %s124 = sphi 0, %s110
      %s128 = sphi 0, %s128
      %s130 = sphi 0, %s128
      %s131 = sphi 0, %s130
      %s145 = sphi 0, %s131
      %s149 = sphi 0, %s149
      %s151 = sphi 0, %s149
      %s152 = sphi 0, %s151
      %s166 = sphi 0, %s152
      %s170 = sphi 0, %s170
      %s172 = sphi 0, %s170
      %s173 = sphi 0, %s172
      %s187 = sphi 0, %s173
      %s195 = sphi 0, %s197
      %s198 = sphi 0, %s195
      %s199 = sphi 0, %s198
      %s215 = sphi 0, %s199
    $region4: #{tpu_custom_call.1} parent=1 // loop_header_branch
      %22 = sbr.rel (%p20) target = $region8
    $region5: #{tpu_custom_call.1} parent=1 // loop_body
      %s24 = ssub.s32 %s19, 1
      %s25 = ssub.s32 %s19, 2
      %s32 = sadd.s32 1, %s27
      %p33 = scmp.ge.s32.totalorder %s32, 1
      %s34 = scalar_select %p33, 0, %s32
      %s35 = sadd.s32 1, %s26
      %s36 = scalar_select %p33, %s35, %s26
      %p37 = scmp.ge.s32.totalorder %s36, 2
      %s38 = scalar_select %p37, 0, %s36
      %s39 = ssub.s32 %s26, %s38
      %p40 = scmp.eq.s32.totalorder %s39, 0
      %s42 = sadd.s32 %s41, 1
      %s43 = scalar_select %p40, %s41, %s42
      %p46 = pneg %p40
      %p47 = scmp.eq.s32.totalorder %s19, 1
      %p48 = por %p46, %p47
      %p49 = scmp.ne.s32.totalorder %s41, %s44
      %p50 = scmp.eq.s32.totalorder %s19, 0
      %p51 = por %p49, %p50
      %p52 = scmp.ne.s32.totalorder %s41, %s44
      %p53 = scmp.eq.s32.totalorder %s24, 1
      %p54 = por %p52, %p53
      %p55 = scmp.ne.s32.totalorder %s44, %s45
      %p56 = scmp.eq.s32.totalorder %s24, 0
      %p57 = por %p55, %p56
      %p58 = scmp.ne.s32.totalorder %s44, %s45
      %p59 = scmp.eq.s32.totalorder %s25, 1
      %p60 = por %p58, %p59
      %p62 = scmp.ne.s32.totalorder %s45, %s61
      %p63 = scmp.eq.s32.totalorder %s25, 0
      %p64 = por %p62, %p63
      %s66 = sadd.s32 %s65, 1
      %p69 = scmp.eq.s32.totalorder %s19, 1
      %p70 = scmp.ne.s32.totalorder %s65, %s67
      %p71 = scmp.eq.s32.totalorder %s19, 0
      %p72 = por %p70, %p71
      %p73 = scmp.ne.s32.totalorder %s65, %s67
      %p74 = scmp.eq.s32.totalorder %s24, 1
      %p75 = por %p73, %p74
      %p76 = scmp.ne.s32.totalorder %s67, %s68
      %p77 = scmp.eq.s32.totalorder %s24, 0
      %p78 = por %p76, %p77
      %p79 = scmp.ne.s32.totalorder %s67, %s68
      %p80 = scmp.eq.s32.totalorder %s25, 1
      %p81 = por %p79, %p80
      %p83 = scmp.ne.s32.totalorder %s68, %s82
      %p84 = scmp.eq.s32.totalorder %s25, 0
      %p85 = por %p83, %p84
      %s87 = sadd.s32 %s86, 1
      %p90 = scmp.eq.s32.totalorder %s19, 1
      %p91 = scmp.ne.s32.totalorder %s86, %s88
      %p92 = scmp.eq.s32.totalorder %s19, 0
      %p93 = por %p91, %p92
      %p94 = scmp.ne.s32.totalorder %s86, %s88
      %p95 = scmp.eq.s32.totalorder %s24, 1
      %p96 = por %p94, %p95
      %p97 = scmp.ne.s32.totalorder %s88, %s89
      %p98 = scmp.eq.s32.totalorder %s24, 0
      %p99 = por %p97, %p98
      %p100 = scmp.ne.s32.totalorder %s88, %s89
      %p101 = scmp.eq.s32.totalorder %s25, 1
      %p102 = por %p100, %p101
      %p104 = scmp.ne.s32.totalorder %s89, %s103
      %p105 = scmp.eq.s32.totalorder %s25, 0
      %p106 = por %p104, %p105
      %s108 = sadd.s32 %s107, 1
      %p111 = scmp.eq.s32.totalorder %s19, 1
      %p112 = scmp.ne.s32.totalorder %s107, %s109
      %p113 = scmp.eq.s32.totalorder %s19, 0
      %p114 = por %p112, %p113
      %p115 = scmp.ne.s32.totalorder %s107, %s109
      %p116 = scmp.eq.s32.totalorder %s24, 1
      %p117 = por %p115, %p116
      %p118 = scmp.ne.s32.totalorder %s109, %s110
      %p119 = scmp.eq.s32.totalorder %s24, 0
      %p120 = por %p118, %p119
      %p121 = scmp.ne.s32.totalorder %s109, %s110
      %p122 = scmp.eq.s32.totalorder %s25, 1
      %p123 = por %p121, %p122
      %p125 = scmp.ne.s32.totalorder %s110, %s124
      %p126 = scmp.eq.s32.totalorder %s25, 0
      %p127 = por %p125, %p126
      %s129 = sadd.s32 %s128, 1
      %p132 = scmp.eq.s32.totalorder %s19, 1
      %p133 = scmp.ne.s32.totalorder %s128, %s130
      %p134 = scmp.eq.s32.totalorder %s19, 0
      %p135 = por %p133, %p134
      %p136 = scmp.ne.s32.totalorder %s128, %s130
      %p137 = scmp.eq.s32.totalorder %s24, 1
      %p138 = por %p136, %p137
      %p139 = scmp.ne.s32.totalorder %s130, %s131
      %p140 = scmp.eq.s32.totalorder %s24, 0
      %p141 = por %p139, %p140
      %p142 = scmp.ne.s32.totalorder %s130, %s131
      %p143 = scmp.eq.s32.totalorder %s25, 1
      %p144 = por %p142, %p143
      %p146 = scmp.ne.s32.totalorder %s131, %s145
      %p147 = scmp.eq.s32.totalorder %s25, 0
      %p148 = por %p146, %p147
      %s150 = sadd.s32 %s149, 1
      %p153 = scmp.eq.s32.totalorder %s19, 1
      %p154 = scmp.ne.s32.totalorder %s149, %s151
      %p155 = scmp.eq.s32.totalorder %s19, 0
      %p156 = por %p154, %p155
      %p157 = scmp.ne.s32.totalorder %s149, %s151
      %p158 = scmp.eq.s32.totalorder %s24, 1
      %p159 = por %p157, %p158
      %p160 = scmp.ne.s32.totalorder %s151, %s152
      %p161 = scmp.eq.s32.totalorder %s24, 0
      %p162 = por %p160, %p161
      %p163 = scmp.ne.s32.totalorder %s151, %s152
      %p164 = scmp.eq.s32.totalorder %s25, 1
      %p165 = por %p163, %p164
      %p167 = scmp.ne.s32.totalorder %s152, %s166
      %p168 = scmp.eq.s32.totalorder %s25, 0
      %p169 = por %p167, %p168
      %s171 = sadd.s32 %s170, 1
      %p174 = scmp.eq.s32.totalorder %s19, 1
      %p175 = scmp.ne.s32.totalorder %s170, %s172
      %p176 = scmp.eq.s32.totalorder %s19, 0
      %p177 = por %p175, %p176
      %p178 = scmp.ne.s32.totalorder %s170, %s172
      %p179 = scmp.eq.s32.totalorder %s24, 1
      %p180 = por %p178, %p179
      %p181 = scmp.ne.s32.totalorder %s172, %s173
      %p182 = scmp.eq.s32.totalorder %s24, 0
      %p183 = por %p181, %p182
      %p184 = scmp.ne.s32.totalorder %s172, %s173
      %p185 = scmp.eq.s32.totalorder %s25, 1
      %p186 = por %p184, %p185
      %p188 = scmp.ne.s32.totalorder %s173, %s187
      %p189 = scmp.eq.s32.totalorder %s25, 0
      %p190 = por %p188, %p189
      %s191 = ssub.s32 %s26, %s38
      %s192 = ssub.s32 %s27, %s34
      %s193 = sor.u32 %s191, %s192
      %p194 = scmp.eq.s32.totalorder %s193, 0
      %s196 = sadd.s32 %s195, 1
      %s197 = scalar_select %p194, %s195, %s196
      %p200 = pneg %p194
      %p201 = scmp.eq.s32.totalorder %s19, 1
      %p202 = por %p200, %p201
      %p203 = scmp.ne.s32.totalorder %s195, %s198
      %p204 = scmp.eq.s32.totalorder %s19, 0
      %p205 = por %p203, %p204
      %p206 = scmp.ne.s32.totalorder %s195, %s198
      %p207 = scmp.eq.s32.totalorder %s24, 1
      %p208 = por %p206, %p207
      %p209 = scmp.ne.s32.totalorder %s198, %s199
      %p210 = scmp.eq.s32.totalorder %s24, 0
      %p211 = por %p209, %p210
      %p212 = scmp.ne.s32.totalorder %s198, %s199
      %p213 = scmp.eq.s32.totalorder %s25, 1
      %p214 = por %p212, %p213
      %p216 = scmp.ne.s32.totalorder %s199, %s215
      %p217 = scmp.eq.s32.totalorder %s25, 0
      %p218 = por %p216, %p217
      %p219 = scmp.le.s32.totalorder 1, %s19
      %p220 = scmp.lt.s32.totalorder %s19, 3
      %p221 = pnand %p219, %p220
      %p222 = pneg %p221
      // Predicated region
      $region9: #{tpu_custom_call.1} parent=5 // pred_check
        _
      $region10: #{tpu_custom_call.1} parent=5 // pred_check_branch
        %224 = sbr.rel (%p221) target = $region12
      $region11: #{tpu_custom_call.1} parent=5 // pred_region
        %s225 = ssub.s32 %s19, 1
        // Predicated region
        $region13: #{tpu_custom_call.1} parent=11 // pred_check
          %p226 = pneg %p78
        $region14: #{tpu_custom_call.1} parent=11 // pred_check_branch
          %228 = sbr.rel (%p226) target = $region16
        $region15: #{tpu_custom_call.1} parent=11 // pred_region
          _
        $region16: #{tpu_custom_call.1} parent=11 // pred_fallthru
          _
        // Predicated region
        $region17: #{tpu_custom_call.1} parent=11 // pred_check
          %p229 = pneg %p99
        $region18: #{tpu_custom_call.1} parent=11 // pred_check_branch
          %231 = sbr.rel (%p229) target = $region20
        $region19: #{tpu_custom_call.1} parent=11 // pred_region
          _
        $region20: #{tpu_custom_call.1} parent=11 // pred_fallthru
          _
        // Predicated region
        $region21: #{tpu_custom_call.1} parent=11 // pred_check
          %p232 = pneg %p120
        $region22: #{tpu_custom_call.1} parent=11 // pred_check_branch
          %234 = sbr.rel (%p232) target = $region24
        $region23: #{tpu_custom_call.1} parent=11 // pred_region
          _
        $region24: #{tpu_custom_call.1} parent=11 // pred_fallthru
          _
        // Predicated region
        $region25: #{tpu_custom_call.1} parent=11 // pred_check
          %p235 = pneg %p141
        $region26: #{tpu_custom_call.1} parent=11 // pred_check_branch
          %237 = sbr.rel (%p235) target = $region28
        $region27: #{tpu_custom_call.1} parent=11 // pred_region
          _
        $region28: #{tpu_custom_call.1} parent=11 // pred_fallthru
          _
        // Predicated region
        $region29: #{tpu_custom_call.1} parent=11 // pred_check
          %p238 = pneg %p162
        $region30: #{tpu_custom_call.1} parent=11 // pred_check_branch
          %240 = sbr.rel (%p238) target = $region32
        $region31: #{tpu_custom_call.1} parent=11 // pred_region
          _
        $region32: #{tpu_custom_call.1} parent=11 // pred_fallthru
          _
        // Predicated region
        $region33: #{tpu_custom_call.1} parent=11 // pred_check
          %p241 = pneg %p183
        $region34: #{tpu_custom_call.1} parent=11 // pred_check_branch
          %243 = sbr.rel (%p241) target = $region36
        $region35: #{tpu_custom_call.1} parent=11 // pred_region
          _
        $region36: #{tpu_custom_call.1} parent=11 // pred_fallthru
          _
      $region12: #{tpu_custom_call.1} parent=5 // pred_fallthru
        _
      %p244 = scmp.lt.s32.totalorder %s19, 2
      // Predicated region
      $region37: #{tpu_custom_call.1} parent=5 // pred_check
        %p245 = pneg %p244
      $region38: #{tpu_custom_call.1} parent=5 // pred_check_branch
        %247 = sbr.rel (%p245) target = $region40
      $region39: #{tpu_custom_call.1} parent=5 // pred_region
        // Predicated region
        $region41: #{tpu_custom_call.1} parent=39 // pred_check
          %p248 = pneg %p51
        $region42: #{tpu_custom_call.1} parent=39 // pred_check_branch
          %250 = sbr.rel (%p248) target = $region44
        $region43: #{tpu_custom_call.1} parent=39 // pred_region
          %s251 = sand.u32 %s41, 1
          %s252 = scalar_lea.sflag [#allocation6], %s251
          %s253 = sand.u32 %s41, 1
          %s254 = smul.addr %s253, 64
          %s255 = scalar_lea.vmem [#allocation5], %s254
          %257 = vsyncadd %s252, 0
          %s258 = smul.addr %s26, 8
          %s259 = smul.addr %s258, 8
          %s260 = scalar_lea.hbm %s0, %s259
          %s261 = sshll.u32 %s260, 4
          %s262 = int_to_ptr.hbm [resolvable:$true] %s261
          %s263 = sshll.u32 %s255, 4
          %s264 = int_to_ptr.vmem [resolvable:$true] %s263
          %269 = dma.hbm_to_vmem [thread:$0]  %s262, 1024, %s264, %s252, 256, 256, 16
        $region44: #{tpu_custom_call.1} parent=39 // pred_fallthru
          _
      $region40: #{tpu_custom_call.1} parent=5 // pred_fallthru
        _
      %p270 = scmp.le.s32.totalorder 1, %s19
      %p271 = scmp.lt.s32.totalorder %s19, 3
      %p272 = pnand %p270, %p271
      %p273 = pneg %p272
      // Predicated region
      $region45: #{tpu_custom_call.1} parent=5 // pred_check
        _
      $region46: #{tpu_custom_call.1} parent=5 // pred_check_branch
        %275 = sbr.rel (%p272) target = $region48
      $region47: #{tpu_custom_call.1} parent=5 // pred_region
        %s276 = ssub.s32 %s19, 1
        %s277 = sand.u32 %s44, 1
        %s278 = scalar_lea.sflag [#allocation6], %s277
        %s279 = sand.u32 %s44, 1
        %s280 = smul.addr %s279, 64
        %s281 = scalar_lea.vmem [#allocation5], %s280
        // Predicated region
        $region49: #{tpu_custom_call.1} parent=47 // pred_check
          %p282 = pneg %p57
        $region50: #{tpu_custom_call.1} parent=47 // pred_check_branch
          %284 = sbr.rel (%p282) target = $region52
        $region51: #{tpu_custom_call.1} parent=47 // pred_region
          %286 = dma.done %s278, 1024
        $region52: #{tpu_custom_call.1} parent=47 // pred_fallthru
          _
        %s287 = sand.u32 %s44, 1
        %s288 = scalar_lea.sflag [#allocation6], %s287
        %s289 = sand.u32 %s44, 1
        %s290 = smul.addr %s289, 64
        %s291 = scalar_lea.vmem [#allocation5], %s290
        %p292 = pneg %p57
        %p293 = pneg %p54
        %p294 = pneg %p78
        %p295 = pneg %p75
        %p296 = pneg %p99
        %p297 = pneg %p96
        %p298 = pneg %p120
        %p299 = pneg %p117
        %p300 = pneg %p141
        %p301 = pneg %p138
        %p302 = pneg %p162
        %p303 = pneg %p159
        %p304 = pneg %p183
        %p305 = pneg %p180
        %p306 = pneg %p211
        %p307 = pneg %p208
        %s308 = sand.u32 %s198, 1
        %s309 = scalar_lea.sflag [#allocation7], %s308
        %s310 = sand.u32 %s198, 1
        %s311 = smul.addr %s310, 64
        %s312 = scalar_lea.vmem [#allocation8], %s311
        %s313 = smul.u32 2, %s29
        %p314 = scmp.eq.s32.totalorder %s29, 0
        // Predicated region
        $region53: #{tpu_custom_call.1} parent=47 // pred_check
          %p315 = pneg %p314
        $region54: #{tpu_custom_call.1} parent=47 // pred_check_branch
          %317 = sbr.rel (%p315) target = $region56
        $region55: #{tpu_custom_call.1} parent=47 // pred_region
          %v318 = vld [vmem:[%s281] sm:$0xff]
          %v319 = vld [vmem:[%s281 + $0x8] sm:$0xff]
          %v320 = vld [vmem:[%s281 + $0x10] sm:$0xff]
          %v321 = vld [vmem:[%s281 + $0x18] sm:$0xff]
          %v322 = vld [vmem:[%s281 + $0x20] sm:$0xff]
          %v323 = vld [vmem:[%s281 + $0x28] sm:$0xff]
          %v324 = vld [vmem:[%s281 + $0x30] sm:$0xff]
          %v325 = vld [vmem:[%s281 + $0x38] sm:$0xff]
          %v326 = vld [vmem:[%s1] sm:$0xff]
          %v327 = vld [vmem:[%s1 + $0x8] sm:$0xff]
          %v328 = vld [vmem:[%s1 + $0x10] sm:$0xff]
          %v329 = vld [vmem:[%s1 + $0x18] sm:$0xff]
          %v330 = vld [vmem:[%s2] sm:$0xff]
          %v331 = vld [vmem:[%s2 + $0x8] sm:$0xff]
          %v332 = vld [vmem:[%s2 + $0x10] sm:$0xff]
          %v333 = vld [vmem:[%s2 + $0x18] sm:$0xff]
          %335 = vset.pattern.permute.xlu0 0
          %336 = vperm.xlu0 %335, %v330
          %v337 = vpop.permute.xlu0 %336
          %340 = vset.pattern.permute.xlu0 0
          %341 = vperm.xlu0 %340, %v331
          %v342 = vpop.permute.xlu0 %341
          %345 = vset.pattern.permute.xlu0 0
          %346 = vperm.xlu0 %345, %v332
          %v347 = vpop.permute.xlu0 %346
          %350 = vset.pattern.permute.xlu0 0
          %351 = vperm.xlu0 %350, %v333
          %v352 = vpop.permute.xlu0 %351
          %vm354 = vcmask 261120
          %v356 = vsel %vm354, %v326, 0
          %v359 = vsel %vm354, %v327, 0
          %v362 = vsel %vm354, %v328, 0
          %v365 = vsel %vm354, %v329, 0
          %367 = vmatpush.msra.mxu0 0.0
          %368 = vmatpush.msra.mxu0 0.0
          %369 = vmatpush.msra.mxu0 0.0
          %370 = vmatpush.msra.mxu0 0.0
          %371 = vmatpush.msra.mxu0 0.0
          %372 = vmatpush.msra.mxu0 0.0
          %373 = vmatpush.msra.mxu0 0.0
          %374 = vmatpush.msra.mxu0 0.0
          %375 = vmatpush.msra.mxu0 0.0
          %376 = vmatpush.msra.mxu0 0.0
          %377 = vmatpush.msra.mxu0 0.0
          %378 = vmatpush.msra.mxu0 0.0
          %379 = vmatpush.msra.mxu0 %v324
          %380 = vmatpush.msra.mxu0 %v322
          %381 = vmatpush.msra.mxu0 %v320
          %382 = vmatpush.msra.mxu0 %v318
          %383 = vmatmul.f32.gmra.mxu0 %v356
          %v384 = vpop.f32.mrf.mxu0
          %v385 = vadd.f32 %v337, %v384
          %386 = vmatmul.f32.gmra.mxu0 %v359
          %v387 = vpop.f32.mrf.mxu0
          %v388 = vadd.f32 %v342, %v387
          %389 = vmatmul.f32.gmra.mxu0 %v362
          %v390 = vpop.f32.mrf.mxu0
          %v391 = vadd.f32 %v347, %v390
          %392 = vmatmul.f32.gmra.mxu0 %v365
          %v393 = vpop.f32.mrf.mxu0
          %v394 = vadd.f32 %v352, %v393
          %395 = vdwg.mxu0
          %396 = vmatpush.msra.mxu0 0.0
          %397 = vmatpush.msra.mxu0 0.0
          %398 = vmatpush.msra.mxu0 0.0
          %399 = vmatpush.msra.mxu0 0.0
          %400 = vmatpush.msra.mxu0 0.0
          %401 = vmatpush.msra.mxu0 0.0
          %402 = vmatpush.msra.mxu0 0.0
          %403 = vmatpush.msra.mxu0 0.0
          %404 = vmatpush.msra.mxu0 0.0
          %405 = vmatpush.msra.mxu0 0.0
          %406 = vmatpush.msra.mxu0 0.0
          %407 = vmatpush.msra.mxu0 0.0
          %408 = vmatpush.msra.mxu0 %v325
          %409 = vmatpush.msra.mxu0 %v323
          %410 = vmatpush.msra.mxu0 %v321
          %411 = vmatpush.msra.mxu0 %v319
          %412 = vmatmul.f32.gmra.mxu0 %v356
          %v413 = vpop.f32.mrf.mxu0
          %v414 = vadd.f32 %v337, %v413
          %415 = vmatmul.f32.gmra.mxu0 %v359
          %v416 = vpop.f32.mrf.mxu0
          %v417 = vadd.f32 %v342, %v416
          %418 = vmatmul.f32.gmra.mxu0 %v362
          %v419 = vpop.f32.mrf.mxu0
          %v420 = vadd.f32 %v347, %v419
          %421 = vmatmul.f32.gmra.mxu0 %v365
          %v422 = vpop.f32.mrf.mxu0
          %v423 = vadd.f32 %v352, %v422
          %424 = vdwg.mxu0
          %425 = vst [vmem:[#allocation2] sm:$0xff] %v385
          %426 = vst [vmem:[#allocation2 + $0x8] sm:$0xff] %v414
          %427 = vst [vmem:[#allocation2 + $0x10] sm:$0xff] %v388
          %428 = vst [vmem:[#allocation2 + $0x18] sm:$0xff] %v417
          %429 = vst [vmem:[#allocation2 + $0x20] sm:$0xff] %v391
          %430 = vst [vmem:[#allocation2 + $0x28] sm:$0xff] %v420
          %431 = vst [vmem:[#allocation2 + $0x30] sm:$0xff] %v394
          %432 = vst [vmem:[#allocation2 + $0x38] sm:$0xff] %v423
          %v433 = vld [vmem:[%s3] sm:$0xff]
          %v434 = vld [vmem:[%s3 + $0x8] sm:$0xff]
          %v435 = vld [vmem:[%s3 + $0x10] sm:$0xff]
          %v436 = vld [vmem:[%s3 + $0x18] sm:$0xff]
          %v437 = vld [vmem:[%s4] sm:$0xff]
          %v438 = vld [vmem:[%s4 + $0x8] sm:$0xff]
          %v439 = vld [vmem:[%s4 + $0x10] sm:$0xff]
          %v440 = vld [vmem:[%s4 + $0x18] sm:$0xff]
          %442 = vset.pattern.permute.xlu0 0
          %443 = vperm.xlu0 %442, %v437
          %v444 = vpop.permute.xlu0 %443
          %447 = vset.pattern.permute.xlu0 0
          %448 = vperm.xlu0 %447, %v438
          %v449 = vpop.permute.xlu0 %448
          %452 = vset.pattern.permute.xlu0 0
          %453 = vperm.xlu0 %452, %v439
          %v454 = vpop.permute.xlu0 %453
          %457 = vset.pattern.permute.xlu0 0
          %458 = vperm.xlu0 %457, %v440
          %v459 = vpop.permute.xlu0 %458
          %v462 = vsel %vm354, %v433, 0
          %v465 = vsel %vm354, %v434, 0
          %v468 = vsel %vm354, %v435, 0
          %v471 = vsel %vm354, %v436, 0
          %473 = vmatpush.msra.mxu0 0.0
          %474 = vmatpush.msra.mxu0 0.0
          %475 = vmatpush.msra.mxu0 0.0
          %476 = vmatpush.msra.mxu0 0.0
          %477 = vmatpush.msra.mxu0 0.0
          %478 = vmatpush.msra.mxu0 0.0
          %479 = vmatpush.msra.mxu0 0.0
          %480 = vmatpush.msra.mxu0 0.0
          %481 = vmatpush.msra.mxu0 0.0
          %482 = vmatpush.msra.mxu0 0.0
          %483 = vmatpush.msra.mxu0 0.0
          %484 = vmatpush.msra.mxu0 0.0
          %485 = vmatpush.msra.mxu0 %v324
          %486 = vmatpush.msra.mxu0 %v322
          %487 = vmatpush.msra.mxu0 %v320
          %488 = vmatpush.msra.mxu0 %v318
          %489 = vmatmul.f32.gmra.mxu0 %v462
          %v490 = vpop.f32.mrf.mxu0
          %v491 = vadd.f32 %v444, %v490
          %492 = vmatmul.f32.gmra.mxu0 %v465
          %v493 = vpop.f32.mrf.mxu0
          %v494 = vadd.f32 %v449, %v493
          %495 = vmatmul.f32.gmra.mxu0 %v468
          %v496 = vpop.f32.mrf.mxu0
          %v497 = vadd.f32 %v454, %v496
          %498 = vmatmul.f32.gmra.mxu0 %v471
          %v499 = vpop.f32.mrf.mxu0
          %v500 = vadd.f32 %v459, %v499
          %501 = vdwg.mxu0
          %502 = vmatpush.msra.mxu0 0.0
          %503 = vmatpush.msra.mxu0 0.0
          %504 = vmatpush.msra.mxu0 0.0
          %505 = vmatpush.msra.mxu0 0.0
          %506 = vmatpush.msra.mxu0 0.0
          %507 = vmatpush.msra.mxu0 0.0
          %508 = vmatpush.msra.mxu0 0.0
          %509 = vmatpush.msra.mxu0 0.0
          %510 = vmatpush.msra.mxu0 0.0
          %511 = vmatpush.msra.mxu0 0.0
          %512 = vmatpush.msra.mxu0 0.0
          %513 = vmatpush.msra.mxu0 0.0
          %514 = vmatpush.msra.mxu0 %v325
          %515 = vmatpush.msra.mxu0 %v323
          %516 = vmatpush.msra.mxu0 %v321
          %517 = vmatpush.msra.mxu0 %v319
          %518 = vmatmul.f32.gmra.mxu0 %v462
          %v519 = vpop.f32.mrf.mxu0
          %v520 = vadd.f32 %v444, %v519
          %521 = vmatmul.f32.gmra.mxu0 %v465
          %v522 = vpop.f32.mrf.mxu0
          %v523 = vadd.f32 %v449, %v522
          %524 = vmatmul.f32.gmra.mxu0 %v468
          %v525 = vpop.f32.mrf.mxu0
          %v526 = vadd.f32 %v454, %v525
          %527 = vmatmul.f32.gmra.mxu0 %v471
          %v528 = vpop.f32.mrf.mxu0
          %v529 = vadd.f32 %v459, %v528
          %530 = vdwg.mxu0
          %531 = vst [vmem:[#allocation3] sm:$0xff] %v491
          %532 = vst [vmem:[#allocation3 + $0x8] sm:$0xff] %v520
          %533 = vst [vmem:[#allocation3 + $0x10] sm:$0xff] %v494
          %534 = vst [vmem:[#allocation3 + $0x18] sm:$0xff] %v523
          %535 = vst [vmem:[#allocation3 + $0x20] sm:$0xff] %v497
          %536 = vst [vmem:[#allocation3 + $0x28] sm:$0xff] %v526
          %537 = vst [vmem:[#allocation3 + $0x30] sm:$0xff] %v500
          %538 = vst [vmem:[#allocation3 + $0x38] sm:$0xff] %v529
          %v539 = vld [vmem:[%s5] sm:$0xff]
          %v540 = vld [vmem:[%s5 + $0x8] sm:$0xff]
          %v541 = vld [vmem:[%s5 + $0x10] sm:$0xff]
          %v542 = vld [vmem:[%s5 + $0x18] sm:$0xff]
          %v543 = vld [vmem:[%s6] sm:$0xff]
          %v544 = vld [vmem:[%s6 + $0x8] sm:$0xff]
          %v545 = vld [vmem:[%s6 + $0x10] sm:$0xff]
          %v546 = vld [vmem:[%s6 + $0x18] sm:$0xff]
          %548 = vset.pattern.permute.xlu0 0
          %549 = vperm.xlu0 %548, %v543
          %v550 = vpop.permute.xlu0 %549
          %553 = vset.pattern.permute.xlu0 0
          %554 = vperm.xlu0 %553, %v544
          %v555 = vpop.permute.xlu0 %554
          %558 = vset.pattern.permute.xlu0 0
          %559 = vperm.xlu0 %558, %v545
          %v560 = vpop.permute.xlu0 %559
          %563 = vset.pattern.permute.xlu0 0
          %564 = vperm.xlu0 %563, %v546
          %v565 = vpop.permute.xlu0 %564
          %v568 = vsel %vm354, %v539, 0
          %v571 = vsel %vm354, %v540, 0
          %v574 = vsel %vm354, %v541, 0
          %v577 = vsel %vm354, %v542, 0
          %579 = vmatpush.msra.mxu0 0.0
          %580 = vmatpush.msra.mxu0 0.0
          %581 = vmatpush.msra.mxu0 0.0
          %582 = vmatpush.msra.mxu0 0.0
          %583 = vmatpush.msra.mxu0 0.0
          %584 = vmatpush.msra.mxu0 0.0
          %585 = vmatpush.msra.mxu0 0.0
          %586 = vmatpush.msra.mxu0 0.0
          %587 = vmatpush.msra.mxu0 0.0
          %588 = vmatpush.msra.mxu0 0.0
          %589 = vmatpush.msra.mxu0 0.0
          %590 = vmatpush.msra.mxu0 0.0
          %591 = vmatpush.msra.mxu0 %v324
          %592 = vmatpush.msra.mxu0 %v322
          %593 = vmatpush.msra.mxu0 %v320
          %594 = vmatpush.msra.mxu0 %v318
          %595 = vmatmul.f32.gmra.mxu0 %v568
          %v596 = vpop.f32.mrf.mxu0
          %v597 = vadd.f32 %v550, %v596
          %598 = vmatmul.f32.gmra.mxu0 %v571
          %v599 = vpop.f32.mrf.mxu0
          %v600 = vadd.f32 %v555, %v599
          %601 = vmatmul.f32.gmra.mxu0 %v574
          %v602 = vpop.f32.mrf.mxu0
          %v603 = vadd.f32 %v560, %v602
          %604 = vmatmul.f32.gmra.mxu0 %v577
          %v605 = vpop.f32.mrf.mxu0
          %v606 = vadd.f32 %v565, %v605
          %607 = vdwg.mxu0
          %608 = vmatpush.msra.mxu0 0.0
          %609 = vmatpush.msra.mxu0 0.0
          %610 = vmatpush.msra.mxu0 0.0
          %611 = vmatpush.msra.mxu0 0.0
          %612 = vmatpush.msra.mxu0 0.0
          %613 = vmatpush.msra.mxu0 0.0
          %614 = vmatpush.msra.mxu0 0.0
          %615 = vmatpush.msra.mxu0 0.0
          %616 = vmatpush.msra.mxu0 0.0
          %617 = vmatpush.msra.mxu0 0.0
          %618 = vmatpush.msra.mxu0 0.0
          %619 = vmatpush.msra.mxu0 0.0
          %620 = vmatpush.msra.mxu0 %v325
          %621 = vmatpush.msra.mxu0 %v323
          %622 = vmatpush.msra.mxu0 %v321
          %623 = vmatpush.msra.mxu0 %v319
          %624 = vmatmul.f32.gmra.mxu0 %v568
          %v625 = vpop.f32.mrf.mxu0
          %v626 = vadd.f32 %v550, %v625
          %627 = vmatmul.f32.gmra.mxu0 %v571
          %v628 = vpop.f32.mrf.mxu0
          %v629 = vadd.f32 %v555, %v628
          %630 = vmatmul.f32.gmra.mxu0 %v574
          %v631 = vpop.f32.mrf.mxu0
          %v632 = vadd.f32 %v560, %v631
          %633 = vmatmul.f32.gmra.mxu0 %v577
          %v634 = vpop.f32.mrf.mxu0
          %v635 = vadd.f32 %v565, %v634
          %636 = vdwg.mxu0
          %637 = vst [vmem:[#allocation4] sm:$0xff] %v597
          %638 = vst [vmem:[#allocation4 + $0x8] sm:$0xff] %v626
          %639 = vst [vmem:[#allocation4 + $0x10] sm:$0xff] %v600
          %640 = vst [vmem:[#allocation4 + $0x18] sm:$0xff] %v629
          %641 = vst [vmem:[#allocation4 + $0x20] sm:$0xff] %v603
          %642 = vst [vmem:[#allocation4 + $0x28] sm:$0xff] %v632
          %643 = vst [vmem:[#allocation4 + $0x30] sm:$0xff] %v606
          %644 = vst [vmem:[#allocation4 + $0x38] sm:$0xff] %v635
        $region56: #{tpu_custom_call.1} parent=47 // pred_fallthru
          _
        %s645 = smul.u32 %s29, 256
        %s646 = sshra.s32 %s645, 7
        %s647 = sand.u32 %s645, 127
        %s648 = smul.addr %s646, 8
        %s649 = scalar_lea.vmem [#allocation2], %s648
        %v650 = vld [vmem:[%s649] sm:$0xff]
        %v651 = vld [vmem:[%s649 + $0x8] sm:$0xff]
        %v652 = vld [vmem:[#allocation3] sm:$0xff]
        %v653 = vld [vmem:[#allocation3 + $0x8] sm:$0xff]
        %v654 = vld [vmem:[#allocation4] sm:$0xff]
        %v655 = vld [vmem:[#allocation4 + $0x8] sm:$0xff]
        %656 = vxpose.xlu0.b32.start [1/16] %v652, 128
        %657 = vxpose.xlu0.b32.cont [2/16] 0.0, 128
        %658 = vxpose.xlu0.b32.cont [3/16] 0.0, 128
        %659 = vxpose.xlu0.b32.cont [4/16] 0.0, 128
        %660 = vxpose.xlu0.b32.cont [5/16] 0.0, 128
        %661 = vxpose.xlu0.b32.cont [6/16] 0.0, 128
        %662 = vxpose.xlu0.b32.cont [7/16] 0.0, 128
        %663 = vxpose.xlu0.b32.cont [8/16] 0.0, 128
        %664 = vxpose.xlu0.b32.cont [9/16] 0.0, 128
        %665 = vxpose.xlu0.b32.cont [10/16] 0.0, 128
        %666 = vxpose.xlu0.b32.cont [11/16] 0.0, 128
        %667 = vxpose.xlu0.b32.cont [12/16] 0.0, 128
        %668 = vxpose.xlu0.b32.cont [13/16] 0.0, 128
        %669 = vxpose.xlu0.b32.cont [14/16] 0.0, 128
        %670 = vxpose.xlu0.b32.cont [15/16] 0.0, 128
        %671 = vxpose.xlu0.b32.end [16/16] 0.0, 128
        %v672 = vpop.trf.xlu0
        %v673 = vpop.trf.xlu0
        %v674 = vpop.trf.xlu0
        %v675 = vpop.trf.xlu0
        %v676 = vpop.trf.xlu0
        %v677 = vpop.trf.xlu0
        %v678 = vpop.trf.xlu0
        %v679 = vpop.trf.xlu0
        %v680 = vpop.trf.xlu0
        %v681 = vpop.trf.xlu0
        %v682 = vpop.trf.xlu0
        %v683 = vpop.trf.xlu0
        %v684 = vpop.trf.xlu0
        %v685 = vpop.trf.xlu0
        %v686 = vpop.trf.xlu0
        %v687 = vpop.trf.xlu0
        %688 = vxpose.xlu0.b32.start [1/16] %v653, 128
        %689 = vxpose.xlu0.b32.cont [2/16] 0.0, 128
        %690 = vxpose.xlu0.b32.cont [3/16] 0.0, 128
        %691 = vxpose.xlu0.b32.cont [4/16] 0.0, 128
        %692 = vxpose.xlu0.b32.cont [5/16] 0.0, 128
        %693 = vxpose.xlu0.b32.cont [6/16] 0.0, 128
        %694 = vxpose.xlu0.b32.cont [7/16] 0.0, 128
        %695 = vxpose.xlu0.b32.cont [8/16] 0.0, 128
        %696 = vxpose.xlu0.b32.cont [9/16] 0.0, 128
        %697 = vxpose.xlu0.b32.cont [10/16] 0.0, 128
        %698 = vxpose.xlu0.b32.cont [11/16] 0.0, 128
        %699 = vxpose.xlu0.b32.cont [12/16] 0.0, 128
        %700 = vxpose.xlu0.b32.cont [13/16] 0.0, 128
        %701 = vxpose.xlu0.b32.cont [14/16] 0.0, 128
        %702 = vxpose.xlu0.b32.cont [15/16] 0.0, 128
        %703 = vxpose.xlu0.b32.end [16/16] 0.0, 128
        %v704 = vpop.trf.xlu0
        %v705 = vpop.trf.xlu0
        %v706 = vpop.trf.xlu0
        %v707 = vpop.trf.xlu0
        %v708 = vpop.trf.xlu0
        %v709 = vpop.trf.xlu0
        %v710 = vpop.trf.xlu0
        %v711 = vpop.trf.xlu0
        %v712 = vpop.trf.xlu0
        %v713 = vpop.trf.xlu0
        %v714 = vpop.trf.xlu0
        %v715 = vpop.trf.xlu0
        %v716 = vpop.trf.xlu0
        %v717 = vpop.trf.xlu0
        %v718 = vpop.trf.xlu0
        %v719 = vpop.trf.xlu0
        %vm720 = vcmask 64512
        %v722 = vsel %vm720, %v672, 0
        %v725 = vsel %vm720, %v673, 0
        %v728 = vsel %vm720, %v674, 0
        %v731 = vsel %vm720, %v675, 0
        %v734 = vsel %vm720, %v676, 0
        %v737 = vsel %vm720, %v677, 0
        %v740 = vsel %vm720, %v678, 0
        %v743 = vsel %vm720, %v679, 0
        %v746 = vsel %vm720, %v680, 0
        %v749 = vsel %vm720, %v681, 0
        %v752 = vsel %vm720, %v682, 0
        %v755 = vsel %vm720, %v683, 0
        %v758 = vsel %vm720, %v684, 0
        %v761 = vsel %vm720, %v685, 0
        %v764 = vsel %vm720, %v686, 0
        %v767 = vsel %vm720, %v687, 0
        %v770 = vsel %vm720, %v704, 0
        %v773 = vsel %vm720, %v705, 0
        %v776 = vsel %vm720, %v706, 0
        %v779 = vsel %vm720, %v707, 0
        %v782 = vsel %vm720, %v708, 0
        %v785 = vsel %vm720, %v709, 0
        %v788 = vsel %vm720, %v710, 0
        %v791 = vsel %vm720, %v711, 0
        %v794 = vsel %vm720, %v712, 0
        %v797 = vsel %vm720, %v713, 0
        %v800 = vsel %vm720, %v714, 0
        %v803 = vsel %vm720, %v715, 0
        %v806 = vsel %vm720, %v716, 0
        %v809 = vsel %vm720, %v717, 0
        %v812 = vsel %vm720, %v718, 0
        %v815 = vsel %vm720, %v719, 0
        %817 = vmatpush.msra.mxu0 0.0
        %818 = vmatpush.msra.mxu0 0.0
        %819 = vmatpush.msra.mxu0 0.0
        %820 = vmatpush.msra.mxu0 0.0
        %821 = vmatpush.msra.mxu0 0.0
        %822 = vmatpush.msra.mxu0 0.0
        %823 = vmatpush.msra.mxu0 0.0
        %824 = vmatpush.msra.mxu0 0.0
        %825 = vmatpush.msra.mxu0 0.0
        %826 = vmatpush.msra.mxu0 0.0
        %827 = vmatpush.msra.mxu0 0.0
        %828 = vmatpush.msra.mxu0 0.0
        %829 = vmatpush.msra.mxu0 0.0
        %830 = vmatpush.msra.mxu0 0.0
        %831 = vmatpush.msra.mxu0 0.0
        %832 = vmatpush.msra.mxu0 %v650
        %833 = vmatmul.f32.gmra.mxu0 %v722
        %v834 = vpop.f32.mrf.mxu0
        %v835 = vadd.f32 0.0, %v834
        %836 = vmatmul.f32.gmra.mxu0 %v725
        %v837 = vpop.f32.mrf.mxu0
        %v838 = vadd.f32 0.0, %v837
        %839 = vmatmul.f32.gmra.mxu0 %v728
        %v840 = vpop.f32.mrf.mxu0
        %v841 = vadd.f32 0.0, %v840
        %842 = vmatmul.f32.gmra.mxu0 %v731
        %v843 = vpop.f32.mrf.mxu0
        %v844 = vadd.f32 0.0, %v843
        %845 = vmatmul.f32.gmra.mxu0 %v734
        %v846 = vpop.f32.mrf.mxu0
        %v847 = vadd.f32 0.0, %v846
        %848 = vmatmul.f32.gmra.mxu0 %v737
        %v849 = vpop.f32.mrf.mxu0
        %v850 = vadd.f32 0.0, %v849
        %851 = vmatmul.f32.gmra.mxu0 %v740
        %v852 = vpop.f32.mrf.mxu0
        %v853 = vadd.f32 0.0, %v852
        %854 = vmatmul.f32.gmra.mxu0 %v743
        %v855 = vpop.f32.mrf.mxu0
        %v856 = vadd.f32 0.0, %v855
        %857 = vmatmul.f32.gmra.mxu0 %v746
        %v858 = vpop.f32.mrf.mxu0
        %v859 = vadd.f32 0.0, %v858
        %860 = vmatmul.f32.gmra.mxu0 %v749
        %v861 = vpop.f32.mrf.mxu0
        %v862 = vadd.f32 0.0, %v861
        %863 = vmatmul.f32.gmra.mxu0 %v752
        %v864 = vpop.f32.mrf.mxu0
        %v865 = vadd.f32 0.0, %v864
        %866 = vmatmul.f32.gmra.mxu0 %v755
        %v867 = vpop.f32.mrf.mxu0
        %v868 = vadd.f32 0.0, %v867
        %869 = vmatmul.f32.gmra.mxu0 %v758
        %v870 = vpop.f32.mrf.mxu0
        %v871 = vadd.f32 0.0, %v870
        %872 = vmatmul.f32.gmra.mxu0 %v761
        %v873 = vpop.f32.mrf.mxu0
        %v874 = vadd.f32 0.0, %v873
        %875 = vmatmul.f32.gmra.mxu0 %v764
        %v876 = vpop.f32.mrf.mxu0
        %v877 = vadd.f32 0.0, %v876
        %878 = vmatmul.f32.gmra.mxu0 %v767
        %v879 = vpop.f32.mrf.mxu0
        %v880 = vadd.f32 0.0, %v879
        %881 = vmatmul.f32.gmra.mxu0 %v770
        %v882 = vpop.f32.mrf.mxu0
        %v883 = vadd.f32 0.0, %v882
        %884 = vmatmul.f32.gmra.mxu0 %v773
        %v885 = vpop.f32.mrf.mxu0
        %v886 = vadd.f32 0.0, %v885
        %887 = vmatmul.f32.gmra.mxu0 %v776
        %v888 = vpop.f32.mrf.mxu0
        %v889 = vadd.f32 0.0, %v888
        %890 = vmatmul.f32.gmra.mxu0 %v779
        %v891 = vpop.f32.mrf.mxu0
        %v892 = vadd.f32 0.0, %v891
        %893 = vmatmul.f32.gmra.mxu0 %v782
        %v894 = vpop.f32.mrf.mxu0
        %v895 = vadd.f32 0.0, %v894
        %896 = vmatmul.f32.gmra.mxu0 %v785
        %v897 = vpop.f32.mrf.mxu0
        %v898 = vadd.f32 0.0, %v897
        %899 = vmatmul.f32.gmra.mxu0 %v788
        %v900 = vpop.f32.mrf.mxu0
        %v901 = vadd.f32 0.0, %v900
        %902 = vmatmul.f32.gmra.mxu0 %v791
        %v903 = vpop.f32.mrf.mxu0
        %v904 = vadd.f32 0.0, %v903
        %905 = vmatmul.f32.gmra.mxu0 %v794
        %v906 = vpop.f32.mrf.mxu0
        %v907 = vadd.f32 0.0, %v906
        %908 = vmatmul.f32.gmra.mxu0 %v797
        %v909 = vpop.f32.mrf.mxu0
        %v910 = vadd.f32 0.0, %v909
        %911 = vmatmul.f32.gmra.mxu0 %v800
        %v912 = vpop.f32.mrf.mxu0
        %v913 = vadd.f32 0.0, %v912
        %914 = vmatmul.f32.gmra.mxu0 %v803
        %v915 = vpop.f32.mrf.mxu0
        %v916 = vadd.f32 0.0, %v915
        %917 = vmatmul.f32.gmra.mxu0 %v806
        %v918 = vpop.f32.mrf.mxu0
        %v919 = vadd.f32 0.0, %v918
        %920 = vmatmul.f32.gmra.mxu0 %v809
        %v921 = vpop.f32.mrf.mxu0
        %v922 = vadd.f32 0.0, %v921
        %923 = vmatmul.f32.gmra.mxu0 %v812
        %v924 = vpop.f32.mrf.mxu0
        %v925 = vadd.f32 0.0, %v924
        %926 = vmatmul.f32.gmra.mxu0 %v815
        %v927 = vpop.f32.mrf.mxu0
        %v928 = vadd.f32 0.0, %v927
        %929 = vdwg.mxu0
        %930 = vmatpush.msra.mxu0 0.0
        %931 = vmatpush.msra.mxu0 0.0
        %932 = vmatpush.msra.mxu0 0.0
        %933 = vmatpush.msra.mxu0 0.0
        %934 = vmatpush.msra.mxu0 0.0
        %935 = vmatpush.msra.mxu0 0.0
        %936 = vmatpush.msra.mxu0 0.0
        %937 = vmatpush.msra.mxu0 0.0
        %938 = vmatpush.msra.mxu0 0.0
        %939 = vmatpush.msra.mxu0 0.0
        %940 = vmatpush.msra.mxu0 0.0
        %941 = vmatpush.msra.mxu0 0.0
        %942 = vmatpush.msra.mxu0 0.0
        %943 = vmatpush.msra.mxu0 0.0
        %944 = vmatpush.msra.mxu0 0.0
        %945 = vmatpush.msra.mxu0 %v651
        %946 = vmatmul.f32.gmra.mxu0 %v722
        %v947 = vpop.f32.mrf.mxu0
        %v948 = vadd.f32 0.0, %v947
        %949 = vmatmul.f32.gmra.mxu0 %v725
        %v950 = vpop.f32.mrf.mxu0
        %v951 = vadd.f32 0.0, %v950
        %952 = vmatmul.f32.gmra.mxu0 %v728
        %v953 = vpop.f32.mrf.mxu0
        %v954 = vadd.f32 0.0, %v953
        %955 = vmatmul.f32.gmra.mxu0 %v731
        %v956 = vpop.f32.mrf.mxu0
        %v957 = vadd.f32 0.0, %v956
        %958 = vmatmul.f32.gmra.mxu0 %v734
        %v959 = vpop.f32.mrf.mxu0
        %v960 = vadd.f32 0.0, %v959
        %961 = vmatmul.f32.gmra.mxu0 %v737
        %v962 = vpop.f32.mrf.mxu0
        %v963 = vadd.f32 0.0, %v962
        %964 = vmatmul.f32.gmra.mxu0 %v740
        %v965 = vpop.f32.mrf.mxu0
        %v966 = vadd.f32 0.0, %v965
        %967 = vmatmul.f32.gmra.mxu0 %v743
        %v968 = vpop.f32.mrf.mxu0
        %v969 = vadd.f32 0.0, %v968
        %970 = vmatmul.f32.gmra.mxu0 %v746
        %v971 = vpop.f32.mrf.mxu0
        %v972 = vadd.f32 0.0, %v971
        %973 = vmatmul.f32.gmra.mxu0 %v749
        %v974 = vpop.f32.mrf.mxu0
        %v975 = vadd.f32 0.0, %v974
        %976 = vmatmul.f32.gmra.mxu0 %v752
        %v977 = vpop.f32.mrf.mxu0
        %v978 = vadd.f32 0.0, %v977
        %979 = vmatmul.f32.gmra.mxu0 %v755
        %v980 = vpop.f32.mrf.mxu0
        %v981 = vadd.f32 0.0, %v980
        %982 = vmatmul.f32.gmra.mxu0 %v758
        %v983 = vpop.f32.mrf.mxu0
        %v984 = vadd.f32 0.0, %v983
        %985 = vmatmul.f32.gmra.mxu0 %v761
        %v986 = vpop.f32.mrf.mxu0
        %v987 = vadd.f32 0.0, %v986
        %988 = vmatmul.f32.gmra.mxu0 %v764
        %v989 = vpop.f32.mrf.mxu0
        %v990 = vadd.f32 0.0, %v989
        %991 = vmatmul.f32.gmra.mxu0 %v767
        %v992 = vpop.f32.mrf.mxu0
        %v993 = vadd.f32 0.0, %v992
        %994 = vmatmul.f32.gmra.mxu0 %v770
        %v995 = vpop.f32.mrf.mxu0
        %v996 = vadd.f32 0.0, %v995
        %997 = vmatmul.f32.gmra.mxu0 %v773
        %v998 = vpop.f32.mrf.mxu0
        %v999 = vadd.f32 0.0, %v998
        %1000 = vmatmul.f32.gmra.mxu0 %v776
        %v1001 = vpop.f32.mrf.mxu0
        %v1002 = vadd.f32 0.0, %v1001
        %1003 = vmatmul.f32.gmra.mxu0 %v779
        %v1004 = vpop.f32.mrf.mxu0
        %v1005 = vadd.f32 0.0, %v1004
        %1006 = vmatmul.f32.gmra.mxu0 %v782
        %v1007 = vpop.f32.mrf.mxu0
        %v1008 = vadd.f32 0.0, %v1007
        %1009 = vmatmul.f32.gmra.mxu0 %v785
        %v1010 = vpop.f32.mrf.mxu0
        %v1011 = vadd.f32 0.0, %v1010
        %1012 = vmatmul.f32.gmra.mxu0 %v788
        %v1013 = vpop.f32.mrf.mxu0
        %v1014 = vadd.f32 0.0, %v1013
        %1015 = vmatmul.f32.gmra.mxu0 %v791
        %v1016 = vpop.f32.mrf.mxu0
        %v1017 = vadd.f32 0.0, %v1016
        %1018 = vmatmul.f32.gmra.mxu0 %v794
        %v1019 = vpop.f32.mrf.mxu0
        %v1020 = vadd.f32 0.0, %v1019
        %1021 = vmatmul.f32.gmra.mxu0 %v797
        %v1022 = vpop.f32.mrf.mxu0
        %v1023 = vadd.f32 0.0, %v1022
        %1024 = vmatmul.f32.gmra.mxu0 %v800
        %v1025 = vpop.f32.mrf.mxu0
        %v1026 = vadd.f32 0.0, %v1025
        %1027 = vmatmul.f32.gmra.mxu0 %v803
        %v1028 = vpop.f32.mrf.mxu0
        %v1029 = vadd.f32 0.0, %v1028
        %1030 = vmatmul.f32.gmra.mxu0 %v806
        %v1031 = vpop.f32.mrf.mxu0
        %v1032 = vadd.f32 0.0, %v1031
        %1033 = vmatmul.f32.gmra.mxu0 %v809
        %v1034 = vpop.f32.mrf.mxu0
        %v1035 = vadd.f32 0.0, %v1034
        %1036 = vmatmul.f32.gmra.mxu0 %v812
        %v1037 = vpop.f32.mrf.mxu0
        %v1038 = vadd.f32 0.0, %v1037
        %1039 = vmatmul.f32.gmra.mxu0 %v815
        %v1040 = vpop.f32.mrf.mxu0
        %v1041 = vadd.f32 0.0, %v1040
        %1042 = vdwg.mxu0
        %v1043 = vmax.f32 %v835, %v841
        %v1044 = vmax.f32 %v838, %v844
        %v1045 = vmax.f32 %v1043, %v847
        %v1046 = vmax.f32 %v1044, %v850
        %v1047 = vmax.f32 %v1045, %v853
        %v1048 = vmax.f32 %v1046, %v856
        %v1049 = vmax.f32 %v1047, %v859
        %v1050 = vmax.f32 %v1048, %v862
        %v1051 = vmax.f32 %v1049, %v865
        %v1052 = vmax.f32 %v1050, %v868
        %v1053 = vmax.f32 %v1051, %v871
        %v1054 = vmax.f32 %v1052, %v874
        %v1055 = vmax.f32 %v1053, %v877
        %v1056 = vmax.f32 %v1054, %v880
        %v1057 = vmax.f32 %v1055, %v883
        %v1058 = vmax.f32 %v1056, %v886
        %v1059 = vmax.f32 %v1057, %v889
        %v1060 = vmax.f32 %v1058, %v892
        %v1061 = vmax.f32 %v1059, %v895
        %v1062 = vmax.f32 %v1060, %v898
        %v1063 = vmax.f32 %v1061, %v901
        %v1064 = vmax.f32 %v1062, %v904
        %v1065 = vmax.f32 %v1063, %v907
        %v1066 = vmax.f32 %v1064, %v910
        %v1067 = vmax.f32 %v1065, %v913
        %v1068 = vmax.f32 %v1066, %v916
        %v1069 = vmax.f32 %v1067, %v919
        %v1070 = vmax.f32 %v1068, %v922
        %v1071 = vmax.f32 %v1069, %v925
        %v1072 = vmax.f32 %v1070, %v928
        %v1073 = vmax.f32 %v1071, %v1072
        %v1074 = vrot.slane %v1073, 4
        %v1075 = vmax.f32 %v1073, %v1074
        %v1076 = vrot.slane %v1075, 2
        %v1077 = vmax.f32 %v1075, %v1076
        %v1078 = vrot.slane %v1077, 1
        %v1079 = vmax.f32 %v1077, %v1078
        %v1080 = vmax.f32 %v948, %v954
        %v1081 = vmax.f32 %v951, %v957
        %v1082 = vmax.f32 %v1080, %v960
        %v1083 = vmax.f32 %v1081, %v963
        %v1084 = vmax.f32 %v1082, %v966
        %v1085 = vmax.f32 %v1083, %v969
        %v1086 = vmax.f32 %v1084, %v972
        %v1087 = vmax.f32 %v1085, %v975
        %v1088 = vmax.f32 %v1086, %v978
        %v1089 = vmax.f32 %v1087, %v981
        %v1090 = vmax.f32 %v1088, %v984
        %v1091 = vmax.f32 %v1089, %v987
        %v1092 = vmax.f32 %v1090, %v990
        %v1093 = vmax.f32 %v1091, %v993
        %v1094 = vmax.f32 %v1092, %v996
        %v1095 = vmax.f32 %v1093, %v999
        %v1096 = vmax.f32 %v1094, %v1002
        %v1097 = vmax.f32 %v1095, %v1005
        %v1098 = vmax.f32 %v1096, %v1008
        %v1099 = vmax.f32 %v1097, %v1011
        %v1100 = vmax.f32 %v1098, %v1014
        %v1101 = vmax.f32 %v1099, %v1017
        %v1102 = vmax.f32 %v1100, %v1020
        %v1103 = vmax.f32 %v1101, %v1023
        %v1104 = vmax.f32 %v1102, %v1026
        %v1105 = vmax.f32 %v1103, %v1029
        %v1106 = vmax.f32 %v1104, %v1032
        %v1107 = vmax.f32 %v1105, %v1035
        %v1108 = vmax.f32 %v1106, %v1038
        %v1109 = vmax.f32 %v1107, %v1041
        %v1110 = vmax.f32 %v1108, %v1109
        %v1111 = vrot.slane %v1110, 4
        %v1112 = vmax.f32 %v1110, %v1111
        %v1113 = vrot.slane %v1112, 2
        %v1114 = vmax.f32 %v1112, %v1113
        %v1115 = vrot.slane %v1114, 1
        %v1116 = vmax.f32 %v1114, %v1115
        %v1117 = vsub.f32 %v835, %v1079
        %v1118 = vsub.f32 %v948, %v1116
        %v1119 = vsub.f32 %v838, %v1079
        %v1120 = vsub.f32 %v951, %v1116
        %v1121 = vsub.f32 %v841, %v1079
        %v1122 = vsub.f32 %v954, %v1116
        %v1123 = vsub.f32 %v844, %v1079
        %v1124 = vsub.f32 %v957, %v1116
        %v1125 = vsub.f32 %v847, %v1079
        %v1126 = vsub.f32 %v960, %v1116
        %v1127 = vsub.f32 %v850, %v1079
        %v1128 = vsub.f32 %v963, %v1116
        %v1129 = vsub.f32 %v853, %v1079
        %v1130 = vsub.f32 %v966, %v1116
        %v1131 = vsub.f32 %v856, %v1079
        %v1132 = vsub.f32 %v969, %v1116
        %v1133 = vsub.f32 %v859, %v1079
        %v1134 = vsub.f32 %v972, %v1116
        %v1135 = vsub.f32 %v862, %v1079
        %v1136 = vsub.f32 %v975, %v1116
        %v1137 = vsub.f32 %v865, %v1079
        %v1138 = vsub.f32 %v978, %v1116
        %v1139 = vsub.f32 %v868, %v1079
        %v1140 = vsub.f32 %v981, %v1116
        %v1141 = vsub.f32 %v871, %v1079
        %v1142 = vsub.f32 %v984, %v1116
        %v1143 = vsub.f32 %v874, %v1079
        %v1144 = vsub.f32 %v987, %v1116
        %v1145 = vsub.f32 %v877, %v1079
        %v1146 = vsub.f32 %v990, %v1116
        %v1147 = vsub.f32 %v880, %v1079
        %v1148 = vsub.f32 %v993, %v1116
        %v1149 = vsub.f32 %v883, %v1079
        %v1150 = vsub.f32 %v996, %v1116
        %v1151 = vsub.f32 %v886, %v1079
        %v1152 = vsub.f32 %v999, %v1116
        %v1153 = vsub.f32 %v889, %v1079
        %v1154 = vsub.f32 %v1002, %v1116
        %v1155 = vsub.f32 %v892, %v1079
        %v1156 = vsub.f32 %v1005, %v1116
        %v1157 = vsub.f32 %v895, %v1079
        %v1158 = vsub.f32 %v1008, %v1116
        %v1159 = vsub.f32 %v898, %v1079
        %v1160 = vsub.f32 %v1011, %v1116
        %v1161 = vsub.f32 %v901, %v1079
        %v1162 = vsub.f32 %v1014, %v1116
        %v1163 = vsub.f32 %v904, %v1079
        %v1164 = vsub.f32 %v1017, %v1116
        %v1165 = vsub.f32 %v907, %v1079
        %v1166 = vsub.f32 %v1020, %v1116
        %v1167 = vsub.f32 %v910, %v1079
        %v1168 = vsub.f32 %v1023, %v1116
        %v1169 = vsub.f32 %v913, %v1079
        %v1170 = vsub.f32 %v1026, %v1116
        %v1171 = vsub.f32 %v916, %v1079
        %v1172 = vsub.f32 %v1029, %v1116
        %v1173 = vsub.f32 %v919, %v1079
        %v1174 = vsub.f32 %v1032, %v1116
        %v1175 = vsub.f32 %v922, %v1079
        %v1176 = vsub.f32 %v1035, %v1116
        %v1177 = vsub.f32 %v925, %v1079
        %v1178 = vsub.f32 %v1038, %v1116
        %v1179 = vsub.f32 %v928, %v1079
        %v1180 = vsub.f32 %v1041, %v1116
        %v1181 = vmul.f32 %v1117, 1.442695
        %v1182 = vpow.pop %v1181
        %v1183 = vmul.f32 %v1118, 1.442695
        %v1184 = vpow.pop %v1183
        %v1185 = vmul.f32 %v1119, 1.442695
        %v1186 = vpow.pop %v1185
        %v1187 = vmul.f32 %v1120, 1.442695
        %v1188 = vpow.pop %v1187
        %v1189 = vmul.f32 %v1121, 1.442695
        %v1190 = vpow.pop %v1189
        %v1191 = vmul.f32 %v1122, 1.442695
        %v1192 = vpow.pop %v1191
        %v1193 = vmul.f32 %v1123, 1.442695
        %v1194 = vpow.pop %v1193
        %v1195 = vmul.f32 %v1124, 1.442695
        %v1196 = vpow.pop %v1195
        %v1197 = vmul.f32 %v1125, 1.442695
        %v1198 = vpow.pop %v1197
        %v1199 = vmul.f32 %v1126, 1.442695
        %v1200 = vpow.pop %v1199
        %v1201 = vmul.f32 %v1127, 1.442695
        %v1202 = vpow.pop %v1201
        %v1203 = vmul.f32 %v1128, 1.442695
        %v1204 = vpow.pop %v1203
        %v1205 = vmul.f32 %v1129, 1.442695
        %v1206 = vpow.pop %v1205
        %v1207 = vmul.f32 %v1130, 1.442695
        %v1208 = vpow.pop %v1207
        %v1209 = vmul.f32 %v1131, 1.442695
        %v1210 = vpow.pop %v1209
        %v1211 = vmul.f32 %v1132, 1.442695
        %v1212 = vpow.pop %v1211
        %v1213 = vmul.f32 %v1133, 1.442695
        %v1214 = vpow.pop %v1213
        %v1215 = vmul.f32 %v1134, 1.442695
        %v1216 = vpow.pop %v1215
        %v1217 = vmul.f32 %v1135, 1.442695
        %v1218 = vpow.pop %v1217
        %v1219 = vmul.f32 %v1136, 1.442695
        %v1220 = vpow.pop %v1219
        %v1221 = vmul.f32 %v1137, 1.442695
        %v1222 = vpow.pop %v1221
        %v1223 = vmul.f32 %v1138, 1.442695
        %v1224 = vpow.pop %v1223
        %v1225 = vmul.f32 %v1139, 1.442695
        %v1226 = vpow.pop %v1225
        %v1227 = vmul.f32 %v1140, 1.442695
        %v1228 = vpow.pop %v1227
        %v1229 = vmul.f32 %v1141, 1.442695
        %v1230 = vpow.pop %v1229
        %v1231 = vmul.f32 %v1142, 1.442695
        %v1232 = vpow.pop %v1231
        %v1233 = vmul.f32 %v1143, 1.442695
        %v1234 = vpow.pop %v1233
        %v1235 = vmul.f32 %v1144, 1.442695
        %v1236 = vpow.pop %v1235
        %v1237 = vmul.f32 %v1145, 1.442695
        %v1238 = vpow.pop %v1237
        %v1239 = vmul.f32 %v1146, 1.442695
        %v1240 = vpow.pop %v1239
        %v1241 = vmul.f32 %v1147, 1.442695
        %v1242 = vpow.pop %v1241
        %v1243 = vmul.f32 %v1148, 1.442695
        %v1244 = vpow.pop %v1243
        %v1245 = vmul.f32 %v1149, 1.442695
        %v1246 = vpow.pop %v1245
        %v1247 = vmul.f32 %v1150, 1.442695
        %v1248 = vpow.pop %v1247
        %v1249 = vmul.f32 %v1151, 1.442695
        %v1250 = vpow.pop %v1249
        %v1251 = vmul.f32 %v1152, 1.442695
        %v1252 = vpow.pop %v1251
        %v1253 = vmul.f32 %v1153, 1.442695
        %v1254 = vpow.pop %v1253
        %v1255 = vmul.f32 %v1154, 1.442695
        %v1256 = vpow.pop %v1255
        %v1257 = vmul.f32 %v1155, 1.442695
        %v1258 = vpow.pop %v1257
        %v1259 = vmul.f32 %v1156, 1.442695
        %v1260 = vpow.pop %v1259
        %v1261 = vmul.f32 %v1157, 1.442695
        %v1262 = vpow.pop %v1261
        %v1263 = vmul.f32 %v1158, 1.442695
        %v1264 = vpow.pop %v1263
        %v1265 = vmul.f32 %v1159, 1.442695
        %v1266 = vpow.pop %v1265
        %v1267 = vmul.f32 %v1160, 1.442695
        %v1268 = vpow.pop %v1267
        %v1269 = vmul.f32 %v1161, 1.442695
        %v1270 = vpow.pop %v1269
        %v1271 = vmul.f32 %v1162, 1.442695
        %v1272 = vpow.pop %v1271
        %v1273 = vmul.f32 %v1163, 1.442695
        %v1274 = vpow.pop %v1273
        %v1275 = vmul.f32 %v1164, 1.442695
        %v1276 = vpow.pop %v1275
        %v1277 = vmul.f32 %v1165, 1.442695
        %v1278 = vpow.pop %v1277
        %v1279 = vmul.f32 %v1166, 1.442695
        %v1280 = vpow.pop %v1279
        %v1281 = vmul.f32 %v1167, 1.442695
        %v1282 = vpow.pop %v1281
        %v1283 = vmul.f32 %v1168, 1.442695
        %v1284 = vpow.pop %v1283
        %v1285 = vmul.f32 %v1169, 1.442695
        %v1286 = vpow.pop %v1285
        %v1287 = vmul.f32 %v1170, 1.442695
        %v1288 = vpow.pop %v1287
        %v1289 = vmul.f32 %v1171, 1.442695
        %v1290 = vpow.pop %v1289
        %v1291 = vmul.f32 %v1172, 1.442695
        %v1292 = vpow.pop %v1291
        %v1293 = vmul.f32 %v1173, 1.442695
        %v1294 = vpow.pop %v1293
        %v1295 = vmul.f32 %v1174, 1.442695
        %v1296 = vpow.pop %v1295
        %v1297 = vmul.f32 %v1175, 1.442695
        %v1298 = vpow.pop %v1297
        %v1299 = vmul.f32 %v1176, 1.442695
        %v1300 = vpow.pop %v1299
        %v1301 = vmul.f32 %v1177, 1.442695
        %v1302 = vpow.pop %v1301
        %v1303 = vmul.f32 %v1178, 1.442695
        %v1304 = vpow.pop %v1303
        %v1305 = vmul.f32 %v1179, 1.442695
        %v1306 = vpow.pop %v1305
        %v1307 = vmul.f32 %v1180, 1.442695
        %v1308 = vpow.pop %v1307
        %v1309 = vadd.f32 %v1182, %v1186
        %v1310 = vadd.f32 %v1309, %v1190
        %v1311 = vadd.f32 %v1310, %v1194
        %v1312 = vadd.f32 %v1311, %v1198
        %v1313 = vadd.f32 %v1312, %v1202
        %v1314 = vadd.f32 %v1313, %v1206
        %v1315 = vadd.f32 %v1314, %v1210
        %v1316 = vadd.f32 %v1315, %v1214
        %v1317 = vadd.f32 %v1316, %v1218
        %v1318 = vadd.f32 %v1317, %v1222
        %v1319 = vadd.f32 %v1318, %v1226
        %v1320 = vadd.f32 %v1319, %v1230
        %v1321 = vadd.f32 %v1320, %v1234
        %v1322 = vadd.f32 %v1321, %v1238
        %v1323 = vadd.f32 %v1322, %v1242
        %v1324 = vadd.f32 %v1323, %v1246
        %v1325 = vadd.f32 %v1324, %v1250
        %v1326 = vadd.f32 %v1325, %v1254
        %v1327 = vadd.f32 %v1326, %v1258
        %v1328 = vadd.f32 %v1327, %v1262
        %v1329 = vadd.f32 %v1328, %v1266
        %v1330 = vadd.f32 %v1329, %v1270
        %v1331 = vadd.f32 %v1330, %v1274
        %v1332 = vadd.f32 %v1331, %v1278
        %v1333 = vadd.f32 %v1332, %v1282
        %v1334 = vadd.f32 %v1333, %v1286
        %v1335 = vadd.f32 %v1334, %v1290
        %v1336 = vadd.f32 %v1335, %v1294
        %v1337 = vadd.f32 %v1336, %v1298
        %v1338 = vadd.f32 %v1337, %v1302
        %v1339 = vadd.f32 %v1338, %v1306
        %v1340 = vrot.slane %v1339, 4
        %v1341 = vadd.f32 %v1339, %v1340
        %v1342 = vrot.slane %v1341, 2
        %v1343 = vadd.f32 %v1341, %v1342
        %v1344 = vrot.slane %v1343, 1
        %v1345 = vadd.f32 %v1343, %v1344
        %v1346 = vadd.f32 %v1184, %v1188
        %v1347 = vadd.f32 %v1346, %v1192
        %v1348 = vadd.f32 %v1347, %v1196
        %v1349 = vadd.f32 %v1348, %v1200
        %v1350 = vadd.f32 %v1349, %v1204
        %v1351 = vadd.f32 %v1350, %v1208
        %v1352 = vadd.f32 %v1351, %v1212
        %v1353 = vadd.f32 %v1352, %v1216
        %v1354 = vadd.f32 %v1353, %v1220
        %v1355 = vadd.f32 %v1354, %v1224
        %v1356 = vadd.f32 %v1355, %v1228
        %v1357 = vadd.f32 %v1356, %v1232
        %v1358 = vadd.f32 %v1357, %v1236
        %v1359 = vadd.f32 %v1358, %v1240
        %v1360 = vadd.f32 %v1359, %v1244
        %v1361 = vadd.f32 %v1360, %v1248
        %v1362 = vadd.f32 %v1361, %v1252
        %v1363 = vadd.f32 %v1362, %v1256
        %v1364 = vadd.f32 %v1363, %v1260
        %v1365 = vadd.f32 %v1364, %v1264
        %v1366 = vadd.f32 %v1365, %v1268
        %v1367 = vadd.f32 %v1366, %v1272
        %v1368 = vadd.f32 %v1367, %v1276
        %v1369 = vadd.f32 %v1368, %v1280
        %v1370 = vadd.f32 %v1369, %v1284
        %v1371 = vadd.f32 %v1370, %v1288
        %v1372 = vadd.f32 %v1371, %v1292
        %v1373 = vadd.f32 %v1372, %v1296
        %v1374 = vadd.f32 %v1373, %v1300
        %v1375 = vadd.f32 %v1374, %v1304
        %v1376 = vadd.f32 %v1375, %v1308
        %v1377 = vrot.slane %v1376, 4
        %v1378 = vadd.f32 %v1376, %v1377
        %v1379 = vrot.slane %v1378, 2
        %v1380 = vadd.f32 %v1378, %v1379
        %v1381 = vrot.slane %v1380, 1
        %v1382 = vadd.f32 %v1380, %v1381
        %1383 = vmatpush.msra.mxu0 %v1242
        %1384 = vmatpush.msra.mxu0 %v1238
        %1385 = vmatpush.msra.mxu0 %v1234
        %1386 = vmatpush.msra.mxu0 %v1230
        %1387 = vmatpush.msra.mxu0 %v1226
        %1388 = vmatpush.msra.mxu0 %v1222
        %1389 = vmatpush.msra.mxu0 %v1218
        %1390 = vmatpush.msra.mxu0 %v1214
        %1391 = vmatpush.msra.mxu0 %v1210
        %1392 = vmatpush.msra.mxu0 %v1206
        %1393 = vmatpush.msra.mxu0 %v1202
        %1394 = vmatpush.msra.mxu0 %v1198
        %1395 = vmatpush.msra.mxu0 %v1194
        %1396 = vmatpush.msra.mxu0 %v1190
        %1397 = vmatpush.msra.mxu0 %v1186
        %1398 = vmatpush.msra.mxu0 %v1182
        %1399 = vmatmul.f32.gmra.mxu0 %v654
        %v1400 = vpop.f32.mrf.mxu0
        %v1401 = vadd.f32 0.0, %v1400
        %1402 = vdwg.mxu0
        %1403 = vmatpush.msra.mxu0 %v1306
        %1404 = vmatpush.msra.mxu0 %v1302
        %1405 = vmatpush.msra.mxu0 %v1298
        %1406 = vmatpush.msra.mxu0 %v1294
        %1407 = vmatpush.msra.mxu0 %v1290
        %1408 = vmatpush.msra.mxu0 %v1286
        %1409 = vmatpush.msra.mxu0 %v1282
        %1410 = vmatpush.msra.mxu0 %v1278
        %1411 = vmatpush.msra.mxu0 %v1274
        %1412 = vmatpush.msra.mxu0 %v1270
        %1413 = vmatpush.msra.mxu0 %v1266
        %1414 = vmatpush.msra.mxu0 %v1262
        %1415 = vmatpush.msra.mxu0 %v1258
        %1416 = vmatpush.msra.mxu0 %v1254
        %1417 = vmatpush.msra.mxu0 %v1250
        %1418 = vmatpush.msra.mxu0 %v1246
        %1419 = vmatmul.f32.gmra.mxu0 %v655
        %v1420 = vpop.f32.mrf.mxu0
        %v1421 = vadd.f32 %v1401, %v1420
        %1422 = vdwg.mxu0
        %1423 = vmatpush.msra.mxu0 %v1244
        %1424 = vmatpush.msra.mxu0 %v1240
        %1425 = vmatpush.msra.mxu0 %v1236
        %1426 = vmatpush.msra.mxu0 %v1232
        %1427 = vmatpush.msra.mxu0 %v1228
        %1428 = vmatpush.msra.mxu0 %v1224
        %1429 = vmatpush.msra.mxu0 %v1220
        %1430 = vmatpush.msra.mxu0 %v1216
        %1431 = vmatpush.msra.mxu0 %v1212
        %1432 = vmatpush.msra.mxu0 %v1208
        %1433 = vmatpush.msra.mxu0 %v1204
        %1434 = vmatpush.msra.mxu0 %v1200
        %1435 = vmatpush.msra.mxu0 %v1196
        %1436 = vmatpush.msra.mxu0 %v1192
        %1437 = vmatpush.msra.mxu0 %v1188
        %1438 = vmatpush.msra.mxu0 %v1184
        %1439 = vmatmul.f32.gmra.mxu0 %v654
        %v1440 = vpop.f32.mrf.mxu0
        %v1441 = vadd.f32 0.0, %v1440
        %1442 = vdwg.mxu0
        %1443 = vmatpush.msra.mxu0 %v1308
        %1444 = vmatpush.msra.mxu0 %v1304
        %1445 = vmatpush.msra.mxu0 %v1300
        %1446 = vmatpush.msra.mxu0 %v1296
        %1447 = vmatpush.msra.mxu0 %v1292
        %1448 = vmatpush.msra.mxu0 %v1288
        %1449 = vmatpush.msra.mxu0 %v1284
        %1450 = vmatpush.msra.mxu0 %v1280
        %1451 = vmatpush.msra.mxu0 %v1276
        %1452 = vmatpush.msra.mxu0 %v1272
        %1453 = vmatpush.msra.mxu0 %v1268
        %1454 = vmatpush.msra.mxu0 %v1264
        %1455 = vmatpush.msra.mxu0 %v1260
        %1456 = vmatpush.msra.mxu0 %v1256
        %1457 = vmatpush.msra.mxu0 %v1252
        %1458 = vmatpush.msra.mxu0 %v1248
        %1459 = vmatmul.f32.gmra.mxu0 %v655
        %v1460 = vpop.f32.mrf.mxu0
        %v1461 = vadd.f32 %v1441, %v1460
        %1462 = vdwg.mxu0
        %v1463 = vrcp.pop %v1345
        %v1464 = vmul.f32 %v1345, %v1463
        %v1465 = vsub.f32 1.0, %v1464
        %v1466 = vmul.f32 %v1463, %v1465
        %v1467 = vadd.f32 %v1463, %v1466
        %vm1468 = vweird.f32 %v1345
        %vm1469 = vweird.f32 %v1463
        %vm1470 = vmor %vm1468, %vm1469
        %v1471 = vsel %vm1470, %v1463, %v1467
        %v1472 = vand.u32 2147483647, %v1345
        %vm1473 = vcmp.eq.f32.partialorder %v1472, 8.507059e+37
        %v1474 = vand.u32 %v1345, 2147483648
        %v1475 = vor.u32 1.1754944e-38, %v1474
        %v1476 = vsel %vm1473, %v1475, %v1471
        %v1477 = vmul.f32 1.0, %v1476
        %v1478 = vrcp.pop %v1382
        %v1479 = vmul.f32 %v1382, %v1478
        %v1480 = vsub.f32 1.0, %v1479
        %v1481 = vmul.f32 %v1478, %v1480
        %v1482 = vadd.f32 %v1478, %v1481
        %vm1483 = vweird.f32 %v1382
        %vm1484 = vweird.f32 %v1478
        %vm1485 = vmor %vm1483, %vm1484
        %v1486 = vsel %vm1485, %v1478, %v1482
        %v1487 = vand.u32 2147483647, %v1382
        %vm1488 = vcmp.eq.f32.partialorder %v1487, 8.507059e+37
        %v1489 = vand.u32 %v1382, 2147483648
        %v1490 = vor.u32 1.1754944e-38, %v1489
        %v1491 = vsel %vm1488, %v1490, %v1486
        %v1492 = vmul.f32 1.0, %v1491
        %v1493 = vmul.f32 %v1421, %v1477
        %v1494 = vmul.f32 %v1461, %v1492
        %1495 = vst [vmem:[%s312] sm:$0xff] %v1493
        %1496 = vst [vmem:[%s312 + $0x8] sm:$0xff] %v1494
        %v1497 = vld [vmem:[%s649 + $0x10] sm:$0xff]
        %v1498 = vld [vmem:[%s649 + $0x18] sm:$0xff]
        %v1499 = vld [vmem:[#allocation3 + $0x10] sm:$0xff]
        %v1500 = vld [vmem:[#allocation3 + $0x18] sm:$0xff]
        %v1501 = vld [vmem:[#allocation4 + $0x10] sm:$0xff]
        %v1502 = vld [vmem:[#allocation4 + $0x18] sm:$0xff]
        %1503 = vxpose.xlu0.b32.start [1/16] %v1499, 128
        %1504 = vxpose.xlu0.b32.cont [2/16] 0.0, 128
        %1505 = vxpose.xlu0.b32.cont [3/16] 0.0, 128
        %1506 = vxpose.xlu0.b32.cont [4/16] 0.0, 128
        %1507 = vxpose.xlu0.b32.cont [5/16] 0.0, 128
        %1508 = vxpose.xlu0.b32.cont [6/16] 0.0, 128
        %1509 = vxpose.xlu0.b32.cont [7/16] 0.0, 128
        %1510 = vxpose.xlu0.b32.cont [8/16] 0.0, 128
        %1511 = vxpose.xlu0.b32.cont [9/16] 0.0, 128
        %1512 = vxpose.xlu0.b32.cont [10/16] 0.0, 128
        %1513 = vxpose.xlu0.b32.cont [11/16] 0.0, 128
        %1514 = vxpose.xlu0.b32.cont [12/16] 0.0, 128
        %1515 = vxpose.xlu0.b32.cont [13/16] 0.0, 128
        %1516 = vxpose.xlu0.b32.cont [14/16] 0.0, 128
        %1517 = vxpose.xlu0.b32.cont [15/16] 0.0, 128
        %1518 = vxpose.xlu0.b32.end [16/16] 0.0, 128
        %v1519 = vpop.trf.xlu0
        %v1520 = vpop.trf.xlu0
        %v1521 = vpop.trf.xlu0
        %v1522 = vpop.trf.xlu0
        %v1523 = vpop.trf.xlu0
        %v1524 = vpop.trf.xlu0
        %v1525 = vpop.trf.xlu0
        %v1526 = vpop.trf.xlu0
        %v1527 = vpop.trf.xlu0
        %v1528 = vpop.trf.xlu0
        %v1529 = vpop.trf.xlu0
        %v1530 = vpop.trf.xlu0
        %v1531 = vpop.trf.xlu0
        %v1532 = vpop.trf.xlu0
        %v1533 = vpop.trf.xlu0
        %v1534 = vpop.trf.xlu0
        %1535 = vxpose.xlu0.b32.start [1/16] %v1500, 128
        %1536 = vxpose.xlu0.b32.cont [2/16] 0.0, 128
        %1537 = vxpose.xlu0.b32.cont [3/16] 0.0, 128
        %1538 = vxpose.xlu0.b32.cont [4/16] 0.0, 128
        %1539 = vxpose.xlu0.b32.cont [5/16] 0.0, 128
        %1540 = vxpose.xlu0.b32.cont [6/16] 0.0, 128
        %1541 = vxpose.xlu0.b32.cont [7/16] 0.0, 128
        %1542 = vxpose.xlu0.b32.cont [8/16] 0.0, 128
        %1543 = vxpose.xlu0.b32.cont [9/16] 0.0, 128
        %1544 = vxpose.xlu0.b32.cont [10/16] 0.0, 128
        %1545 = vxpose.xlu0.b32.cont [11/16] 0.0, 128
        %1546 = vxpose.xlu0.b32.cont [12/16] 0.0, 128
        %1547 = vxpose.xlu0.b32.cont [13/16] 0.0, 128
        %1548 = vxpose.xlu0.b32.cont [14/16] 0.0, 128
        %1549 = vxpose.xlu0.b32.cont [15/16] 0.0, 128
        %1550 = vxpose.xlu0.b32.end [16/16] 0.0, 128
        %v1551 = vpop.trf.xlu0
        %v1552 = vpop.trf.xlu0
        %v1553 = vpop.trf.xlu0
        %v1554 = vpop.trf.xlu0
        %v1555 = vpop.trf.xlu0
        %v1556 = vpop.trf.xlu0
        %v1557 = vpop.trf.xlu0
        %v1558 = vpop.trf.xlu0
        %v1559 = vpop.trf.xlu0
        %v1560 = vpop.trf.xlu0
        %v1561 = vpop.trf.xlu0
        %v1562 = vpop.trf.xlu0
        %v1563 = vpop.trf.xlu0
        %v1564 = vpop.trf.xlu0
        %v1565 = vpop.trf.xlu0
        %v1566 = vpop.trf.xlu0
        %v1568 = vsel %vm720, %v1519, 0
        %v1571 = vsel %vm720, %v1520, 0
        %v1574 = vsel %vm720, %v1521, 0
        %v1577 = vsel %vm720, %v1522, 0
        %v1580 = vsel %vm720, %v1523, 0
        %v1583 = vsel %vm720, %v1524, 0
        %v1586 = vsel %vm720, %v1525, 0
        %v1589 = vsel %vm720, %v1526, 0
        %v1592 = vsel %vm720, %v1527, 0
        %v1595 = vsel %vm720, %v1528, 0
        %v1598 = vsel %vm720, %v1529, 0
        %v1601 = vsel %vm720, %v1530, 0
        %v1604 = vsel %vm720, %v1531, 0
        %v1607 = vsel %vm720, %v1532, 0
        %v1610 = vsel %vm720, %v1533, 0
        %v1613 = vsel %vm720, %v1534, 0
        %v1616 = vsel %vm720, %v1551, 0
        %v1619 = vsel %vm720, %v1552, 0
        %v1622 = vsel %vm720, %v1553, 0
        %v1625 = vsel %vm720, %v1554, 0
        %v1628 = vsel %vm720, %v1555, 0
        %v1631 = vsel %vm720, %v1556, 0
        %v1634 = vsel %vm720, %v1557, 0
        %v1637 = vsel %vm720, %v1558, 0
        %v1640 = vsel %vm720, %v1559, 0
        %v1643 = vsel %vm720, %v1560, 0
        %v1646 = vsel %vm720, %v1561, 0
        %v1649 = vsel %vm720, %v1562, 0
        %v1652 = vsel %vm720, %v1563, 0
        %v1655 = vsel %vm720, %v1564, 0
        %v1658 = vsel %vm720, %v1565, 0
        %v1661 = vsel %vm720, %v1566, 0
        %1663 = vmatpush.msra.mxu0 0.0
        %1664 = vmatpush.msra.mxu0 0.0
        %1665 = vmatpush.msra.mxu0 0.0
        %1666 = vmatpush.msra.mxu0 0.0
        %1667 = vmatpush.msra.mxu0 0.0
        %1668 = vmatpush.msra.mxu0 0.0
        %1669 = vmatpush.msra.mxu0 0.0
        %1670 = vmatpush.msra.mxu0 0.0
        %1671 = vmatpush.msra.mxu0 0.0
        %1672 = vmatpush.msra.mxu0 0.0
        %1673 = vmatpush.msra.mxu0 0.0
        %1674 = vmatpush.msra.mxu0 0.0
        %1675 = vmatpush.msra.mxu0 0.0
        %1676 = vmatpush.msra.mxu0 0.0
        %1677 = vmatpush.msra.mxu0 0.0
        %1678 = vmatpush.msra.mxu0 %v1497
        %1679 = vmatmul.f32.gmra.mxu0 %v1568
        %v1680 = vpop.f32.mrf.mxu0
        %v1681 = vadd.f32 0.0, %v1680
        %1682 = vmatmul.f32.gmra.mxu0 %v1571
        %v1683 = vpop.f32.mrf.mxu0
        %v1684 = vadd.f32 0.0, %v1683
        %1685 = vmatmul.f32.gmra.mxu0 %v1574
        %v1686 = vpop.f32.mrf.mxu0
        %v1687 = vadd.f32 0.0, %v1686
        %1688 = vmatmul.f32.gmra.mxu0 %v1577
        %v1689 = vpop.f32.mrf.mxu0
        %v1690 = vadd.f32 0.0, %v1689
        %1691 = vmatmul.f32.gmra.mxu0 %v1580
        %v1692 = vpop.f32.mrf.mxu0
        %v1693 = vadd.f32 0.0, %v1692
        %1694 = vmatmul.f32.gmra.mxu0 %v1583
        %v1695 = vpop.f32.mrf.mxu0
        %v1696 = vadd.f32 0.0, %v1695
        %1697 = vmatmul.f32.gmra.mxu0 %v1586
        %v1698 = vpop.f32.mrf.mxu0
        %v1699 = vadd.f32 0.0, %v1698
        %1700 = vmatmul.f32.gmra.mxu0 %v1589
        %v1701 = vpop.f32.mrf.mxu0
        %v1702 = vadd.f32 0.0, %v1701
        %1703 = vmatmul.f32.gmra.mxu0 %v1592
        %v1704 = vpop.f32.mrf.mxu0
        %v1705 = vadd.f32 0.0, %v1704
        %1706 = vmatmul.f32.gmra.mxu0 %v1595
        %v1707 = vpop.f32.mrf.mxu0
        %v1708 = vadd.f32 0.0, %v1707
        %1709 = vmatmul.f32.gmra.mxu0 %v1598
        %v1710 = vpop.f32.mrf.mxu0
        %v1711 = vadd.f32 0.0, %v1710
        %1712 = vmatmul.f32.gmra.mxu0 %v1601
        %v1713 = vpop.f32.mrf.mxu0
        %v1714 = vadd.f32 0.0, %v1713
        %1715 = vmatmul.f32.gmra.mxu0 %v1604
        %v1716 = vpop.f32.mrf.mxu0
        %v1717 = vadd.f32 0.0, %v1716
        %1718 = vmatmul.f32.gmra.mxu0 %v1607
        %v1719 = vpop.f32.mrf.mxu0
        %v1720 = vadd.f32 0.0, %v1719
        %1721 = vmatmul.f32.gmra.mxu0 %v1610
        %v1722 = vpop.f32.mrf.mxu0
        %v1723 = vadd.f32 0.0, %v1722
        %1724 = vmatmul.f32.gmra.mxu0 %v1613
        %v1725 = vpop.f32.mrf.mxu0
        %v1726 = vadd.f32 0.0, %v1725
        %1727 = vmatmul.f32.gmra.mxu0 %v1616
        %v1728 = vpop.f32.mrf.mxu0
        %v1729 = vadd.f32 0.0, %v1728
        %1730 = vmatmul.f32.gmra.mxu0 %v1619
        %v1731 = vpop.f32.mrf.mxu0
        %v1732 = vadd.f32 0.0, %v1731
        %1733 = vmatmul.f32.gmra.mxu0 %v1622
        %v1734 = vpop.f32.mrf.mxu0
        %v1735 = vadd.f32 0.0, %v1734
        %1736 = vmatmul.f32.gmra.mxu0 %v1625
        %v1737 = vpop.f32.mrf.mxu0
        %v1738 = vadd.f32 0.0, %v1737
        %1739 = vmatmul.f32.gmra.mxu0 %v1628
        %v1740 = vpop.f32.mrf.mxu0
        %v1741 = vadd.f32 0.0, %v1740
        %1742 = vmatmul.f32.gmra.mxu0 %v1631
        %v1743 = vpop.f32.mrf.mxu0
        %v1744 = vadd.f32 0.0, %v1743
        %1745 = vmatmul.f32.gmra.mxu0 %v1634
        %v1746 = vpop.f32.mrf.mxu0
        %v1747 = vadd.f32 0.0, %v1746
        %1748 = vmatmul.f32.gmra.mxu0 %v1637
        %v1749 = vpop.f32.mrf.mxu0
        %v1750 = vadd.f32 0.0, %v1749
        %1751 = vmatmul.f32.gmra.mxu0 %v1640
        %v1752 = vpop.f32.mrf.mxu0
        %v1753 = vadd.f32 0.0, %v1752
        %1754 = vmatmul.f32.gmra.mxu0 %v1643
        %v1755 = vpop.f32.mrf.mxu0
        %v1756 = vadd.f32 0.0, %v1755
        %1757 = vmatmul.f32.gmra.mxu0 %v1646
        %v1758 = vpop.f32.mrf.mxu0
        %v1759 = vadd.f32 0.0, %v1758
        %1760 = vmatmul.f32.gmra.mxu0 %v1649
        %v1761 = vpop.f32.mrf.mxu0
        %v1762 = vadd.f32 0.0, %v1761
        %1763 = vmatmul.f32.gmra.mxu0 %v1652
        %v1764 = vpop.f32.mrf.mxu0
        %v1765 = vadd.f32 0.0, %v1764
        %1766 = vmatmul.f32.gmra.mxu0 %v1655
        %v1767 = vpop.f32.mrf.mxu0
        %v1768 = vadd.f32 0.0, %v1767
        %1769 = vmatmul.f32.gmra.mxu0 %v1658
        %v1770 = vpop.f32.mrf.mxu0
        %v1771 = vadd.f32 0.0, %v1770
        %1772 = vmatmul.f32.gmra.mxu0 %v1661
        %v1773 = vpop.f32.mrf.mxu0
        %v1774 = vadd.f32 0.0, %v1773
        %1775 = vdwg.mxu0
        %1776 = vmatpush.msra.mxu0 0.0
        %1777 = vmatpush.msra.mxu0 0.0
        %1778 = vmatpush.msra.mxu0 0.0
        %1779 = vmatpush.msra.mxu0 0.0
        %1780 = vmatpush.msra.mxu0 0.0
        %1781 = vmatpush.msra.mxu0 0.0
        %1782 = vmatpush.msra.mxu0 0.0
        %1783 = vmatpush.msra.mxu0 0.0
        %1784 = vmatpush.msra.mxu0 0.0
        %1785 = vmatpush.msra.mxu0 0.0
        %1786 = vmatpush.msra.mxu0 0.0
        %1787 = vmatpush.msra.mxu0 0.0
        %1788 = vmatpush.msra.mxu0 0.0
        %1789 = vmatpush.msra.mxu0 0.0
        %1790 = vmatpush.msra.mxu0 0.0
        %1791 = vmatpush.msra.mxu0 %v1498
        %1792 = vmatmul.f32.gmra.mxu0 %v1568
        %v1793 = vpop.f32.mrf.mxu0
        %v1794 = vadd.f32 0.0, %v1793
        %1795 = vmatmul.f32.gmra.mxu0 %v1571
        %v1796 = vpop.f32.mrf.mxu0
        %v1797 = vadd.f32 0.0, %v1796
        %1798 = vmatmul.f32.gmra.mxu0 %v1574
        %v1799 = vpop.f32.mrf.mxu0
        %v1800 = vadd.f32 0.0, %v1799
        %1801 = vmatmul.f32.gmra.mxu0 %v1577
        %v1802 = vpop.f32.mrf.mxu0
        %v1803 = vadd.f32 0.0, %v1802
        %1804 = vmatmul.f32.gmra.mxu0 %v1580
        %v1805 = vpop.f32.mrf.mxu0
        %v1806 = vadd.f32 0.0, %v1805
        %1807 = vmatmul.f32.gmra.mxu0 %v1583
        %v1808 = vpop.f32.mrf.mxu0
        %v1809 = vadd.f32 0.0, %v1808
        %1810 = vmatmul.f32.gmra.mxu0 %v1586
        %v1811 = vpop.f32.mrf.mxu0
        %v1812 = vadd.f32 0.0, %v1811
        %1813 = vmatmul.f32.gmra.mxu0 %v1589
        %v1814 = vpop.f32.mrf.mxu0
        %v1815 = vadd.f32 0.0, %v1814
        %1816 = vmatmul.f32.gmra.mxu0 %v1592
        %v1817 = vpop.f32.mrf.mxu0
        %v1818 = vadd.f32 0.0, %v1817
        %1819 = vmatmul.f32.gmra.mxu0 %v1595
        %v1820 = vpop.f32.mrf.mxu0
        %v1821 = vadd.f32 0.0, %v1820
        %1822 = vmatmul.f32.gmra.mxu0 %v1598
        %v1823 = vpop.f32.mrf.mxu0
        %v1824 = vadd.f32 0.0, %v1823
        %1825 = vmatmul.f32.gmra.mxu0 %v1601
        %v1826 = vpop.f32.mrf.mxu0
        %v1827 = vadd.f32 0.0, %v1826
        %1828 = vmatmul.f32.gmra.mxu0 %v1604
        %v1829 = vpop.f32.mrf.mxu0
        %v1830 = vadd.f32 0.0, %v1829
        %1831 = vmatmul.f32.gmra.mxu0 %v1607
        %v1832 = vpop.f32.mrf.mxu0
        %v1833 = vadd.f32 0.0, %v1832
        %1834 = vmatmul.f32.gmra.mxu0 %v1610
        %v1835 = vpop.f32.mrf.mxu0
        %v1836 = vadd.f32 0.0, %v1835
        %1837 = vmatmul.f32.gmra.mxu0 %v1613
        %v1838 = vpop.f32.mrf.mxu0
        %v1839 = vadd.f32 0.0, %v1838
        %1840 = vmatmul.f32.gmra.mxu0 %v1616
        %v1841 = vpop.f32.mrf.mxu0
        %v1842 = vadd.f32 0.0, %v1841
        %1843 = vmatmul.f32.gmra.mxu0 %v1619
        %v1844 = vpop.f32.mrf.mxu0
        %v1845 = vadd.f32 0.0, %v1844
        %1846 = vmatmul.f32.gmra.mxu0 %v1622
        %v1847 = vpop.f32.mrf.mxu0
        %v1848 = vadd.f32 0.0, %v1847
        %1849 = vmatmul.f32.gmra.mxu0 %v1625
        %v1850 = vpop.f32.mrf.mxu0
        %v1851 = vadd.f32 0.0, %v1850
        %1852 = vmatmul.f32.gmra.mxu0 %v1628
        %v1853 = vpop.f32.mrf.mxu0
        %v1854 = vadd.f32 0.0, %v1853
        %1855 = vmatmul.f32.gmra.mxu0 %v1631
        %v1856 = vpop.f32.mrf.mxu0
        %v1857 = vadd.f32 0.0, %v1856
        %1858 = vmatmul.f32.gmra.mxu0 %v1634
        %v1859 = vpop.f32.mrf.mxu0
        %v1860 = vadd.f32 0.0, %v1859
        %1861 = vmatmul.f32.gmra.mxu0 %v1637
        %v1862 = vpop.f32.mrf.mxu0
        %v1863 = vadd.f32 0.0, %v1862
        %1864 = vmatmul.f32.gmra.mxu0 %v1640
        %v1865 = vpop.f32.mrf.mxu0
        %v1866 = vadd.f32 0.0, %v1865
        %1867 = vmatmul.f32.gmra.mxu0 %v1643
        %v1868 = vpop.f32.mrf.mxu0
        %v1869 = vadd.f32 0.0, %v1868
        %1870 = vmatmul.f32.gmra.mxu0 %v1646
        %v1871 = vpop.f32.mrf.mxu0
        %v1872 = vadd.f32 0.0, %v1871
        %1873 = vmatmul.f32.gmra.mxu0 %v1649
        %v1874 = vpop.f32.mrf.mxu0
        %v1875 = vadd.f32 0.0, %v1874
        %1876 = vmatmul.f32.gmra.mxu0 %v1652
        %v1877 = vpop.f32.mrf.mxu0
        %v1878 = vadd.f32 0.0, %v1877
        %1879 = vmatmul.f32.gmra.mxu0 %v1655
        %v1880 = vpop.f32.mrf.mxu0
        %v1881 = vadd.f32 0.0, %v1880
        %1882 = vmatmul.f32.gmra.mxu0 %v1658
        %v1883 = vpop.f32.mrf.mxu0
        %v1884 = vadd.f32 0.0, %v1883
        %1885 = vmatmul.f32.gmra.mxu0 %v1661
        %v1886 = vpop.f32.mrf.mxu0
        %v1887 = vadd.f32 0.0, %v1886
        %1888 = vdwg.mxu0
        %v1889 = vmax.f32 %v1681, %v1687
        %v1890 = vmax.f32 %v1684, %v1690
        %v1891 = vmax.f32 %v1889, %v1693
        %v1892 = vmax.f32 %v1890, %v1696
        %v1893 = vmax.f32 %v1891, %v1699
        %v1894 = vmax.f32 %v1892, %v1702
        %v1895 = vmax.f32 %v1893, %v1705
        %v1896 = vmax.f32 %v1894, %v1708
        %v1897 = vmax.f32 %v1895, %v1711
        %v1898 = vmax.f32 %v1896, %v1714
        %v1899 = vmax.f32 %v1897, %v1717
        %v1900 = vmax.f32 %v1898, %v1720
        %v1901 = vmax.f32 %v1899, %v1723
        %v1902 = vmax.f32 %v1900, %v1726
        %v1903 = vmax.f32 %v1901, %v1729
        %v1904 = vmax.f32 %v1902, %v1732
        %v1905 = vmax.f32 %v1903, %v1735
        %v1906 = vmax.f32 %v1904, %v1738
        %v1907 = vmax.f32 %v1905, %v1741
        %v1908 = vmax.f32 %v1906, %v1744
        %v1909 = vmax.f32 %v1907, %v1747
        %v1910 = vmax.f32 %v1908, %v1750
        %v1911 = vmax.f32 %v1909, %v1753
        %v1912 = vmax.f32 %v1910, %v1756
        %v1913 = vmax.f32 %v1911, %v1759
        %v1914 = vmax.f32 %v1912, %v1762
        %v1915 = vmax.f32 %v1913, %v1765
        %v1916 = vmax.f32 %v1914, %v1768
        %v1917 = vmax.f32 %v1915, %v1771
        %v1918 = vmax.f32 %v1916, %v1774
        %v1919 = vmax.f32 %v1917, %v1918
        %v1920 = vrot.slane %v1919, 4
        %v1921 = vmax.f32 %v1919, %v1920
        %v1922 = vrot.slane %v1921, 2
        %v1923 = vmax.f32 %v1921, %v1922
        %v1924 = vrot.slane %v1923, 1
        %v1925 = vmax.f32 %v1923, %v1924
        %v1926 = vmax.f32 %v1794, %v1800
        %v1927 = vmax.f32 %v1797, %v1803
        %v1928 = vmax.f32 %v1926, %v1806
        %v1929 = vmax.f32 %v1927, %v1809
        %v1930 = vmax.f32 %v1928, %v1812
        %v1931 = vmax.f32 %v1929, %v1815
        %v1932 = vmax.f32 %v1930, %v1818
        %v1933 = vmax.f32 %v1931, %v1821
        %v1934 = vmax.f32 %v1932, %v1824
        %v1935 = vmax.f32 %v1933, %v1827
        %v1936 = vmax.f32 %v1934, %v1830
        %v1937 = vmax.f32 %v1935, %v1833
        %v1938 = vmax.f32 %v1936, %v1836
        %v1939 = vmax.f32 %v1937, %v1839
        %v1940 = vmax.f32 %v1938, %v1842
        %v1941 = vmax.f32 %v1939, %v1845
        %v1942 = vmax.f32 %v1940, %v1848
        %v1943 = vmax.f32 %v1941, %v1851
        %v1944 = vmax.f32 %v1942, %v1854
        %v1945 = vmax.f32 %v1943, %v1857
        %v1946 = vmax.f32 %v1944, %v1860
        %v1947 = vmax.f32 %v1945, %v1863
        %v1948 = vmax.f32 %v1946, %v1866
        %v1949 = vmax.f32 %v1947, %v1869
        %v1950 = vmax.f32 %v1948, %v1872
        %v1951 = vmax.f32 %v1949, %v1875
        %v1952 = vmax.f32 %v1950, %v1878
        %v1953 = vmax.f32 %v1951, %v1881
        %v1954 = vmax.f32 %v1952, %v1884
        %v1955 = vmax.f32 %v1953, %v1887
        %v1956 = vmax.f32 %v1954, %v1955
        %v1957 = vrot.slane %v1956, 4
        %v1958 = vmax.f32 %v1956, %v1957
        %v1959 = vrot.slane %v1958, 2
        %v1960 = vmax.f32 %v1958, %v1959
        %v1961 = vrot.slane %v1960, 1
        %v1962 = vmax.f32 %v1960, %v1961
        %v1963 = vsub.f32 %v1681, %v1925
        %v1964 = vsub.f32 %v1794, %v1962
        %v1965 = vsub.f32 %v1684, %v1925
        %v1966 = vsub.f32 %v1797, %v1962
        %v1967 = vsub.f32 %v1687, %v1925
        %v1968 = vsub.f32 %v1800, %v1962
        %v1969 = vsub.f32 %v1690, %v1925
        %v1970 = vsub.f32 %v1803, %v1962
        %v1971 = vsub.f32 %v1693, %v1925
        %v1972 = vsub.f32 %v1806, %v1962
        %v1973 = vsub.f32 %v1696, %v1925
        %v1974 = vsub.f32 %v1809, %v1962
        %v1975 = vsub.f32 %v1699, %v1925
        %v1976 = vsub.f32 %v1812, %v1962
        %v1977 = vsub.f32 %v1702, %v1925
        %v1978 = vsub.f32 %v1815, %v1962
        %v1979 = vsub.f32 %v1705, %v1925
        %v1980 = vsub.f32 %v1818, %v1962
        %v1981 = vsub.f32 %v1708, %v1925
        %v1982 = vsub.f32 %v1821, %v1962
        %v1983 = vsub.f32 %v1711, %v1925
        %v1984 = vsub.f32 %v1824, %v1962
        %v1985 = vsub.f32 %v1714, %v1925
        %v1986 = vsub.f32 %v1827, %v1962
        %v1987 = vsub.f32 %v1717, %v1925
        %v1988 = vsub.f32 %v1830, %v1962
        %v1989 = vsub.f32 %v1720, %v1925
        %v1990 = vsub.f32 %v1833, %v1962
        %v1991 = vsub.f32 %v1723, %v1925
        %v1992 = vsub.f32 %v1836, %v1962
        %v1993 = vsub.f32 %v1726, %v1925
        %v1994 = vsub.f32 %v1839, %v1962
        %v1995 = vsub.f32 %v1729, %v1925
        %v1996 = vsub.f32 %v1842, %v1962
        %v1997 = vsub.f32 %v1732, %v1925
        %v1998 = vsub.f32 %v1845, %v1962
        %v1999 = vsub.f32 %v1735, %v1925
        %v2000 = vsub.f32 %v1848, %v1962
        %v2001 = vsub.f32 %v1738, %v1925
        %v2002 = vsub.f32 %v1851, %v1962
        %v2003 = vsub.f32 %v1741, %v1925
        %v2004 = vsub.f32 %v1854, %v1962
        %v2005 = vsub.f32 %v1744, %v1925
        %v2006 = vsub.f32 %v1857, %v1962
        %v2007 = vsub.f32 %v1747, %v1925
        %v2008 = vsub.f32 %v1860, %v1962
        %v2009 = vsub.f32 %v1750, %v1925
        %v2010 = vsub.f32 %v1863, %v1962
        %v2011 = vsub.f32 %v1753, %v1925
        %v2012 = vsub.f32 %v1866, %v1962
        %v2013 = vsub.f32 %v1756, %v1925
        %v2014 = vsub.f32 %v1869, %v1962
        %v2015 = vsub.f32 %v1759, %v1925
        %v2016 = vsub.f32 %v1872, %v1962
        %v2017 = vsub.f32 %v1762, %v1925
        %v2018 = vsub.f32 %v1875, %v1962
        %v2019 = vsub.f32 %v1765, %v1925
        %v2020 = vsub.f32 %v1878, %v1962
        %v2021 = vsub.f32 %v1768, %v1925
        %v2022 = vsub.f32 %v1881, %v1962
        %v2023 = vsub.f32 %v1771, %v1925
        %v2024 = vsub.f32 %v1884, %v1962
        %v2025 = vsub.f32 %v1774, %v1925
        %v2026 = vsub.f32 %v1887, %v1962
        %v2027 = vmul.f32 %v1963, 1.442695
        %v2028 = vpow.pop %v2027
        %v2029 = vmul.f32 %v1964, 1.442695
        %v2030 = vpow.pop %v2029
        %v2031 = vmul.f32 %v1965, 1.442695
        %v2032 = vpow.pop %v2031
        %v2033 = vmul.f32 %v1966, 1.442695
        %v2034 = vpow.pop %v2033
        %v2035 = vmul.f32 %v1967, 1.442695
        %v2036 = vpow.pop %v2035
        %v2037 = vmul.f32 %v1968, 1.442695
        %v2038 = vpow.pop %v2037
        %v2039 = vmul.f32 %v1969, 1.442695
        %v2040 = vpow.pop %v2039
        %v2041 = vmul.f32 %v1970, 1.442695
        %v2042 = vpow.pop %v2041
        %v2043 = vmul.f32 %v1971, 1.442695
        %v2044 = vpow.pop %v2043
        %v2045 = vmul.f32 %v1972, 1.442695
        %v2046 = vpow.pop %v2045
        %v2047 = vmul.f32 %v1973, 1.442695
        %v2048 = vpow.pop %v2047
        %v2049 = vmul.f32 %v1974, 1.442695
        %v2050 = vpow.pop %v2049
        %v2051 = vmul.f32 %v1975, 1.442695
        %v2052 = vpow.pop %v2051
        %v2053 = vmul.f32 %v1976, 1.442695
        %v2054 = vpow.pop %v2053
        %v2055 = vmul.f32 %v1977, 1.442695
        %v2056 = vpow.pop %v2055
        %v2057 = vmul.f32 %v1978, 1.442695
        %v2058 = vpow.pop %v2057
        %v2059 = vmul.f32 %v1979, 1.442695
        %v2060 = vpow.pop %v2059
        %v2061 = vmul.f32 %v1980, 1.442695
        %v2062 = vpow.pop %v2061
        %v2063 = vmul.f32 %v1981, 1.442695
        %v2064 = vpow.pop %v2063
        %v2065 = vmul.f32 %v1982, 1.442695
        %v2066 = vpow.pop %v2065
        %v2067 = vmul.f32 %v1983, 1.442695
        %v2068 = vpow.pop %v2067
        %v2069 = vmul.f32 %v1984, 1.442695
        %v2070 = vpow.pop %v2069
        %v2071 = vmul.f32 %v1985, 1.442695
        %v2072 = vpow.pop %v2071
        %v2073 = vmul.f32 %v1986, 1.442695
        %v2074 = vpow.pop %v2073
        %v2075 = vmul.f32 %v1987, 1.442695
        %v2076 = vpow.pop %v2075
        %v2077 = vmul.f32 %v1988, 1.442695
        %v2078 = vpow.pop %v2077
        %v2079 = vmul.f32 %v1989, 1.442695
        %v2080 = vpow.pop %v2079
        %v2081 = vmul.f32 %v1990, 1.442695
        %v2082 = vpow.pop %v2081
        %v2083 = vmul.f32 %v1991, 1.442695
        %v2084 = vpow.pop %v2083
        %v2085 = vmul.f32 %v1992, 1.442695
        %v2086 = vpow.pop %v2085
        %v2087 = vmul.f32 %v1993, 1.442695
        %v2088 = vpow.pop %v2087
        %v2089 = vmul.f32 %v1994, 1.442695
        %v2090 = vpow.pop %v2089
        %v2091 = vmul.f32 %v1995, 1.442695
        %v2092 = vpow.pop %v2091
        %v2093 = vmul.f32 %v1996, 1.442695
        %v2094 = vpow.pop %v2093
        %v2095 = vmul.f32 %v1997, 1.442695
        %v2096 = vpow.pop %v2095
        %v2097 = vmul.f32 %v1998, 1.442695
        %v2098 = vpow.pop %v2097
        %v2099 = vmul.f32 %v1999, 1.442695
        %v2100 = vpow.pop %v2099
        %v2101 = vmul.f32 %v2000, 1.442695
        %v2102 = vpow.pop %v2101
        %v2103 = vmul.f32 %v2001, 1.442695
        %v2104 = vpow.pop %v2103
        %v2105 = vmul.f32 %v2002, 1.442695
        %v2106 = vpow.pop %v2105
        %v2107 = vmul.f32 %v2003, 1.442695
        %v2108 = vpow.pop %v2107
        %v2109 = vmul.f32 %v2004, 1.442695
        %v2110 = vpow.pop %v2109
        %v2111 = vmul.f32 %v2005, 1.442695
        %v2112 = vpow.pop %v2111
        %v2113 = vmul.f32 %v2006, 1.442695
        %v2114 = vpow.pop %v2113
        %v2115 = vmul.f32 %v2007, 1.442695
        %v2116 = vpow.pop %v2115
        %v2117 = vmul.f32 %v2008, 1.442695
        %v2118 = vpow.pop %v2117
        %v2119 = vmul.f32 %v2009, 1.442695
        %v2120 = vpow.pop %v2119
        %v2121 = vmul.f32 %v2010, 1.442695
        %v2122 = vpow.pop %v2121
        %v2123 = vmul.f32 %v2011, 1.442695
        %v2124 = vpow.pop %v2123
        %v2125 = vmul.f32 %v2012, 1.442695
        %v2126 = vpow.pop %v2125
        %v2127 = vmul.f32 %v2013, 1.442695
        %v2128 = vpow.pop %v2127
        %v2129 = vmul.f32 %v2014, 1.442695
        %v2130 = vpow.pop %v2129
        %v2131 = vmul.f32 %v2015, 1.442695
        %v2132 = vpow.pop %v2131
        %v2133 = vmul.f32 %v2016, 1.442695
        %v2134 = vpow.pop %v2133
        %v2135 = vmul.f32 %v2017, 1.442695
        %v2136 = vpow.pop %v2135
        %v2137 = vmul.f32 %v2018, 1.442695
        %v2138 = vpow.pop %v2137
        %v2139 = vmul.f32 %v2019, 1.442695
        %v2140 = vpow.pop %v2139
        %v2141 = vmul.f32 %v2020, 1.442695
        %v2142 = vpow.pop %v2141
        %v2143 = vmul.f32 %v2021, 1.442695
        %v2144 = vpow.pop %v2143
        %v2145 = vmul.f32 %v2022, 1.442695
        %v2146 = vpow.pop %v2145
        %v2147 = vmul.f32 %v2023, 1.442695
        %v2148 = vpow.pop %v2147
        %v2149 = vmul.f32 %v2024, 1.442695
        %v2150 = vpow.pop %v2149
        %v2151 = vmul.f32 %v2025, 1.442695
        %v2152 = vpow.pop %v2151
        %v2153 = vmul.f32 %v2026, 1.442695
        %v2154 = vpow.pop %v2153
        %v2155 = vadd.f32 %v2028, %v2032
        %v2156 = vadd.f32 %v2155, %v2036
        %v2157 = vadd.f32 %v2156, %v2040
        %v2158 = vadd.f32 %v2157, %v2044
        %v2159 = vadd.f32 %v2158, %v2048
        %v2160 = vadd.f32 %v2159, %v2052
        %v2161 = vadd.f32 %v2160, %v2056
        %v2162 = vadd.f32 %v2161, %v2060
        %v2163 = vadd.f32 %v2162, %v2064
        %v2164 = vadd.f32 %v2163, %v2068
        %v2165 = vadd.f32 %v2164, %v2072
        %v2166 = vadd.f32 %v2165, %v2076
        %v2167 = vadd.f32 %v2166, %v2080
        %v2168 = vadd.f32 %v2167, %v2084
        %v2169 = vadd.f32 %v2168, %v2088
        %v2170 = vadd.f32 %v2169, %v2092
        %v2171 = vadd.f32 %v2170, %v2096
        %v2172 = vadd.f32 %v2171, %v2100
        %v2173 = vadd.f32 %v2172, %v2104
        %v2174 = vadd.f32 %v2173, %v2108
        %v2175 = vadd.f32 %v2174, %v2112
        %v2176 = vadd.f32 %v2175, %v2116
        %v2177 = vadd.f32 %v2176, %v2120
        %v2178 = vadd.f32 %v2177, %v2124
        %v2179 = vadd.f32 %v2178, %v2128
        %v2180 = vadd.f32 %v2179, %v2132
        %v2181 = vadd.f32 %v2180, %v2136
        %v2182 = vadd.f32 %v2181, %v2140
        %v2183 = vadd.f32 %v2182, %v2144
        %v2184 = vadd.f32 %v2183, %v2148
        %v2185 = vadd.f32 %v2184, %v2152
        %v2186 = vrot.slane %v2185, 4
        %v2187 = vadd.f32 %v2185, %v2186
        %v2188 = vrot.slane %v2187, 2
        %v2189 = vadd.f32 %v2187, %v2188
        %v2190 = vrot.slane %v2189, 1
        %v2191 = vadd.f32 %v2189, %v2190
        %v2192 = vadd.f32 %v2030, %v2034
        %v2193 = vadd.f32 %v2192, %v2038
        %v2194 = vadd.f32 %v2193, %v2042
        %v2195 = vadd.f32 %v2194, %v2046
        %v2196 = vadd.f32 %v2195, %v2050
        %v2197 = vadd.f32 %v2196, %v2054
        %v2198 = vadd.f32 %v2197, %v2058
        %v2199 = vadd.f32 %v2198, %v2062
        %v2200 = vadd.f32 %v2199, %v2066
        %v2201 = vadd.f32 %v2200, %v2070
        %v2202 = vadd.f32 %v2201, %v2074
        %v2203 = vadd.f32 %v2202, %v2078
        %v2204 = vadd.f32 %v2203, %v2082
        %v2205 = vadd.f32 %v2204, %v2086
        %v2206 = vadd.f32 %v2205, %v2090
        %v2207 = vadd.f32 %v2206, %v2094
        %v2208 = vadd.f32 %v2207, %v2098
        %v2209 = vadd.f32 %v2208, %v2102
        %v2210 = vadd.f32 %v2209, %v2106
        %v2211 = vadd.f32 %v2210, %v2110
        %v2212 = vadd.f32 %v2211, %v2114
        %v2213 = vadd.f32 %v2212, %v2118
        %v2214 = vadd.f32 %v2213, %v2122
        %v2215 = vadd.f32 %v2214, %v2126
        %v2216 = vadd.f32 %v2215, %v2130
        %v2217 = vadd.f32 %v2216, %v2134
        %v2218 = vadd.f32 %v2217, %v2138
        %v2219 = vadd.f32 %v2218, %v2142
        %v2220 = vadd.f32 %v2219, %v2146
        %v2221 = vadd.f32 %v2220, %v2150
        %v2222 = vadd.f32 %v2221, %v2154
        %v2223 = vrot.slane %v2222, 4
        %v2224 = vadd.f32 %v2222, %v2223
        %v2225 = vrot.slane %v2224, 2
        %v2226 = vadd.f32 %v2224, %v2225
        %v2227 = vrot.slane %v2226, 1
        %v2228 = vadd.f32 %v2226, %v2227
        %2229 = vmatpush.msra.mxu0 %v2088
        %2230 = vmatpush.msra.mxu0 %v2084
        %2231 = vmatpush.msra.mxu0 %v2080
        %2232 = vmatpush.msra.mxu0 %v2076
        %2233 = vmatpush.msra.mxu0 %v2072
        %2234 = vmatpush.msra.mxu0 %v2068
        %2235 = vmatpush.msra.mxu0 %v2064
        %2236 = vmatpush.msra.mxu0 %v2060
        %2237 = vmatpush.msra.mxu0 %v2056
        %2238 = vmatpush.msra.mxu0 %v2052
        %2239 = vmatpush.msra.mxu0 %v2048
        %2240 = vmatpush.msra.mxu0 %v2044
        %2241 = vmatpush.msra.mxu0 %v2040
        %2242 = vmatpush.msra.mxu0 %v2036
        %2243 = vmatpush.msra.mxu0 %v2032
        %2244 = vmatpush.msra.mxu0 %v2028
        %2245 = vmatmul.f32.gmra.mxu0 %v1501
        %v2246 = vpop.f32.mrf.mxu0
        %v2247 = vadd.f32 0.0, %v2246
        %2248 = vdwg.mxu0
        %2249 = vmatpush.msra.mxu0 %v2152
        %2250 = vmatpush.msra.mxu0 %v2148
        %2251 = vmatpush.msra.mxu0 %v2144
        %2252 = vmatpush.msra.mxu0 %v2140
        %2253 = vmatpush.msra.mxu0 %v2136
        %2254 = vmatpush.msra.mxu0 %v2132
        %2255 = vmatpush.msra.mxu0 %v2128
        %2256 = vmatpush.msra.mxu0 %v2124
        %2257 = vmatpush.msra.mxu0 %v2120
        %2258 = vmatpush.msra.mxu0 %v2116
        %2259 = vmatpush.msra.mxu0 %v2112
        %2260 = vmatpush.msra.mxu0 %v2108
        %2261 = vmatpush.msra.mxu0 %v2104
        %2262 = vmatpush.msra.mxu0 %v2100
        %2263 = vmatpush.msra.mxu0 %v2096
        %2264 = vmatpush.msra.mxu0 %v2092
        %2265 = vmatmul.f32.gmra.mxu0 %v1502
        %v2266 = vpop.f32.mrf.mxu0
        %v2267 = vadd.f32 %v2247, %v2266
        %2268 = vdwg.mxu0
        %2269 = vmatpush.msra.mxu0 %v2090
        %2270 = vmatpush.msra.mxu0 %v2086
        %2271 = vmatpush.msra.mxu0 %v2082
        %2272 = vmatpush.msra.mxu0 %v2078
        %2273 = vmatpush.msra.mxu0 %v2074
        %2274 = vmatpush.msra.mxu0 %v2070
        %2275 = vmatpush.msra.mxu0 %v2066
        %2276 = vmatpush.msra.mxu0 %v2062
        %2277 = vmatpush.msra.mxu0 %v2058
        %2278 = vmatpush.msra.mxu0 %v2054
        %2279 = vmatpush.msra.mxu0 %v2050
        %2280 = vmatpush.msra.mxu0 %v2046
        %2281 = vmatpush.msra.mxu0 %v2042
        %2282 = vmatpush.msra.mxu0 %v2038
        %2283 = vmatpush.msra.mxu0 %v2034
        %2284 = vmatpush.msra.mxu0 %v2030
        %2285 = vmatmul.f32.gmra.mxu0 %v1501
        %v2286 = vpop.f32.mrf.mxu0
        %v2287 = vadd.f32 0.0, %v2286
        %2288 = vdwg.mxu0
        %2289 = vmatpush.msra.mxu0 %v2154
        %2290 = vmatpush.msra.mxu0 %v2150
        %2291 = vmatpush.msra.mxu0 %v2146
        %2292 = vmatpush.msra.mxu0 %v2142
        %2293 = vmatpush.msra.mxu0 %v2138
        %2294 = vmatpush.msra.mxu0 %v2134
        %2295 = vmatpush.msra.mxu0 %v2130
        %2296 = vmatpush.msra.mxu0 %v2126
        %2297 = vmatpush.msra.mxu0 %v2122
        %2298 = vmatpush.msra.mxu0 %v2118
        %2299 = vmatpush.msra.mxu0 %v2114
        %2300 = vmatpush.msra.mxu0 %v2110
        %2301 = vmatpush.msra.mxu0 %v2106
        %2302 = vmatpush.msra.mxu0 %v2102
        %2303 = vmatpush.msra.mxu0 %v2098
        %2304 = vmatpush.msra.mxu0 %v2094
        %2305 = vmatmul.f32.gmra.mxu0 %v1502
        %v2306 = vpop.f32.mrf.mxu0
        %v2307 = vadd.f32 %v2287, %v2306
        %2308 = vdwg.mxu0
        %v2309 = vrcp.pop %v2191
        %v2310 = vmul.f32 %v2191, %v2309
        %v2311 = vsub.f32 1.0, %v2310
        %v2312 = vmul.f32 %v2309, %v2311
        %v2313 = vadd.f32 %v2309, %v2312
        %vm2314 = vweird.f32 %v2191
        %vm2315 = vweird.f32 %v2309
        %vm2316 = vmor %vm2314, %vm2315
        %v2317 = vsel %vm2316, %v2309, %v2313
        %v2318 = vand.u32 2147483647, %v2191
        %vm2319 = vcmp.eq.f32.partialorder %v2318, 8.507059e+37
        %v2320 = vand.u32 %v2191, 2147483648
        %v2321 = vor.u32 1.1754944e-38, %v2320
        %v2322 = vsel %vm2319, %v2321, %v2317
        %v2323 = vmul.f32 1.0, %v2322
        %v2324 = vrcp.pop %v2228
        %v2325 = vmul.f32 %v2228, %v2324
        %v2326 = vsub.f32 1.0, %v2325
        %v2327 = vmul.f32 %v2324, %v2326
        %v2328 = vadd.f32 %v2324, %v2327
        %vm2329 = vweird.f32 %v2228
        %vm2330 = vweird.f32 %v2324
        %vm2331 = vmor %vm2329, %vm2330
        %v2332 = vsel %vm2331, %v2324, %v2328
        %v2333 = vand.u32 2147483647, %v2228
        %vm2334 = vcmp.eq.f32.partialorder %v2333, 8.507059e+37
        %v2335 = vand.u32 %v2228, 2147483648
        %v2336 = vor.u32 1.1754944e-38, %v2335
        %v2337 = vsel %vm2334, %v2336, %v2332
        %v2338 = vmul.f32 1.0, %v2337
        %v2339 = vmul.f32 %v2267, %v2323
        %v2340 = vmul.f32 %v2307, %v2338
        %2341 = vst [vmem:[%s312 + $0x10] sm:$0xff] %v2339
        %2342 = vst [vmem:[%s312 + $0x18] sm:$0xff] %v2340
        %v2343 = vld [vmem:[%s649 + $0x20] sm:$0xff]
        %v2344 = vld [vmem:[%s649 + $0x28] sm:$0xff]
        %v2345 = vld [vmem:[#allocation3 + $0x20] sm:$0xff]
        %v2346 = vld [vmem:[#allocation3 + $0x28] sm:$0xff]
        %v2347 = vld [vmem:[#allocation4 + $0x20] sm:$0xff]
        %v2348 = vld [vmem:[#allocation4 + $0x28] sm:$0xff]
        %2349 = vxpose.xlu0.b32.start [1/16] %v2345, 128
        %2350 = vxpose.xlu0.b32.cont [2/16] 0.0, 128
        %2351 = vxpose.xlu0.b32.cont [3/16] 0.0, 128
        %2352 = vxpose.xlu0.b32.cont [4/16] 0.0, 128
        %2353 = vxpose.xlu0.b32.cont [5/16] 0.0, 128
        %2354 = vxpose.xlu0.b32.cont [6/16] 0.0, 128
        %2355 = vxpose.xlu0.b32.cont [7/16] 0.0, 128
        %2356 = vxpose.xlu0.b32.cont [8/16] 0.0, 128
        %2357 = vxpose.xlu0.b32.cont [9/16] 0.0, 128
        %2358 = vxpose.xlu0.b32.cont [10/16] 0.0, 128
        %2359 = vxpose.xlu0.b32.cont [11/16] 0.0, 128
        %2360 = vxpose.xlu0.b32.cont [12/16] 0.0, 128
        %2361 = vxpose.xlu0.b32.cont [13/16] 0.0, 128
        %2362 = vxpose.xlu0.b32.cont [14/16] 0.0, 128
        %2363 = vxpose.xlu0.b32.cont [15/16] 0.0, 128
        %2364 = vxpose.xlu0.b32.end [16/16] 0.0, 128
        %v2365 = vpop.trf.xlu0
        %v2366 = vpop.trf.xlu0
        %v2367 = vpop.trf.xlu0
        %v2368 = vpop.trf.xlu0
        %v2369 = vpop.trf.xlu0
        %v2370 = vpop.trf.xlu0
        %v2371 = vpop.trf.xlu0
        %v2372 = vpop.trf.xlu0
        %v2373 = vpop.trf.xlu0
        %v2374 = vpop.trf.xlu0
        %v2375 = vpop.trf.xlu0
        %v2376 = vpop.trf.xlu0
        %v2377 = vpop.trf.xlu0
        %v2378 = vpop.trf.xlu0
        %v2379 = vpop.trf.xlu0
        %v2380 = vpop.trf.xlu0
        %2381 = vxpose.xlu0.b32.start [1/16] %v2346, 128
        %2382 = vxpose.xlu0.b32.cont [2/16] 0.0, 128
        %2383 = vxpose.xlu0.b32.cont [3/16] 0.0, 128
        %2384 = vxpose.xlu0.b32.cont [4/16] 0.0, 128
        %2385 = vxpose.xlu0.b32.cont [5/16] 0.0, 128
        %2386 = vxpose.xlu0.b32.cont [6/16] 0.0, 128
        %2387 = vxpose.xlu0.b32.cont [7/16] 0.0, 128
        %2388 = vxpose.xlu0.b32.cont [8/16] 0.0, 128
        %2389 = vxpose.xlu0.b32.cont [9/16] 0.0, 128
        %2390 = vxpose.xlu0.b32.cont [10/16] 0.0, 128
        %2391 = vxpose.xlu0.b32.cont [11/16] 0.0, 128
        %2392 = vxpose.xlu0.b32.cont [12/16] 0.0, 128
        %2393 = vxpose.xlu0.b32.cont [13/16] 0.0, 128
        %2394 = vxpose.xlu0.b32.cont [14/16] 0.0, 128
        %2395 = vxpose.xlu0.b32.cont [15/16] 0.0, 128
        %2396 = vxpose.xlu0.b32.end [16/16] 0.0, 128
        %v2397 = vpop.trf.xlu0
        %v2398 = vpop.trf.xlu0
        %v2399 = vpop.trf.xlu0
        %v2400 = vpop.trf.xlu0
        %v2401 = vpop.trf.xlu0
        %v2402 = vpop.trf.xlu0
        %v2403 = vpop.trf.xlu0
        %v2404 = vpop.trf.xlu0
        %v2405 = vpop.trf.xlu0
        %v2406 = vpop.trf.xlu0
        %v2407 = vpop.trf.xlu0
        %v2408 = vpop.trf.xlu0
        %v2409 = vpop.trf.xlu0
        %v2410 = vpop.trf.xlu0
        %v2411 = vpop.trf.xlu0
        %v2412 = vpop.trf.xlu0
        %v2414 = vsel %vm720, %v2365, 0
        %v2417 = vsel %vm720, %v2366, 0
        %v2420 = vsel %vm720, %v2367, 0
        %v2423 = vsel %vm720, %v2368, 0
        %v2426 = vsel %vm720, %v2369, 0
        %v2429 = vsel %vm720, %v2370, 0
        %v2432 = vsel %vm720, %v2371, 0
        %v2435 = vsel %vm720, %v2372, 0
        %v2438 = vsel %vm720, %v2373, 0
        %v2441 = vsel %vm720, %v2374, 0
        %v2444 = vsel %vm720, %v2375, 0
        %v2447 = vsel %vm720, %v2376, 0
        %v2450 = vsel %vm720, %v2377, 0
        %v2453 = vsel %vm720, %v2378, 0
        %v2456 = vsel %vm720, %v2379, 0
        %v2459 = vsel %vm720, %v2380, 0
        %v2462 = vsel %vm720, %v2397, 0
        %v2465 = vsel %vm720, %v2398, 0
        %v2468 = vsel %vm720, %v2399, 0
        %v2471 = vsel %vm720, %v2400, 0
        %v2474 = vsel %vm720, %v2401, 0
        %v2477 = vsel %vm720, %v2402, 0
        %v2480 = vsel %vm720, %v2403, 0
        %v2483 = vsel %vm720, %v2404, 0
        %v2486 = vsel %vm720, %v2405, 0
        %v2489 = vsel %vm720, %v2406, 0
        %v2492 = vsel %vm720, %v2407, 0
        %v2495 = vsel %vm720, %v2408, 0
        %v2498 = vsel %vm720, %v2409, 0
        %v2501 = vsel %vm720, %v2410, 0
        %v2504 = vsel %vm720, %v2411, 0
        %v2507 = vsel %vm720, %v2412, 0
        %2509 = vmatpush.msra.mxu0 0.0
        %2510 = vmatpush.msra.mxu0 0.0
        %2511 = vmatpush.msra.mxu0 0.0
        %2512 = vmatpush.msra.mxu0 0.0
        %2513 = vmatpush.msra.mxu0 0.0
        %2514 = vmatpush.msra.mxu0 0.0
        %2515 = vmatpush.msra.mxu0 0.0
        %2516 = vmatpush.msra.mxu0 0.0
        %2517 = vmatpush.msra.mxu0 0.0
        %2518 = vmatpush.msra.mxu0 0.0
        %2519 = vmatpush.msra.mxu0 0.0
        %2520 = vmatpush.msra.mxu0 0.0
        %2521 = vmatpush.msra.mxu0 0.0
        %2522 = vmatpush.msra.mxu0 0.0
        %2523 = vmatpush.msra.mxu0 0.0
        %2524 = vmatpush.msra.mxu0 %v2343
        %2525 = vmatmul.f32.gmra.mxu0 %v2414
        %v2526 = vpop.f32.mrf.mxu0
        %v2527 = vadd.f32 0.0, %v2526
        %2528 = vmatmul.f32.gmra.mxu0 %v2417
        %v2529 = vpop.f32.mrf.mxu0
        %v2530 = vadd.f32 0.0, %v2529
        %2531 = vmatmul.f32.gmra.mxu0 %v2420
        %v2532 = vpop.f32.mrf.mxu0
        %v2533 = vadd.f32 0.0, %v2532
        %2534 = vmatmul.f32.gmra.mxu0 %v2423
        %v2535 = vpop.f32.mrf.mxu0
        %v2536 = vadd.f32 0.0, %v2535
        %2537 = vmatmul.f32.gmra.mxu0 %v2426
        %v2538 = vpop.f32.mrf.mxu0
        %v2539 = vadd.f32 0.0, %v2538
        %2540 = vmatmul.f32.gmra.mxu0 %v2429
        %v2541 = vpop.f32.mrf.mxu0
        %v2542 = vadd.f32 0.0, %v2541
        %2543 = vmatmul.f32.gmra.mxu0 %v2432
        %v2544 = vpop.f32.mrf.mxu0
        %v2545 = vadd.f32 0.0, %v2544
        %2546 = vmatmul.f32.gmra.mxu0 %v2435
        %v2547 = vpop.f32.mrf.mxu0
        %v2548 = vadd.f32 0.0, %v2547
        %2549 = vmatmul.f32.gmra.mxu0 %v2438
        %v2550 = vpop.f32.mrf.mxu0
        %v2551 = vadd.f32 0.0, %v2550
        %2552 = vmatmul.f32.gmra.mxu0 %v2441
        %v2553 = vpop.f32.mrf.mxu0
        %v2554 = vadd.f32 0.0, %v2553
        %2555 = vmatmul.f32.gmra.mxu0 %v2444
        %v2556 = vpop.f32.mrf.mxu0
        %v2557 = vadd.f32 0.0, %v2556
        %2558 = vmatmul.f32.gmra.mxu0 %v2447
        %v2559 = vpop.f32.mrf.mxu0
        %v2560 = vadd.f32 0.0, %v2559
        %2561 = vmatmul.f32.gmra.mxu0 %v2450
        %v2562 = vpop.f32.mrf.mxu0
        %v2563 = vadd.f32 0.0, %v2562
        %2564 = vmatmul.f32.gmra.mxu0 %v2453
        %v2565 = vpop.f32.mrf.mxu0
        %v2566 = vadd.f32 0.0, %v2565
        %2567 = vmatmul.f32.gmra.mxu0 %v2456
        %v2568 = vpop.f32.mrf.mxu0
        %v2569 = vadd.f32 0.0, %v2568
        %2570 = vmatmul.f32.gmra.mxu0 %v2459
        %v2571 = vpop.f32.mrf.mxu0
        %v2572 = vadd.f32 0.0, %v2571
        %2573 = vmatmul.f32.gmra.mxu0 %v2462
        %v2574 = vpop.f32.mrf.mxu0
        %v2575 = vadd.f32 0.0, %v2574
        %2576 = vmatmul.f32.gmra.mxu0 %v2465
        %v2577 = vpop.f32.mrf.mxu0
        %v2578 = vadd.f32 0.0, %v2577
        %2579 = vmatmul.f32.gmra.mxu0 %v2468
        %v2580 = vpop.f32.mrf.mxu0
        %v2581 = vadd.f32 0.0, %v2580
        %2582 = vmatmul.f32.gmra.mxu0 %v2471
        %v2583 = vpop.f32.mrf.mxu0
        %v2584 = vadd.f32 0.0, %v2583
        %2585 = vmatmul.f32.gmra.mxu0 %v2474
        %v2586 = vpop.f32.mrf.mxu0
        %v2587 = vadd.f32 0.0, %v2586
        %2588 = vmatmul.f32.gmra.mxu0 %v2477
        %v2589 = vpop.f32.mrf.mxu0
        %v2590 = vadd.f32 0.0, %v2589
        %2591 = vmatmul.f32.gmra.mxu0 %v2480
        %v2592 = vpop.f32.mrf.mxu0
        %v2593 = vadd.f32 0.0, %v2592
        %2594 = vmatmul.f32.gmra.mxu0 %v2483
        %v2595 = vpop.f32.mrf.mxu0
        %v2596 = vadd.f32 0.0, %v2595
        %2597 = vmatmul.f32.gmra.mxu0 %v2486
        %v2598 = vpop.f32.mrf.mxu0
        %v2599 = vadd.f32 0.0, %v2598
        %2600 = vmatmul.f32.gmra.mxu0 %v2489
        %v2601 = vpop.f32.mrf.mxu0
        %v2602 = vadd.f32 0.0, %v2601
        %2603 = vmatmul.f32.gmra.mxu0 %v2492
        %v2604 = vpop.f32.mrf.mxu0
        %v2605 = vadd.f32 0.0, %v2604
        %2606 = vmatmul.f32.gmra.mxu0 %v2495
        %v2607 = vpop.f32.mrf.mxu0
        %v2608 = vadd.f32 0.0, %v2607
        %2609 = vmatmul.f32.gmra.mxu0 %v2498
        %v2610 = vpop.f32.mrf.mxu0
        %v2611 = vadd.f32 0.0, %v2610
        %2612 = vmatmul.f32.gmra.mxu0 %v2501
        %v2613 = vpop.f32.mrf.mxu0
        %v2614 = vadd.f32 0.0, %v2613
        %2615 = vmatmul.f32.gmra.mxu0 %v2504
        %v2616 = vpop.f32.mrf.mxu0
        %v2617 = vadd.f32 0.0, %v2616
        %2618 = vmatmul.f32.gmra.mxu0 %v2507
        %v2619 = vpop.f32.mrf.mxu0
        %v2620 = vadd.f32 0.0, %v2619
        %2621 = vdwg.mxu0
        %2622 = vmatpush.msra.mxu0 0.0
        %2623 = vmatpush.msra.mxu0 0.0
        %2624 = vmatpush.msra.mxu0 0.0
        %2625 = vmatpush.msra.mxu0 0.0
        %2626 = vmatpush.msra.mxu0 0.0
        %2627 = vmatpush.msra.mxu0 0.0
        %2628 = vmatpush.msra.mxu0 0.0
        %2629 = vmatpush.msra.mxu0 0.0
        %2630 = vmatpush.msra.mxu0 0.0
        %2631 = vmatpush.msra.mxu0 0.0
        %2632 = vmatpush.msra.mxu0 0.0
        %2633 = vmatpush.msra.mxu0 0.0
        %2634 = vmatpush.msra.mxu0 0.0
        %2635 = vmatpush.msra.mxu0 0.0
        %2636 = vmatpush.msra.mxu0 0.0
        %2637 = vmatpush.msra.mxu0 %v2344
        %2638 = vmatmul.f32.gmra.mxu0 %v2414
        %v2639 = vpop.f32.mrf.mxu0
        %v2640 = vadd.f32 0.0, %v2639
        %2641 = vmatmul.f32.gmra.mxu0 %v2417
        %v2642 = vpop.f32.mrf.mxu0
        %v2643 = vadd.f32 0.0, %v2642
        %2644 = vmatmul.f32.gmra.mxu0 %v2420
        %v2645 = vpop.f32.mrf.mxu0
        %v2646 = vadd.f32 0.0, %v2645
        %2647 = vmatmul.f32.gmra.mxu0 %v2423
        %v2648 = vpop.f32.mrf.mxu0
        %v2649 = vadd.f32 0.0, %v2648
        %2650 = vmatmul.f32.gmra.mxu0 %v2426
        %v2651 = vpop.f32.mrf.mxu0
        %v2652 = vadd.f32 0.0, %v2651
        %2653 = vmatmul.f32.gmra.mxu0 %v2429
        %v2654 = vpop.f32.mrf.mxu0
        %v2655 = vadd.f32 0.0, %v2654
        %2656 = vmatmul.f32.gmra.mxu0 %v2432
        %v2657 = vpop.f32.mrf.mxu0
        %v2658 = vadd.f32 0.0, %v2657
        %2659 = vmatmul.f32.gmra.mxu0 %v2435
        %v2660 = vpop.f32.mrf.mxu0
        %v2661 = vadd.f32 0.0, %v2660
        %2662 = vmatmul.f32.gmra.mxu0 %v2438
        %v2663 = vpop.f32.mrf.mxu0
        %v2664 = vadd.f32 0.0, %v2663
        %2665 = vmatmul.f32.gmra.mxu0 %v2441
        %v2666 = vpop.f32.mrf.mxu0
        %v2667 = vadd.f32 0.0, %v2666
        %2668 = vmatmul.f32.gmra.mxu0 %v2444
        %v2669 = vpop.f32.mrf.mxu0
        %v2670 = vadd.f32 0.0, %v2669
        %2671 = vmatmul.f32.gmra.mxu0 %v2447
        %v2672 = vpop.f32.mrf.mxu0
        %v2673 = vadd.f32 0.0, %v2672
        %2674 = vmatmul.f32.gmra.mxu0 %v2450
        %v2675 = vpop.f32.mrf.mxu0
        %v2676 = vadd.f32 0.0, %v2675
        %2677 = vmatmul.f32.gmra.mxu0 %v2453
        %v2678 = vpop.f32.mrf.mxu0
        %v2679 = vadd.f32 0.0, %v2678
        %2680 = vmatmul.f32.gmra.mxu0 %v2456
        %v2681 = vpop.f32.mrf.mxu0
        %v2682 = vadd.f32 0.0, %v2681
        %2683 = vmatmul.f32.gmra.mxu0 %v2459
        %v2684 = vpop.f32.mrf.mxu0
        %v2685 = vadd.f32 0.0, %v2684
        %2686 = vmatmul.f32.gmra.mxu0 %v2462
        %v2687 = vpop.f32.mrf.mxu0
        %v2688 = vadd.f32 0.0, %v2687
        %2689 = vmatmul.f32.gmra.mxu0 %v2465
        %v2690 = vpop.f32.mrf.mxu0
        %v2691 = vadd.f32 0.0, %v2690
        %2692 = vmatmul.f32.gmra.mxu0 %v2468
        %v2693 = vpop.f32.mrf.mxu0
        %v2694 = vadd.f32 0.0, %v2693
        %2695 = vmatmul.f32.gmra.mxu0 %v2471
        %v2696 = vpop.f32.mrf.mxu0
        %v2697 = vadd.f32 0.0, %v2696
        %2698 = vmatmul.f32.gmra.mxu0 %v2474
        %v2699 = vpop.f32.mrf.mxu0
        %v2700 = vadd.f32 0.0, %v2699
        %2701 = vmatmul.f32.gmra.mxu0 %v2477
        %v2702 = vpop.f32.mrf.mxu0
        %v2703 = vadd.f32 0.0, %v2702
        %2704 = vmatmul.f32.gmra.mxu0 %v2480
        %v2705 = vpop.f32.mrf.mxu0
        %v2706 = vadd.f32 0.0, %v2705
        %2707 = vmatmul.f32.gmra.mxu0 %v2483
        %v2708 = vpop.f32.mrf.mxu0
        %v2709 = vadd.f32 0.0, %v2708
        %2710 = vmatmul.f32.gmra.mxu0 %v2486
        %v2711 = vpop.f32.mrf.mxu0
        %v2712 = vadd.f32 0.0, %v2711
        %2713 = vmatmul.f32.gmra.mxu0 %v2489
        %v2714 = vpop.f32.mrf.mxu0
        %v2715 = vadd.f32 0.0, %v2714
        %2716 = vmatmul.f32.gmra.mxu0 %v2492
        %v2717 = vpop.f32.mrf.mxu0
        %v2718 = vadd.f32 0.0, %v2717
        %2719 = vmatmul.f32.gmra.mxu0 %v2495
        %v2720 = vpop.f32.mrf.mxu0
        %v2721 = vadd.f32 0.0, %v2720
        %2722 = vmatmul.f32.gmra.mxu0 %v2498
        %v2723 = vpop.f32.mrf.mxu0
        %v2724 = vadd.f32 0.0, %v2723
        %2725 = vmatmul.f32.gmra.mxu0 %v2501
        %v2726 = vpop.f32.mrf.mxu0
        %v2727 = vadd.f32 0.0, %v2726
        %2728 = vmatmul.f32.gmra.mxu0 %v2504
        %v2729 = vpop.f32.mrf.mxu0
        %v2730 = vadd.f32 0.0, %v2729
        %2731 = vmatmul.f32.gmra.mxu0 %v2507
        %v2732 = vpop.f32.mrf.mxu0
        %v2733 = vadd.f32 0.0, %v2732
        %2734 = vdwg.mxu0
        %v2735 = vmax.f32 %v2527, %v2533
        %v2736 = vmax.f32 %v2530, %v2536
        %v2737 = vmax.f32 %v2735, %v2539
        %v2738 = vmax.f32 %v2736, %v2542
        %v2739 = vmax.f32 %v2737, %v2545
        %v2740 = vmax.f32 %v2738, %v2548
        %v2741 = vmax.f32 %v2739, %v2551
        %v2742 = vmax.f32 %v2740, %v2554
        %v2743 = vmax.f32 %v2741, %v2557
        %v2744 = vmax.f32 %v2742, %v2560
        %v2745 = vmax.f32 %v2743, %v2563
        %v2746 = vmax.f32 %v2744, %v2566
        %v2747 = vmax.f32 %v2745, %v2569
        %v2748 = vmax.f32 %v2746, %v2572
        %v2749 = vmax.f32 %v2747, %v2575
        %v2750 = vmax.f32 %v2748, %v2578
        %v2751 = vmax.f32 %v2749, %v2581
        %v2752 = vmax.f32 %v2750, %v2584
        %v2753 = vmax.f32 %v2751, %v2587
        %v2754 = vmax.f32 %v2752, %v2590
        %v2755 = vmax.f32 %v2753, %v2593
        %v2756 = vmax.f32 %v2754, %v2596
        %v2757 = vmax.f32 %v2755, %v2599
        %v2758 = vmax.f32 %v2756, %v2602
        %v2759 = vmax.f32 %v2757, %v2605
        %v2760 = vmax.f32 %v2758, %v2608
        %v2761 = vmax.f32 %v2759, %v2611
        %v2762 = vmax.f32 %v2760, %v2614
        %v2763 = vmax.f32 %v2761, %v2617
        %v2764 = vmax.f32 %v2762, %v2620
        %v2765 = vmax.f32 %v2763, %v2764
        %v2766 = vrot.slane %v2765, 4
        %v2767 = vmax.f32 %v2765, %v2766
        %v2768 = vrot.slane %v2767, 2
        %v2769 = vmax.f32 %v2767, %v2768
        %v2770 = vrot.slane %v2769, 1
        %v2771 = vmax.f32 %v2769, %v2770
        %v2772 = vmax.f32 %v2640, %v2646
        %v2773 = vmax.f32 %v2643, %v2649
        %v2774 = vmax.f32 %v2772, %v2652
        %v2775 = vmax.f32 %v2773, %v2655
        %v2776 = vmax.f32 %v2774, %v2658
        %v2777 = vmax.f32 %v2775, %v2661
        %v2778 = vmax.f32 %v2776, %v2664
        %v2779 = vmax.f32 %v2777, %v2667
        %v2780 = vmax.f32 %v2778, %v2670
        %v2781 = vmax.f32 %v2779, %v2673
        %v2782 = vmax.f32 %v2780, %v2676
        %v2783 = vmax.f32 %v2781, %v2679
        %v2784 = vmax.f32 %v2782, %v2682
        %v2785 = vmax.f32 %v2783, %v2685
        %v2786 = vmax.f32 %v2784, %v2688
        %v2787 = vmax.f32 %v2785, %v2691
        %v2788 = vmax.f32 %v2786, %v2694
        %v2789 = vmax.f32 %v2787, %v2697
        %v2790 = vmax.f32 %v2788, %v2700
        %v2791 = vmax.f32 %v2789, %v2703
        %v2792 = vmax.f32 %v2790, %v2706
        %v2793 = vmax.f32 %v2791, %v2709
        %v2794 = vmax.f32 %v2792, %v2712
        %v2795 = vmax.f32 %v2793, %v2715
        %v2796 = vmax.f32 %v2794, %v2718
        %v2797 = vmax.f32 %v2795, %v2721
        %v2798 = vmax.f32 %v2796, %v2724
        %v2799 = vmax.f32 %v2797, %v2727
        %v2800 = vmax.f32 %v2798, %v2730
        %v2801 = vmax.f32 %v2799, %v2733
        %v2802 = vmax.f32 %v2800, %v2801
        %v2803 = vrot.slane %v2802, 4
        %v2804 = vmax.f32 %v2802, %v2803
        %v2805 = vrot.slane %v2804, 2
        %v2806 = vmax.f32 %v2804, %v2805
        %v2807 = vrot.slane %v2806, 1
        %v2808 = vmax.f32 %v2806, %v2807
        %v2809 = vsub.f32 %v2527, %v2771
        %v2810 = vsub.f32 %v2640, %v2808
        %v2811 = vsub.f32 %v2530, %v2771
        %v2812 = vsub.f32 %v2643, %v2808
        %v2813 = vsub.f32 %v2533, %v2771
        %v2814 = vsub.f32 %v2646, %v2808
        %v2815 = vsub.f32 %v2536, %v2771
        %v2816 = vsub.f32 %v2649, %v2808
        %v2817 = vsub.f32 %v2539, %v2771
        %v2818 = vsub.f32 %v2652, %v2808
        %v2819 = vsub.f32 %v2542, %v2771
        %v2820 = vsub.f32 %v2655, %v2808
        %v2821 = vsub.f32 %v2545, %v2771
        %v2822 = vsub.f32 %v2658, %v2808
        %v2823 = vsub.f32 %v2548, %v2771
        %v2824 = vsub.f32 %v2661, %v2808
        %v2825 = vsub.f32 %v2551, %v2771
        %v2826 = vsub.f32 %v2664, %v2808
        %v2827 = vsub.f32 %v2554, %v2771
        %v2828 = vsub.f32 %v2667, %v2808
        %v2829 = vsub.f32 %v2557, %v2771
        %v2830 = vsub.f32 %v2670, %v2808
        %v2831 = vsub.f32 %v2560, %v2771
        %v2832 = vsub.f32 %v2673, %v2808
        %v2833 = vsub.f32 %v2563, %v2771
        %v2834 = vsub.f32 %v2676, %v2808
        %v2835 = vsub.f32 %v2566, %v2771
        %v2836 = vsub.f32 %v2679, %v2808
        %v2837 = vsub.f32 %v2569, %v2771
        %v2838 = vsub.f32 %v2682, %v2808
        %v2839 = vsub.f32 %v2572, %v2771
        %v2840 = vsub.f32 %v2685, %v2808
        %v2841 = vsub.f32 %v2575, %v2771
        %v2842 = vsub.f32 %v2688, %v2808
        %v2843 = vsub.f32 %v2578, %v2771
        %v2844 = vsub.f32 %v2691, %v2808
        %v2845 = vsub.f32 %v2581, %v2771
        %v2846 = vsub.f32 %v2694, %v2808
        %v2847 = vsub.f32 %v2584, %v2771
        %v2848 = vsub.f32 %v2697, %v2808
        %v2849 = vsub.f32 %v2587, %v2771
        %v2850 = vsub.f32 %v2700, %v2808
        %v2851 = vsub.f32 %v2590, %v2771
        %v2852 = vsub.f32 %v2703, %v2808
        %v2853 = vsub.f32 %v2593, %v2771
        %v2854 = vsub.f32 %v2706, %v2808
        %v2855 = vsub.f32 %v2596, %v2771
        %v2856 = vsub.f32 %v2709, %v2808
        %v2857 = vsub.f32 %v2599, %v2771
        %v2858 = vsub.f32 %v2712, %v2808
        %v2859 = vsub.f32 %v2602, %v2771
        %v2860 = vsub.f32 %v2715, %v2808
        %v2861 = vsub.f32 %v2605, %v2771
        %v2862 = vsub.f32 %v2718, %v2808
        %v2863 = vsub.f32 %v2608, %v2771
        %v2864 = vsub.f32 %v2721, %v2808
        %v2865 = vsub.f32 %v2611, %v2771
        %v2866 = vsub.f32 %v2724, %v2808
        %v2867 = vsub.f32 %v2614, %v2771
        %v2868 = vsub.f32 %v2727, %v2808
        %v2869 = vsub.f32 %v2617, %v2771
        %v2870 = vsub.f32 %v2730, %v2808
        %v2871 = vsub.f32 %v2620, %v2771
        %v2872 = vsub.f32 %v2733, %v2808
        %v2873 = vmul.f32 %v2809, 1.442695
        %v2874 = vpow.pop %v2873
        %v2875 = vmul.f32 %v2810, 1.442695
        %v2876 = vpow.pop %v2875
        %v2877 = vmul.f32 %v2811, 1.442695
        %v2878 = vpow.pop %v2877
        %v2879 = vmul.f32 %v2812, 1.442695
        %v2880 = vpow.pop %v2879
        %v2881 = vmul.f32 %v2813, 1.442695
        %v2882 = vpow.pop %v2881
        %v2883 = vmul.f32 %v2814, 1.442695
        %v2884 = vpow.pop %v2883
        %v2885 = vmul.f32 %v2815, 1.442695
        %v2886 = vpow.pop %v2885
        %v2887 = vmul.f32 %v2816, 1.442695
        %v2888 = vpow.pop %v2887
        %v2889 = vmul.f32 %v2817, 1.442695
        %v2890 = vpow.pop %v2889
        %v2891 = vmul.f32 %v2818, 1.442695
        %v2892 = vpow.pop %v2891
        %v2893 = vmul.f32 %v2819, 1.442695
        %v2894 = vpow.pop %v2893
        %v2895 = vmul.f32 %v2820, 1.442695
        %v2896 = vpow.pop %v2895
        %v2897 = vmul.f32 %v2821, 1.442695
        %v2898 = vpow.pop %v2897
        %v2899 = vmul.f32 %v2822, 1.442695
        %v2900 = vpow.pop %v2899
        %v2901 = vmul.f32 %v2823, 1.442695
        %v2902 = vpow.pop %v2901
        %v2903 = vmul.f32 %v2824, 1.442695
        %v2904 = vpow.pop %v2903
        %v2905 = vmul.f32 %v2825, 1.442695
        %v2906 = vpow.pop %v2905
        %v2907 = vmul.f32 %v2826, 1.442695
        %v2908 = vpow.pop %v2907
        %v2909 = vmul.f32 %v2827, 1.442695
        %v2910 = vpow.pop %v2909
        %v2911 = vmul.f32 %v2828, 1.442695
        %v2912 = vpow.pop %v2911
        %v2913 = vmul.f32 %v2829, 1.442695
        %v2914 = vpow.pop %v2913
        %v2915 = vmul.f32 %v2830, 1.442695
        %v2916 = vpow.pop %v2915
        %v2917 = vmul.f32 %v2831, 1.442695
        %v2918 = vpow.pop %v2917
        %v2919 = vmul.f32 %v2832, 1.442695
        %v2920 = vpow.pop %v2919
        %v2921 = vmul.f32 %v2833, 1.442695
        %v2922 = vpow.pop %v2921
        %v2923 = vmul.f32 %v2834, 1.442695
        %v2924 = vpow.pop %v2923
        %v2925 = vmul.f32 %v2835, 1.442695
        %v2926 = vpow.pop %v2925
        %v2927 = vmul.f32 %v2836, 1.442695
        %v2928 = vpow.pop %v2927
        %v2929 = vmul.f32 %v2837, 1.442695
        %v2930 = vpow.pop %v2929
        %v2931 = vmul.f32 %v2838, 1.442695
        %v2932 = vpow.pop %v2931
        %v2933 = vmul.f32 %v2839, 1.442695
        %v2934 = vpow.pop %v2933
        %v2935 = vmul.f32 %v2840, 1.442695
        %v2936 = vpow.pop %v2935
        %v2937 = vmul.f32 %v2841, 1.442695
        %v2938 = vpow.pop %v2937
        %v2939 = vmul.f32 %v2842, 1.442695
        %v2940 = vpow.pop %v2939
        %v2941 = vmul.f32 %v2843, 1.442695
        %v2942 = vpow.pop %v2941
        %v2943 = vmul.f32 %v2844, 1.442695
        %v2944 = vpow.pop %v2943
        %v2945 = vmul.f32 %v2845, 1.442695
        %v2946 = vpow.pop %v2945
        %v2947 = vmul.f32 %v2846, 1.442695
        %v2948 = vpow.pop %v2947
        %v2949 = vmul.f32 %v2847, 1.442695
        %v2950 = vpow.pop %v2949
        %v2951 = vmul.f32 %v2848, 1.442695
        %v2952 = vpow.pop %v2951
        %v2953 = vmul.f32 %v2849, 1.442695
        %v2954 = vpow.pop %v2953
        %v2955 = vmul.f32 %v2850, 1.442695
        %v2956 = vpow.pop %v2955
        %v2957 = vmul.f32 %v2851, 1.442695
        %v2958 = vpow.pop %v2957
        %v2959 = vmul.f32 %v2852, 1.442695
        %v2960 = vpow.pop %v2959
        %v2961 = vmul.f32 %v2853, 1.442695
        %v2962 = vpow.pop %v2961
        %v2963 = vmul.f32 %v2854, 1.442695
        %v2964 = vpow.pop %v2963
        %v2965 = vmul.f32 %v2855, 1.442695
        %v2966 = vpow.pop %v2965
        %v2967 = vmul.f32 %v2856, 1.442695
        %v2968 = vpow.pop %v2967
        %v2969 = vmul.f32 %v2857, 1.442695
        %v2970 = vpow.pop %v2969
        %v2971 = vmul.f32 %v2858, 1.442695
        %v2972 = vpow.pop %v2971
        %v2973 = vmul.f32 %v2859, 1.442695
        %v2974 = vpow.pop %v2973
        %v2975 = vmul.f32 %v2860, 1.442695
        %v2976 = vpow.pop %v2975
        %v2977 = vmul.f32 %v2861, 1.442695
        %v2978 = vpow.pop %v2977
        %v2979 = vmul.f32 %v2862, 1.442695
        %v2980 = vpow.pop %v2979
        %v2981 = vmul.f32 %v2863, 1.442695
        %v2982 = vpow.pop %v2981
        %v2983 = vmul.f32 %v2864, 1.442695
        %v2984 = vpow.pop %v2983
        %v2985 = vmul.f32 %v2865, 1.442695
        %v2986 = vpow.pop %v2985
        %v2987 = vmul.f32 %v2866, 1.442695
        %v2988 = vpow.pop %v2987
        %v2989 = vmul.f32 %v2867, 1.442695
        %v2990 = vpow.pop %v2989
        %v2991 = vmul.f32 %v2868, 1.442695
        %v2992 = vpow.pop %v2991
        %v2993 = vmul.f32 %v2869, 1.442695
        %v2994 = vpow.pop %v2993
        %v2995 = vmul.f32 %v2870, 1.442695
        %v2996 = vpow.pop %v2995
        %v2997 = vmul.f32 %v2871, 1.442695
        %v2998 = vpow.pop %v2997
        %v2999 = vmul.f32 %v2872, 1.442695
        %v3000 = vpow.pop %v2999
        %v3001 = vadd.f32 %v2874, %v2878
        %v3002 = vadd.f32 %v3001, %v2882
        %v3003 = vadd.f32 %v3002, %v2886
        %v3004 = vadd.f32 %v3003, %v2890
        %v3005 = vadd.f32 %v3004, %v2894
        %v3006 = vadd.f32 %v3005, %v2898
        %v3007 = vadd.f32 %v3006, %v2902
        %v3008 = vadd.f32 %v3007, %v2906
        %v3009 = vadd.f32 %v3008, %v2910
        %v3010 = vadd.f32 %v3009, %v2914
        %v3011 = vadd.f32 %v3010, %v2918
        %v3012 = vadd.f32 %v3011, %v2922
        %v3013 = vadd.f32 %v3012, %v2926
        %v3014 = vadd.f32 %v3013, %v2930
        %v3015 = vadd.f32 %v3014, %v2934
        %v3016 = vadd.f32 %v3015, %v2938
        %v3017 = vadd.f32 %v3016, %v2942
        %v3018 = vadd.f32 %v3017, %v2946
        %v3019 = vadd.f32 %v3018, %v2950
        %v3020 = vadd.f32 %v3019, %v2954
        %v3021 = vadd.f32 %v3020, %v2958
        %v3022 = vadd.f32 %v3021, %v2962
        %v3023 = vadd.f32 %v3022, %v2966
        %v3024 = vadd.f32 %v3023, %v2970
        %v3025 = vadd.f32 %v3024, %v2974
        %v3026 = vadd.f32 %v3025, %v2978
        %v3027 = vadd.f32 %v3026, %v2982
        %v3028 = vadd.f32 %v3027, %v2986
        %v3029 = vadd.f32 %v3028, %v2990
        %v3030 = vadd.f32 %v3029, %v2994
        %v3031 = vadd.f32 %v3030, %v2998
        %v3032 = vrot.slane %v3031, 4
        %v3033 = vadd.f32 %v3031, %v3032
        %v3034 = vrot.slane %v3033, 2
        %v3035 = vadd.f32 %v3033, %v3034
        %v3036 = vrot.slane %v3035, 1
        %v3037 = vadd.f32 %v3035, %v3036
        %v3038 = vadd.f32 %v2876, %v2880
        %v3039 = vadd.f32 %v3038, %v2884
        %v3040 = vadd.f32 %v3039, %v2888
        %v3041 = vadd.f32 %v3040, %v2892
        %v3042 = vadd.f32 %v3041, %v2896
        %v3043 = vadd.f32 %v3042, %v2900
        %v3044 = vadd.f32 %v3043, %v2904
        %v3045 = vadd.f32 %v3044, %v2908
        %v3046 = vadd.f32 %v3045, %v2912
        %v3047 = vadd.f32 %v3046, %v2916
        %v3048 = vadd.f32 %v3047, %v2920
        %v3049 = vadd.f32 %v3048, %v2924
        %v3050 = vadd.f32 %v3049, %v2928
        %v3051 = vadd.f32 %v3050, %v2932
        %v3052 = vadd.f32 %v3051, %v2936
        %v3053 = vadd.f32 %v3052, %v2940
        %v3054 = vadd.f32 %v3053, %v2944
        %v3055 = vadd.f32 %v3054, %v2948
        %v3056 = vadd.f32 %v3055, %v2952
        %v3057 = vadd.f32 %v3056, %v2956
        %v3058 = vadd.f32 %v3057, %v2960
        %v3059 = vadd.f32 %v3058, %v2964
        %v3060 = vadd.f32 %v3059, %v2968
        %v3061 = vadd.f32 %v3060, %v2972
        %v3062 = vadd.f32 %v3061, %v2976
        %v3063 = vadd.f32 %v3062, %v2980
        %v3064 = vadd.f32 %v3063, %v2984
        %v3065 = vadd.f32 %v3064, %v2988
        %v3066 = vadd.f32 %v3065, %v2992
        %v3067 = vadd.f32 %v3066, %v2996
        %v3068 = vadd.f32 %v3067, %v3000
        %v3069 = vrot.slane %v3068, 4
        %v3070 = vadd.f32 %v3068, %v3069
        %v3071 = vrot.slane %v3070, 2
        %v3072 = vadd.f32 %v3070, %v3071
        %v3073 = vrot.slane %v3072, 1
        %v3074 = vadd.f32 %v3072, %v3073
        %3075 = vmatpush.msra.mxu0 %v2934
        %3076 = vmatpush.msra.mxu0 %v2930
        %3077 = vmatpush.msra.mxu0 %v2926
        %3078 = vmatpush.msra.mxu0 %v2922
        %3079 = vmatpush.msra.mxu0 %v2918
        %3080 = vmatpush.msra.mxu0 %v2914
        %3081 = vmatpush.msra.mxu0 %v2910
        %3082 = vmatpush.msra.mxu0 %v2906
        %3083 = vmatpush.msra.mxu0 %v2902
        %3084 = vmatpush.msra.mxu0 %v2898
        %3085 = vmatpush.msra.mxu0 %v2894
        %3086 = vmatpush.msra.mxu0 %v2890
        %3087 = vmatpush.msra.mxu0 %v2886
        %3088 = vmatpush.msra.mxu0 %v2882
        %3089 = vmatpush.msra.mxu0 %v2878
        %3090 = vmatpush.msra.mxu0 %v2874
        %3091 = vmatmul.f32.gmra.mxu0 %v2347
        %v3092 = vpop.f32.mrf.mxu0
        %v3093 = vadd.f32 0.0, %v3092
        %3094 = vdwg.mxu0
        %3095 = vmatpush.msra.mxu0 %v2998
        %3096 = vmatpush.msra.mxu0 %v2994
        %3097 = vmatpush.msra.mxu0 %v2990
        %3098 = vmatpush.msra.mxu0 %v2986
        %3099 = vmatpush.msra.mxu0 %v2982
        %3100 = vmatpush.msra.mxu0 %v2978
        %3101 = vmatpush.msra.mxu0 %v2974
        %3102 = vmatpush.msra.mxu0 %v2970
        %3103 = vmatpush.msra.mxu0 %v2966
        %3104 = vmatpush.msra.mxu0 %v2962
        %3105 = vmatpush.msra.mxu0 %v2958
        %3106 = vmatpush.msra.mxu0 %v2954
        %3107 = vmatpush.msra.mxu0 %v2950
        %3108 = vmatpush.msra.mxu0 %v2946
        %3109 = vmatpush.msra.mxu0 %v2942
        %3110 = vmatpush.msra.mxu0 %v2938
        %3111 = vmatmul.f32.gmra.mxu0 %v2348
        %v3112 = vpop.f32.mrf.mxu0
        %v3113 = vadd.f32 %v3093, %v3112
        %3114 = vdwg.mxu0
        %3115 = vmatpush.msra.mxu0 %v2936
        %3116 = vmatpush.msra.mxu0 %v2932
        %3117 = vmatpush.msra.mxu0 %v2928
        %3118 = vmatpush.msra.mxu0 %v2924
        %3119 = vmatpush.msra.mxu0 %v2920
        %3120 = vmatpush.msra.mxu0 %v2916
        %3121 = vmatpush.msra.mxu0 %v2912
        %3122 = vmatpush.msra.mxu0 %v2908
        %3123 = vmatpush.msra.mxu0 %v2904
        %3124 = vmatpush.msra.mxu0 %v2900
        %3125 = vmatpush.msra.mxu0 %v2896
        %3126 = vmatpush.msra.mxu0 %v2892
        %3127 = vmatpush.msra.mxu0 %v2888
        %3128 = vmatpush.msra.mxu0 %v2884
        %3129 = vmatpush.msra.mxu0 %v2880
        %3130 = vmatpush.msra.mxu0 %v2876
        %3131 = vmatmul.f32.gmra.mxu0 %v2347
        %v3132 = vpop.f32.mrf.mxu0
        %v3133 = vadd.f32 0.0, %v3132
        %3134 = vdwg.mxu0
        %3135 = vmatpush.msra.mxu0 %v3000
        %3136 = vmatpush.msra.mxu0 %v2996
        %3137 = vmatpush.msra.mxu0 %v2992
        %3138 = vmatpush.msra.mxu0 %v2988
        %3139 = vmatpush.msra.mxu0 %v2984
        %3140 = vmatpush.msra.mxu0 %v2980
        %3141 = vmatpush.msra.mxu0 %v2976
        %3142 = vmatpush.msra.mxu0 %v2972
        %3143 = vmatpush.msra.mxu0 %v2968
        %3144 = vmatpush.msra.mxu0 %v2964
        %3145 = vmatpush.msra.mxu0 %v2960
        %3146 = vmatpush.msra.mxu0 %v2956
        %3147 = vmatpush.msra.mxu0 %v2952
        %3148 = vmatpush.msra.mxu0 %v2948
        %3149 = vmatpush.msra.mxu0 %v2944
        %3150 = vmatpush.msra.mxu0 %v2940
        %3151 = vmatmul.f32.gmra.mxu0 %v2348
        %v3152 = vpop.f32.mrf.mxu0
        %v3153 = vadd.f32 %v3133, %v3152
        %3154 = vdwg.mxu0
        %v3155 = vrcp.pop %v3037
        %v3156 = vmul.f32 %v3037, %v3155
        %v3157 = vsub.f32 1.0, %v3156
        %v3158 = vmul.f32 %v3155, %v3157
        %v3159 = vadd.f32 %v3155, %v3158
        %vm3160 = vweird.f32 %v3037
        %vm3161 = vweird.f32 %v3155
        %vm3162 = vmor %vm3160, %vm3161
        %v3163 = vsel %vm3162, %v3155, %v3159
        %v3164 = vand.u32 2147483647, %v3037
        %vm3165 = vcmp.eq.f32.partialorder %v3164, 8.507059e+37
        %v3166 = vand.u32 %v3037, 2147483648
        %v3167 = vor.u32 1.1754944e-38, %v3166
        %v3168 = vsel %vm3165, %v3167, %v3163
        %v3169 = vmul.f32 1.0, %v3168
        %v3170 = vrcp.pop %v3074
        %v3171 = vmul.f32 %v3074, %v3170
        %v3172 = vsub.f32 1.0, %v3171
        %v3173 = vmul.f32 %v3170, %v3172
        %v3174 = vadd.f32 %v3170, %v3173
        %vm3175 = vweird.f32 %v3074
        %vm3176 = vweird.f32 %v3170
        %vm3177 = vmor %vm3175, %vm3176
        %v3178 = vsel %vm3177, %v3170, %v3174
        %v3179 = vand.u32 2147483647, %v3074
        %vm3180 = vcmp.eq.f32.partialorder %v3179, 8.507059e+37
        %v3181 = vand.u32 %v3074, 2147483648
        %v3182 = vor.u32 1.1754944e-38, %v3181
        %v3183 = vsel %vm3180, %v3182, %v3178
        %v3184 = vmul.f32 1.0, %v3183
        %v3185 = vmul.f32 %v3113, %v3169
        %v3186 = vmul.f32 %v3153, %v3184
        %3187 = vst [vmem:[%s312 + $0x20] sm:$0xff] %v3185
        %3188 = vst [vmem:[%s312 + $0x28] sm:$0xff] %v3186
        %v3189 = vld [vmem:[%s649 + $0x30] sm:$0xff]
        %v3190 = vld [vmem:[%s649 + $0x38] sm:$0xff]
        %v3191 = vld [vmem:[#allocation3 + $0x30] sm:$0xff]
        %v3192 = vld [vmem:[#allocation3 + $0x38] sm:$0xff]
        %v3193 = vld [vmem:[#allocation4 + $0x30] sm:$0xff]
        %v3194 = vld [vmem:[#allocation4 + $0x38] sm:$0xff]
        %3195 = vxpose.xlu0.b32.start [1/16] %v3191, 128
        %3196 = vxpose.xlu0.b32.cont [2/16] 0.0, 128
        %3197 = vxpose.xlu0.b32.cont [3/16] 0.0, 128
        %3198 = vxpose.xlu0.b32.cont [4/16] 0.0, 128
        %3199 = vxpose.xlu0.b32.cont [5/16] 0.0, 128
        %3200 = vxpose.xlu0.b32.cont [6/16] 0.0, 128
        %3201 = vxpose.xlu0.b32.cont [7/16] 0.0, 128
        %3202 = vxpose.xlu0.b32.cont [8/16] 0.0, 128
        %3203 = vxpose.xlu0.b32.cont [9/16] 0.0, 128
        %3204 = vxpose.xlu0.b32.cont [10/16] 0.0, 128
        %3205 = vxpose.xlu0.b32.cont [11/16] 0.0, 128
        %3206 = vxpose.xlu0.b32.cont [12/16] 0.0, 128
        %3207 = vxpose.xlu0.b32.cont [13/16] 0.0, 128
        %3208 = vxpose.xlu0.b32.cont [14/16] 0.0, 128
        %3209 = vxpose.xlu0.b32.cont [15/16] 0.0, 128
        %3210 = vxpose.xlu0.b32.end [16/16] 0.0, 128
        %v3211 = vpop.trf.xlu0
        %v3212 = vpop.trf.xlu0
        %v3213 = vpop.trf.xlu0
        %v3214 = vpop.trf.xlu0
        %v3215 = vpop.trf.xlu0
        %v3216 = vpop.trf.xlu0
        %v3217 = vpop.trf.xlu0
        %v3218 = vpop.trf.xlu0
        %v3219 = vpop.trf.xlu0
        %v3220 = vpop.trf.xlu0
        %v3221 = vpop.trf.xlu0
        %v3222 = vpop.trf.xlu0
        %v3223 = vpop.trf.xlu0
        %v3224 = vpop.trf.xlu0
        %v3225 = vpop.trf.xlu0
        %v3226 = vpop.trf.xlu0
        %3227 = vxpose.xlu0.b32.start [1/16] %v3192, 128
        %3228 = vxpose.xlu0.b32.cont [2/16] 0.0, 128
        %3229 = vxpose.xlu0.b32.cont [3/16] 0.0, 128
        %3230 = vxpose.xlu0.b32.cont [4/16] 0.0, 128
        %3231 = vxpose.xlu0.b32.cont [5/16] 0.0, 128
        %3232 = vxpose.xlu0.b32.cont [6/16] 0.0, 128
        %3233 = vxpose.xlu0.b32.cont [7/16] 0.0, 128
        %3234 = vxpose.xlu0.b32.cont [8/16] 0.0, 128
        %3235 = vxpose.xlu0.b32.cont [9/16] 0.0, 128
        %3236 = vxpose.xlu0.b32.cont [10/16] 0.0, 128
        %3237 = vxpose.xlu0.b32.cont [11/16] 0.0, 128
        %3238 = vxpose.xlu0.b32.cont [12/16] 0.0, 128
        %3239 = vxpose.xlu0.b32.cont [13/16] 0.0, 128
        %3240 = vxpose.xlu0.b32.cont [14/16] 0.0, 128
        %3241 = vxpose.xlu0.b32.cont [15/16] 0.0, 128
        %3242 = vxpose.xlu0.b32.end [16/16] 0.0, 128
        %v3243 = vpop.trf.xlu0
        %v3244 = vpop.trf.xlu0
        %v3245 = vpop.trf.xlu0
        %v3246 = vpop.trf.xlu0
        %v3247 = vpop.trf.xlu0
        %v3248 = vpop.trf.xlu0
        %v3249 = vpop.trf.xlu0
        %v3250 = vpop.trf.xlu0
        %v3251 = vpop.trf.xlu0
        %v3252 = vpop.trf.xlu0
        %v3253 = vpop.trf.xlu0
        %v3254 = vpop.trf.xlu0
        %v3255 = vpop.trf.xlu0
        %v3256 = vpop.trf.xlu0
        %v3257 = vpop.trf.xlu0
        %v3258 = vpop.trf.xlu0
        %v3260 = vsel %vm720, %v3211, 0
        %v3263 = vsel %vm720, %v3212, 0
        %v3266 = vsel %vm720, %v3213, 0
        %v3269 = vsel %vm720, %v3214, 0
        %v3272 = vsel %vm720, %v3215, 0
        %v3275 = vsel %vm720, %v3216, 0
        %v3278 = vsel %vm720, %v3217, 0
        %v3281 = vsel %vm720, %v3218, 0
        %v3284 = vsel %vm720, %v3219, 0
        %v3287 = vsel %vm720, %v3220, 0
        %v3290 = vsel %vm720, %v3221, 0
        %v3293 = vsel %vm720, %v3222, 0
        %v3296 = vsel %vm720, %v3223, 0
        %v3299 = vsel %vm720, %v3224, 0
        %v3302 = vsel %vm720, %v3225, 0
        %v3305 = vsel %vm720, %v3226, 0
        %v3308 = vsel %vm720, %v3243, 0
        %v3311 = vsel %vm720, %v3244, 0
        %v3314 = vsel %vm720, %v3245, 0
        %v3317 = vsel %vm720, %v3246, 0
        %v3320 = vsel %vm720, %v3247, 0
        %v3323 = vsel %vm720, %v3248, 0
        %v3326 = vsel %vm720, %v3249, 0
        %v3329 = vsel %vm720, %v3250, 0
        %v3332 = vsel %vm720, %v3251, 0
        %v3335 = vsel %vm720, %v3252, 0
        %v3338 = vsel %vm720, %v3253, 0
        %v3341 = vsel %vm720, %v3254, 0
        %v3344 = vsel %vm720, %v3255, 0
        %v3347 = vsel %vm720, %v3256, 0
        %v3350 = vsel %vm720, %v3257, 0
        %v3353 = vsel %vm720, %v3258, 0
        %3355 = vmatpush.msra.mxu0 0.0
        %3356 = vmatpush.msra.mxu0 0.0
        %3357 = vmatpush.msra.mxu0 0.0
        %3358 = vmatpush.msra.mxu0 0.0
        %3359 = vmatpush.msra.mxu0 0.0
        %3360 = vmatpush.msra.mxu0 0.0
        %3361 = vmatpush.msra.mxu0 0.0
        %3362 = vmatpush.msra.mxu0 0.0
        %3363 = vmatpush.msra.mxu0 0.0
        %3364 = vmatpush.msra.mxu0 0.0
        %3365 = vmatpush.msra.mxu0 0.0
        %3366 = vmatpush.msra.mxu0 0.0
        %3367 = vmatpush.msra.mxu0 0.0
        %3368 = vmatpush.msra.mxu0 0.0
        %3369 = vmatpush.msra.mxu0 0.0
        %3370 = vmatpush.msra.mxu0 %v3189
        %3371 = vmatmul.f32.gmra.mxu0 %v3260
        %v3372 = vpop.f32.mrf.mxu0
        %v3373 = vadd.f32 0.0, %v3372
        %3374 = vmatmul.f32.gmra.mxu0 %v3263
        %v3375 = vpop.f32.mrf.mxu0
        %v3376 = vadd.f32 0.0, %v3375
        %3377 = vmatmul.f32.gmra.mxu0 %v3266
        %v3378 = vpop.f32.mrf.mxu0
        %v3379 = vadd.f32 0.0, %v3378
        %3380 = vmatmul.f32.gmra.mxu0 %v3269
        %v3381 = vpop.f32.mrf.mxu0
        %v3382 = vadd.f32 0.0, %v3381
        %3383 = vmatmul.f32.gmra.mxu0 %v3272
        %v3384 = vpop.f32.mrf.mxu0
        %v3385 = vadd.f32 0.0, %v3384
        %3386 = vmatmul.f32.gmra.mxu0 %v3275
        %v3387 = vpop.f32.mrf.mxu0
        %v3388 = vadd.f32 0.0, %v3387
        %3389 = vmatmul.f32.gmra.mxu0 %v3278
        %v3390 = vpop.f32.mrf.mxu0
        %v3391 = vadd.f32 0.0, %v3390
        %3392 = vmatmul.f32.gmra.mxu0 %v3281
        %v3393 = vpop.f32.mrf.mxu0
        %v3394 = vadd.f32 0.0, %v3393
        %3395 = vmatmul.f32.gmra.mxu0 %v3284
        %v3396 = vpop.f32.mrf.mxu0
        %v3397 = vadd.f32 0.0, %v3396
        %3398 = vmatmul.f32.gmra.mxu0 %v3287
        %v3399 = vpop.f32.mrf.mxu0
        %v3400 = vadd.f32 0.0, %v3399
        %3401 = vmatmul.f32.gmra.mxu0 %v3290
        %v3402 = vpop.f32.mrf.mxu0
        %v3403 = vadd.f32 0.0, %v3402
        %3404 = vmatmul.f32.gmra.mxu0 %v3293
        %v3405 = vpop.f32.mrf.mxu0
        %v3406 = vadd.f32 0.0, %v3405
        %3407 = vmatmul.f32.gmra.mxu0 %v3296
        %v3408 = vpop.f32.mrf.mxu0
        %v3409 = vadd.f32 0.0, %v3408
        %3410 = vmatmul.f32.gmra.mxu0 %v3299
        %v3411 = vpop.f32.mrf.mxu0
        %v3412 = vadd.f32 0.0, %v3411
        %3413 = vmatmul.f32.gmra.mxu0 %v3302
        %v3414 = vpop.f32.mrf.mxu0
        %v3415 = vadd.f32 0.0, %v3414
        %3416 = vmatmul.f32.gmra.mxu0 %v3305
        %v3417 = vpop.f32.mrf.mxu0
        %v3418 = vadd.f32 0.0, %v3417
        %3419 = vmatmul.f32.gmra.mxu0 %v3308
        %v3420 = vpop.f32.mrf.mxu0
        %v3421 = vadd.f32 0.0, %v3420
        %3422 = vmatmul.f32.gmra.mxu0 %v3311
        %v3423 = vpop.f32.mrf.mxu0
        %v3424 = vadd.f32 0.0, %v3423
        %3425 = vmatmul.f32.gmra.mxu0 %v3314
        %v3426 = vpop.f32.mrf.mxu0
        %v3427 = vadd.f32 0.0, %v3426
        %3428 = vmatmul.f32.gmra.mxu0 %v3317
        %v3429 = vpop.f32.mrf.mxu0
        %v3430 = vadd.f32 0.0, %v3429
        %3431 = vmatmul.f32.gmra.mxu0 %v3320
        %v3432 = vpop.f32.mrf.mxu0
        %v3433 = vadd.f32 0.0, %v3432
        %3434 = vmatmul.f32.gmra.mxu0 %v3323
        %v3435 = vpop.f32.mrf.mxu0
        %v3436 = vadd.f32 0.0, %v3435
        %3437 = vmatmul.f32.gmra.mxu0 %v3326
        %v3438 = vpop.f32.mrf.mxu0
        %v3439 = vadd.f32 0.0, %v3438
        %3440 = vmatmul.f32.gmra.mxu0 %v3329
        %v3441 = vpop.f32.mrf.mxu0
        %v3442 = vadd.f32 0.0, %v3441
        %3443 = vmatmul.f32.gmra.mxu0 %v3332
        %v3444 = vpop.f32.mrf.mxu0
        %v3445 = vadd.f32 0.0, %v3444
        %3446 = vmatmul.f32.gmra.mxu0 %v3335
        %v3447 = vpop.f32.mrf.mxu0
        %v3448 = vadd.f32 0.0, %v3447
        %3449 = vmatmul.f32.gmra.mxu0 %v3338
        %v3450 = vpop.f32.mrf.mxu0
        %v3451 = vadd.f32 0.0, %v3450
        %3452 = vmatmul.f32.gmra.mxu0 %v3341
        %v3453 = vpop.f32.mrf.mxu0
        %v3454 = vadd.f32 0.0, %v3453
        %3455 = vmatmul.f32.gmra.mxu0 %v3344
        %v3456 = vpop.f32.mrf.mxu0
        %v3457 = vadd.f32 0.0, %v3456
        %3458 = vmatmul.f32.gmra.mxu0 %v3347
        %v3459 = vpop.f32.mrf.mxu0
        %v3460 = vadd.f32 0.0, %v3459
        %3461 = vmatmul.f32.gmra.mxu0 %v3350
        %v3462 = vpop.f32.mrf.mxu0
        %v3463 = vadd.f32 0.0, %v3462
        %3464 = vmatmul.f32.gmra.mxu0 %v3353
        %v3465 = vpop.f32.mrf.mxu0
        %v3466 = vadd.f32 0.0, %v3465
        %3467 = vdwg.mxu0
        %3468 = vmatpush.msra.mxu0 0.0
        %3469 = vmatpush.msra.mxu0 0.0
        %3470 = vmatpush.msra.mxu0 0.0
        %3471 = vmatpush.msra.mxu0 0.0
        %3472 = vmatpush.msra.mxu0 0.0
        %3473 = vmatpush.msra.mxu0 0.0
        %3474 = vmatpush.msra.mxu0 0.0
        %3475 = vmatpush.msra.mxu0 0.0
        %3476 = vmatpush.msra.mxu0 0.0
        %3477 = vmatpush.msra.mxu0 0.0
        %3478 = vmatpush.msra.mxu0 0.0
        %3479 = vmatpush.msra.mxu0 0.0
        %3480 = vmatpush.msra.mxu0 0.0
        %3481 = vmatpush.msra.mxu0 0.0
        %3482 = vmatpush.msra.mxu0 0.0
        %3483 = vmatpush.msra.mxu0 %v3190
        %3484 = vmatmul.f32.gmra.mxu0 %v3260
        %v3485 = vpop.f32.mrf.mxu0
        %v3486 = vadd.f32 0.0, %v3485
        %3487 = vmatmul.f32.gmra.mxu0 %v3263
        %v3488 = vpop.f32.mrf.mxu0
        %v3489 = vadd.f32 0.0, %v3488
        %3490 = vmatmul.f32.gmra.mxu0 %v3266
        %v3491 = vpop.f32.mrf.mxu0
        %v3492 = vadd.f32 0.0, %v3491
        %3493 = vmatmul.f32.gmra.mxu0 %v3269
        %v3494 = vpop.f32.mrf.mxu0
        %v3495 = vadd.f32 0.0, %v3494
        %3496 = vmatmul.f32.gmra.mxu0 %v3272
        %v3497 = vpop.f32.mrf.mxu0
        %v3498 = vadd.f32 0.0, %v3497
        %3499 = vmatmul.f32.gmra.mxu0 %v3275
        %v3500 = vpop.f32.mrf.mxu0
        %v3501 = vadd.f32 0.0, %v3500
        %3502 = vmatmul.f32.gmra.mxu0 %v3278
        %v3503 = vpop.f32.mrf.mxu0
        %v3504 = vadd.f32 0.0, %v3503
        %3505 = vmatmul.f32.gmra.mxu0 %v3281
        %v3506 = vpop.f32.mrf.mxu0
        %v3507 = vadd.f32 0.0, %v3506
        %3508 = vmatmul.f32.gmra.mxu0 %v3284
        %v3509 = vpop.f32.mrf.mxu0
        %v3510 = vadd.f32 0.0, %v3509
        %3511 = vmatmul.f32.gmra.mxu0 %v3287
        %v3512 = vpop.f32.mrf.mxu0
        %v3513 = vadd.f32 0.0, %v3512
        %3514 = vmatmul.f32.gmra.mxu0 %v3290
        %v3515 = vpop.f32.mrf.mxu0
        %v3516 = vadd.f32 0.0, %v3515
        %3517 = vmatmul.f32.gmra.mxu0 %v3293
        %v3518 = vpop.f32.mrf.mxu0
        %v3519 = vadd.f32 0.0, %v3518
        %3520 = vmatmul.f32.gmra.mxu0 %v3296
        %v3521 = vpop.f32.mrf.mxu0
        %v3522 = vadd.f32 0.0, %v3521
        %3523 = vmatmul.f32.gmra.mxu0 %v3299
        %v3524 = vpop.f32.mrf.mxu0
        %v3525 = vadd.f32 0.0, %v3524
        %3526 = vmatmul.f32.gmra.mxu0 %v3302
        %v3527 = vpop.f32.mrf.mxu0
        %v3528 = vadd.f32 0.0, %v3527
        %3529 = vmatmul.f32.gmra.mxu0 %v3305
        %v3530 = vpop.f32.mrf.mxu0
        %v3531 = vadd.f32 0.0, %v3530
        %3532 = vmatmul.f32.gmra.mxu0 %v3308
        %v3533 = vpop.f32.mrf.mxu0
        %v3534 = vadd.f32 0.0, %v3533
        %3535 = vmatmul.f32.gmra.mxu0 %v3311
        %v3536 = vpop.f32.mrf.mxu0
        %v3537 = vadd.f32 0.0, %v3536
        %3538 = vmatmul.f32.gmra.mxu0 %v3314
        %v3539 = vpop.f32.mrf.mxu0
        %v3540 = vadd.f32 0.0, %v3539
        %3541 = vmatmul.f32.gmra.mxu0 %v3317
        %v3542 = vpop.f32.mrf.mxu0
        %v3543 = vadd.f32 0.0, %v3542
        %3544 = vmatmul.f32.gmra.mxu0 %v3320
        %v3545 = vpop.f32.mrf.mxu0
        %v3546 = vadd.f32 0.0, %v3545
        %3547 = vmatmul.f32.gmra.mxu0 %v3323
        %v3548 = vpop.f32.mrf.mxu0
        %v3549 = vadd.f32 0.0, %v3548
        %3550 = vmatmul.f32.gmra.mxu0 %v3326
        %v3551 = vpop.f32.mrf.mxu0
        %v3552 = vadd.f32 0.0, %v3551
        %3553 = vmatmul.f32.gmra.mxu0 %v3329
        %v3554 = vpop.f32.mrf.mxu0
        %v3555 = vadd.f32 0.0, %v3554
        %3556 = vmatmul.f32.gmra.mxu0 %v3332
        %v3557 = vpop.f32.mrf.mxu0
        %v3558 = vadd.f32 0.0, %v3557
        %3559 = vmatmul.f32.gmra.mxu0 %v3335
        %v3560 = vpop.f32.mrf.mxu0
        %v3561 = vadd.f32 0.0, %v3560
        %3562 = vmatmul.f32.gmra.mxu0 %v3338
        %v3563 = vpop.f32.mrf.mxu0
        %v3564 = vadd.f32 0.0, %v3563
        %3565 = vmatmul.f32.gmra.mxu0 %v3341
        %v3566 = vpop.f32.mrf.mxu0
        %v3567 = vadd.f32 0.0, %v3566
        %3568 = vmatmul.f32.gmra.mxu0 %v3344
        %v3569 = vpop.f32.mrf.mxu0
        %v3570 = vadd.f32 0.0, %v3569
        %3571 = vmatmul.f32.gmra.mxu0 %v3347
        %v3572 = vpop.f32.mrf.mxu0
        %v3573 = vadd.f32 0.0, %v3572
        %3574 = vmatmul.f32.gmra.mxu0 %v3350
        %v3575 = vpop.f32.mrf.mxu0
        %v3576 = vadd.f32 0.0, %v3575
        %3577 = vmatmul.f32.gmra.mxu0 %v3353
        %v3578 = vpop.f32.mrf.mxu0
        %v3579 = vadd.f32 0.0, %v3578
        %3580 = vdwg.mxu0
        %v3581 = vmax.f32 %v3373, %v3379
        %v3582 = vmax.f32 %v3376, %v3382
        %v3583 = vmax.f32 %v3581, %v3385
        %v3584 = vmax.f32 %v3582, %v3388
        %v3585 = vmax.f32 %v3583, %v3391
        %v3586 = vmax.f32 %v3584, %v3394
        %v3587 = vmax.f32 %v3585, %v3397
        %v3588 = vmax.f32 %v3586, %v3400
        %v3589 = vmax.f32 %v3587, %v3403
        %v3590 = vmax.f32 %v3588, %v3406
        %v3591 = vmax.f32 %v3589, %v3409
        %v3592 = vmax.f32 %v3590, %v3412
        %v3593 = vmax.f32 %v3591, %v3415
        %v3594 = vmax.f32 %v3592, %v3418
        %v3595 = vmax.f32 %v3593, %v3421
        %v3596 = vmax.f32 %v3594, %v3424
        %v3597 = vmax.f32 %v3595, %v3427
        %v3598 = vmax.f32 %v3596, %v3430
        %v3599 = vmax.f32 %v3597, %v3433
        %v3600 = vmax.f32 %v3598, %v3436
        %v3601 = vmax.f32 %v3599, %v3439
        %v3602 = vmax.f32 %v3600, %v3442
        %v3603 = vmax.f32 %v3601, %v3445
        %v3604 = vmax.f32 %v3602, %v3448
        %v3605 = vmax.f32 %v3603, %v3451
        %v3606 = vmax.f32 %v3604, %v3454
        %v3607 = vmax.f32 %v3605, %v3457
        %v3608 = vmax.f32 %v3606, %v3460
        %v3609 = vmax.f32 %v3607, %v3463
        %v3610 = vmax.f32 %v3608, %v3466
        %v3611 = vmax.f32 %v3609, %v3610
        %v3612 = vrot.slane %v3611, 4
        %v3613 = vmax.f32 %v3611, %v3612
        %v3614 = vrot.slane %v3613, 2
        %v3615 = vmax.f32 %v3613, %v3614
        %v3616 = vrot.slane %v3615, 1
        %v3617 = vmax.f32 %v3615, %v3616
        %v3618 = vmax.f32 %v3486, %v3492
        %v3619 = vmax.f32 %v3489, %v3495
        %v3620 = vmax.f32 %v3618, %v3498
        %v3621 = vmax.f32 %v3619, %v3501
        %v3622 = vmax.f32 %v3620, %v3504
        %v3623 = vmax.f32 %v3621, %v3507
        %v3624 = vmax.f32 %v3622, %v3510
        %v3625 = vmax.f32 %v3623, %v3513
        %v3626 = vmax.f32 %v3624, %v3516
        %v3627 = vmax.f32 %v3625, %v3519
        %v3628 = vmax.f32 %v3626, %v3522
        %v3629 = vmax.f32 %v3627, %v3525
        %v3630 = vmax.f32 %v3628, %v3528
        %v3631 = vmax.f32 %v3629, %v3531
        %v3632 = vmax.f32 %v3630, %v3534
        %v3633 = vmax.f32 %v3631, %v3537
        %v3634 = vmax.f32 %v3632, %v3540
        %v3635 = vmax.f32 %v3633, %v3543
        %v3636 = vmax.f32 %v3634, %v3546
        %v3637 = vmax.f32 %v3635, %v3549
        %v3638 = vmax.f32 %v3636, %v3552
        %v3639 = vmax.f32 %v3637, %v3555
        %v3640 = vmax.f32 %v3638, %v3558
        %v3641 = vmax.f32 %v3639, %v3561
        %v3642 = vmax.f32 %v3640, %v3564
        %v3643 = vmax.f32 %v3641, %v3567
        %v3644 = vmax.f32 %v3642, %v3570
        %v3645 = vmax.f32 %v3643, %v3573
        %v3646 = vmax.f32 %v3644, %v3576
        %v3647 = vmax.f32 %v3645, %v3579
        %v3648 = vmax.f32 %v3646, %v3647
        %v3649 = vrot.slane %v3648, 4
        %v3650 = vmax.f32 %v3648, %v3649
        %v3651 = vrot.slane %v3650, 2
        %v3652 = vmax.f32 %v3650, %v3651
        %v3653 = vrot.slane %v3652, 1
        %v3654 = vmax.f32 %v3652, %v3653
        %v3655 = vsub.f32 %v3373, %v3617
        %v3656 = vsub.f32 %v3486, %v3654
        %v3657 = vsub.f32 %v3376, %v3617
        %v3658 = vsub.f32 %v3489, %v3654
        %v3659 = vsub.f32 %v3379, %v3617
        %v3660 = vsub.f32 %v3492, %v3654
        %v3661 = vsub.f32 %v3382, %v3617
        %v3662 = vsub.f32 %v3495, %v3654
        %v3663 = vsub.f32 %v3385, %v3617
        %v3664 = vsub.f32 %v3498, %v3654
        %v3665 = vsub.f32 %v3388, %v3617
        %v3666 = vsub.f32 %v3501, %v3654
        %v3667 = vsub.f32 %v3391, %v3617
        %v3668 = vsub.f32 %v3504, %v3654
        %v3669 = vsub.f32 %v3394, %v3617
        %v3670 = vsub.f32 %v3507, %v3654
        %v3671 = vsub.f32 %v3397, %v3617
        %v3672 = vsub.f32 %v3510, %v3654
        %v3673 = vsub.f32 %v3400, %v3617
        %v3674 = vsub.f32 %v3513, %v3654
        %v3675 = vsub.f32 %v3403, %v3617
        %v3676 = vsub.f32 %v3516, %v3654
        %v3677 = vsub.f32 %v3406, %v3617
        %v3678 = vsub.f32 %v3519, %v3654
        %v3679 = vsub.f32 %v3409, %v3617
        %v3680 = vsub.f32 %v3522, %v3654
        %v3681 = vsub.f32 %v3412, %v3617
        %v3682 = vsub.f32 %v3525, %v3654
        %v3683 = vsub.f32 %v3415, %v3617
        %v3684 = vsub.f32 %v3528, %v3654
        %v3685 = vsub.f32 %v3418, %v3617
        %v3686 = vsub.f32 %v3531, %v3654
        %v3687 = vsub.f32 %v3421, %v3617
        %v3688 = vsub.f32 %v3534, %v3654
        %v3689 = vsub.f32 %v3424, %v3617
        %v3690 = vsub.f32 %v3537, %v3654
        %v3691 = vsub.f32 %v3427, %v3617
        %v3692 = vsub.f32 %v3540, %v3654
        %v3693 = vsub.f32 %v3430, %v3617
        %v3694 = vsub.f32 %v3543, %v3654
        %v3695 = vsub.f32 %v3433, %v3617
        %v3696 = vsub.f32 %v3546, %v3654
        %v3697 = vsub.f32 %v3436, %v3617
        %v3698 = vsub.f32 %v3549, %v3654
        %v3699 = vsub.f32 %v3439, %v3617
        %v3700 = vsub.f32 %v3552, %v3654
        %v3701 = vsub.f32 %v3442, %v3617
        %v3702 = vsub.f32 %v3555, %v3654
        %v3703 = vsub.f32 %v3445, %v3617
        %v3704 = vsub.f32 %v3558, %v3654
        %v3705 = vsub.f32 %v3448, %v3617
        %v3706 = vsub.f32 %v3561, %v3654
        %v3707 = vsub.f32 %v3451, %v3617
        %v3708 = vsub.f32 %v3564, %v3654
        %v3709 = vsub.f32 %v3454, %v3617
        %v3710 = vsub.f32 %v3567, %v3654
        %v3711 = vsub.f32 %v3457, %v3617
        %v3712 = vsub.f32 %v3570, %v3654
        %v3713 = vsub.f32 %v3460, %v3617
        %v3714 = vsub.f32 %v3573, %v3654
        %v3715 = vsub.f32 %v3463, %v3617
        %v3716 = vsub.f32 %v3576, %v3654
        %v3717 = vsub.f32 %v3466, %v3617
        %v3718 = vsub.f32 %v3579, %v3654
        %v3719 = vmul.f32 %v3655, 1.442695
        %v3720 = vpow.pop %v3719
        %v3721 = vmul.f32 %v3656, 1.442695
        %v3722 = vpow.pop %v3721
        %v3723 = vmul.f32 %v3657, 1.442695
        %v3724 = vpow.pop %v3723
        %v3725 = vmul.f32 %v3658, 1.442695
        %v3726 = vpow.pop %v3725
        %v3727 = vmul.f32 %v3659, 1.442695
        %v3728 = vpow.pop %v3727
        %v3729 = vmul.f32 %v3660, 1.442695
        %v3730 = vpow.pop %v3729
        %v3731 = vmul.f32 %v3661, 1.442695
        %v3732 = vpow.pop %v3731
        %v3733 = vmul.f32 %v3662, 1.442695
        %v3734 = vpow.pop %v3733
        %v3735 = vmul.f32 %v3663, 1.442695
        %v3736 = vpow.pop %v3735
        %v3737 = vmul.f32 %v3664, 1.442695
        %v3738 = vpow.pop %v3737
        %v3739 = vmul.f32 %v3665, 1.442695
        %v3740 = vpow.pop %v3739
        %v3741 = vmul.f32 %v3666, 1.442695
        %v3742 = vpow.pop %v3741
        %v3743 = vmul.f32 %v3667, 1.442695
        %v3744 = vpow.pop %v3743
        %v3745 = vmul.f32 %v3668, 1.442695
        %v3746 = vpow.pop %v3745
        %v3747 = vmul.f32 %v3669, 1.442695
        %v3748 = vpow.pop %v3747
        %v3749 = vmul.f32 %v3670, 1.442695
        %v3750 = vpow.pop %v3749
        %v3751 = vmul.f32 %v3671, 1.442695
        %v3752 = vpow.pop %v3751
        %v3753 = vmul.f32 %v3672, 1.442695
        %v3754 = vpow.pop %v3753
        %v3755 = vmul.f32 %v3673, 1.442695
        %v3756 = vpow.pop %v3755
        %v3757 = vmul.f32 %v3674, 1.442695
        %v3758 = vpow.pop %v3757
        %v3759 = vmul.f32 %v3675, 1.442695
        %v3760 = vpow.pop %v3759
        %v3761 = vmul.f32 %v3676, 1.442695
        %v3762 = vpow.pop %v3761
        %v3763 = vmul.f32 %v3677, 1.442695
        %v3764 = vpow.pop %v3763
        %v3765 = vmul.f32 %v3678, 1.442695
        %v3766 = vpow.pop %v3765
        %v3767 = vmul.f32 %v3679, 1.442695
        %v3768 = vpow.pop %v3767
        %v3769 = vmul.f32 %v3680, 1.442695
        %v3770 = vpow.pop %v3769
        %v3771 = vmul.f32 %v3681, 1.442695
        %v3772 = vpow.pop %v3771
        %v3773 = vmul.f32 %v3682, 1.442695
        %v3774 = vpow.pop %v3773
        %v3775 = vmul.f32 %v3683, 1.442695
        %v3776 = vpow.pop %v3775
        %v3777 = vmul.f32 %v3684, 1.442695
        %v3778 = vpow.pop %v3777
        %v3779 = vmul.f32 %v3685, 1.442695
        %v3780 = vpow.pop %v3779
        %v3781 = vmul.f32 %v3686, 1.442695
        %v3782 = vpow.pop %v3781
        %v3783 = vmul.f32 %v3687, 1.442695
        %v3784 = vpow.pop %v3783
        %v3785 = vmul.f32 %v3688, 1.442695
        %v3786 = vpow.pop %v3785
        %v3787 = vmul.f32 %v3689, 1.442695
        %v3788 = vpow.pop %v3787
        %v3789 = vmul.f32 %v3690, 1.442695
        %v3790 = vpow.pop %v3789
        %v3791 = vmul.f32 %v3691, 1.442695
        %v3792 = vpow.pop %v3791
        %v3793 = vmul.f32 %v3692, 1.442695
        %v3794 = vpow.pop %v3793
        %v3795 = vmul.f32 %v3693, 1.442695
        %v3796 = vpow.pop %v3795
        %v3797 = vmul.f32 %v3694, 1.442695
        %v3798 = vpow.pop %v3797
        %v3799 = vmul.f32 %v3695, 1.442695
        %v3800 = vpow.pop %v3799
        %v3801 = vmul.f32 %v3696, 1.442695
        %v3802 = vpow.pop %v3801
        %v3803 = vmul.f32 %v3697, 1.442695
        %v3804 = vpow.pop %v3803
        %v3805 = vmul.f32 %v3698, 1.442695
        %v3806 = vpow.pop %v3805
        %v3807 = vmul.f32 %v3699, 1.442695
        %v3808 = vpow.pop %v3807
        %v3809 = vmul.f32 %v3700, 1.442695
        %v3810 = vpow.pop %v3809
        %v3811 = vmul.f32 %v3701, 1.442695
        %v3812 = vpow.pop %v3811
        %v3813 = vmul.f32 %v3702, 1.442695
        %v3814 = vpow.pop %v3813
        %v3815 = vmul.f32 %v3703, 1.442695
        %v3816 = vpow.pop %v3815
        %v3817 = vmul.f32 %v3704, 1.442695
        %v3818 = vpow.pop %v3817
        %v3819 = vmul.f32 %v3705, 1.442695
        %v3820 = vpow.pop %v3819
        %v3821 = vmul.f32 %v3706, 1.442695
        %v3822 = vpow.pop %v3821
        %v3823 = vmul.f32 %v3707, 1.442695
        %v3824 = vpow.pop %v3823
        %v3825 = vmul.f32 %v3708, 1.442695
        %v3826 = vpow.pop %v3825
        %v3827 = vmul.f32 %v3709, 1.442695
        %v3828 = vpow.pop %v3827
        %v3829 = vmul.f32 %v3710, 1.442695
        %v3830 = vpow.pop %v3829
        %v3831 = vmul.f32 %v3711, 1.442695
        %v3832 = vpow.pop %v3831
        %v3833 = vmul.f32 %v3712, 1.442695
        %v3834 = vpow.pop %v3833
        %v3835 = vmul.f32 %v3713, 1.442695
        %v3836 = vpow.pop %v3835
        %v3837 = vmul.f32 %v3714, 1.442695
        %v3838 = vpow.pop %v3837
        %v3839 = vmul.f32 %v3715, 1.442695
        %v3840 = vpow.pop %v3839
        %v3841 = vmul.f32 %v3716, 1.442695
        %v3842 = vpow.pop %v3841
        %v3843 = vmul.f32 %v3717, 1.442695
        %v3844 = vpow.pop %v3843
        %v3845 = vmul.f32 %v3718, 1.442695
        %v3846 = vpow.pop %v3845
        %v3847 = vadd.f32 %v3720, %v3724
        %v3848 = vadd.f32 %v3847, %v3728
        %v3849 = vadd.f32 %v3848, %v3732
        %v3850 = vadd.f32 %v3849, %v3736
        %v3851 = vadd.f32 %v3850, %v3740
        %v3852 = vadd.f32 %v3851, %v3744
        %v3853 = vadd.f32 %v3852, %v3748
        %v3854 = vadd.f32 %v3853, %v3752
        %v3855 = vadd.f32 %v3854, %v3756
        %v3856 = vadd.f32 %v3855, %v3760
        %v3857 = vadd.f32 %v3856, %v3764
        %v3858 = vadd.f32 %v3857, %v3768
        %v3859 = vadd.f32 %v3858, %v3772
        %v3860 = vadd.f32 %v3859, %v3776
        %v3861 = vadd.f32 %v3860, %v3780
        %v3862 = vadd.f32 %v3861, %v3784
        %v3863 = vadd.f32 %v3862, %v3788
        %v3864 = vadd.f32 %v3863, %v3792
        %v3865 = vadd.f32 %v3864, %v3796
        %v3866 = vadd.f32 %v3865, %v3800
        %v3867 = vadd.f32 %v3866, %v3804
        %v3868 = vadd.f32 %v3867, %v3808
        %v3869 = vadd.f32 %v3868, %v3812
        %v3870 = vadd.f32 %v3869, %v3816
        %v3871 = vadd.f32 %v3870, %v3820
        %v3872 = vadd.f32 %v3871, %v3824
        %v3873 = vadd.f32 %v3872, %v3828
        %v3874 = vadd.f32 %v3873, %v3832
        %v3875 = vadd.f32 %v3874, %v3836
        %v3876 = vadd.f32 %v3875, %v3840
        %v3877 = vadd.f32 %v3876, %v3844
        %v3878 = vrot.slane %v3877, 4
        %v3879 = vadd.f32 %v3877, %v3878
        %v3880 = vrot.slane %v3879, 2
        %v3881 = vadd.f32 %v3879, %v3880
        %v3882 = vrot.slane %v3881, 1
        %v3883 = vadd.f32 %v3881, %v3882
        %v3884 = vadd.f32 %v3722, %v3726
        %v3885 = vadd.f32 %v3884, %v3730
        %v3886 = vadd.f32 %v3885, %v3734
        %v3887 = vadd.f32 %v3886, %v3738
        %v3888 = vadd.f32 %v3887, %v3742
        %v3889 = vadd.f32 %v3888, %v3746
        %v3890 = vadd.f32 %v3889, %v3750
        %v3891 = vadd.f32 %v3890, %v3754
        %v3892 = vadd.f32 %v3891, %v3758
        %v3893 = vadd.f32 %v3892, %v3762
        %v3894 = vadd.f32 %v3893, %v3766
        %v3895 = vadd.f32 %v3894, %v3770
        %v3896 = vadd.f32 %v3895, %v3774
        %v3897 = vadd.f32 %v3896, %v3778
        %v3898 = vadd.f32 %v3897, %v3782
        %v3899 = vadd.f32 %v3898, %v3786
        %v3900 = vadd.f32 %v3899, %v3790
        %v3901 = vadd.f32 %v3900, %v3794
        %v3902 = vadd.f32 %v3901, %v3798
        %v3903 = vadd.f32 %v3902, %v3802
        %v3904 = vadd.f32 %v3903, %v3806
        %v3905 = vadd.f32 %v3904, %v3810
        %v3906 = vadd.f32 %v3905, %v3814
        %v3907 = vadd.f32 %v3906, %v3818
        %v3908 = vadd.f32 %v3907, %v3822
        %v3909 = vadd.f32 %v3908, %v3826
        %v3910 = vadd.f32 %v3909, %v3830
        %v3911 = vadd.f32 %v3910, %v3834
        %v3912 = vadd.f32 %v3911, %v3838
        %v3913 = vadd.f32 %v3912, %v3842
        %v3914 = vadd.f32 %v3913, %v3846
        %v3915 = vrot.slane %v3914, 4
        %v3916 = vadd.f32 %v3914, %v3915
        %v3917 = vrot.slane %v3916, 2
        %v3918 = vadd.f32 %v3916, %v3917
        %v3919 = vrot.slane %v3918, 1
        %v3920 = vadd.f32 %v3918, %v3919
        %3921 = vmatpush.msra.mxu0 %v3780
        %3922 = vmatpush.msra.mxu0 %v3776
        %3923 = vmatpush.msra.mxu0 %v3772
        %3924 = vmatpush.msra.mxu0 %v3768
        %3925 = vmatpush.msra.mxu0 %v3764
        %3926 = vmatpush.msra.mxu0 %v3760
        %3927 = vmatpush.msra.mxu0 %v3756
        %3928 = vmatpush.msra.mxu0 %v3752
        %3929 = vmatpush.msra.mxu0 %v3748
        %3930 = vmatpush.msra.mxu0 %v3744
        %3931 = vmatpush.msra.mxu0 %v3740
        %3932 = vmatpush.msra.mxu0 %v3736
        %3933 = vmatpush.msra.mxu0 %v3732
        %3934 = vmatpush.msra.mxu0 %v3728
        %3935 = vmatpush.msra.mxu0 %v3724
        %3936 = vmatpush.msra.mxu0 %v3720
        %3937 = vmatmul.f32.gmra.mxu0 %v3193
        %v3938 = vpop.f32.mrf.mxu0
        %v3939 = vadd.f32 0.0, %v3938
        %3940 = vdwg.mxu0
        %3941 = vmatpush.msra.mxu0 %v3844
        %3942 = vmatpush.msra.mxu0 %v3840
        %3943 = vmatpush.msra.mxu0 %v3836
        %3944 = vmatpush.msra.mxu0 %v3832
        %3945 = vmatpush.msra.mxu0 %v3828
        %3946 = vmatpush.msra.mxu0 %v3824
        %3947 = vmatpush.msra.mxu0 %v3820
        %3948 = vmatpush.msra.mxu0 %v3816
        %3949 = vmatpush.msra.mxu0 %v3812
        %3950 = vmatpush.msra.mxu0 %v3808
        %3951 = vmatpush.msra.mxu0 %v3804
        %3952 = vmatpush.msra.mxu0 %v3800
        %3953 = vmatpush.msra.mxu0 %v3796
        %3954 = vmatpush.msra.mxu0 %v3792
        %3955 = vmatpush.msra.mxu0 %v3788
        %3956 = vmatpush.msra.mxu0 %v3784
        %3957 = vmatmul.f32.gmra.mxu0 %v3194
        %v3958 = vpop.f32.mrf.mxu0
        %v3959 = vadd.f32 %v3939, %v3958
        %3960 = vdwg.mxu0
        %3961 = vmatpush.msra.mxu0 %v3782
        %3962 = vmatpush.msra.mxu0 %v3778
        %3963 = vmatpush.msra.mxu0 %v3774
        %3964 = vmatpush.msra.mxu0 %v3770
        %3965 = vmatpush.msra.mxu0 %v3766
        %3966 = vmatpush.msra.mxu0 %v3762
        %3967 = vmatpush.msra.mxu0 %v3758
        %3968 = vmatpush.msra.mxu0 %v3754
        %3969 = vmatpush.msra.mxu0 %v3750
        %3970 = vmatpush.msra.mxu0 %v3746
        %3971 = vmatpush.msra.mxu0 %v3742
        %3972 = vmatpush.msra.mxu0 %v3738
        %3973 = vmatpush.msra.mxu0 %v3734
        %3974 = vmatpush.msra.mxu0 %v3730
        %3975 = vmatpush.msra.mxu0 %v3726
        %3976 = vmatpush.msra.mxu0 %v3722
        %3977 = vmatmul.f32.gmra.mxu0 %v3193
        %v3978 = vpop.f32.mrf.mxu0
        %v3979 = vadd.f32 0.0, %v3978
        %3980 = vdwg.mxu0
        %3981 = vmatpush.msra.mxu0 %v3846
        %3982 = vmatpush.msra.mxu0 %v3842
        %3983 = vmatpush.msra.mxu0 %v3838
        %3984 = vmatpush.msra.mxu0 %v3834
        %3985 = vmatpush.msra.mxu0 %v3830
        %3986 = vmatpush.msra.mxu0 %v3826
        %3987 = vmatpush.msra.mxu0 %v3822
        %3988 = vmatpush.msra.mxu0 %v3818
        %3989 = vmatpush.msra.mxu0 %v3814
        %3990 = vmatpush.msra.mxu0 %v3810
        %3991 = vmatpush.msra.mxu0 %v3806
        %3992 = vmatpush.msra.mxu0 %v3802
        %3993 = vmatpush.msra.mxu0 %v3798
        %3994 = vmatpush.msra.mxu0 %v3794
        %3995 = vmatpush.msra.mxu0 %v3790
        %3996 = vmatpush.msra.mxu0 %v3786
        %3997 = vmatmul.f32.gmra.mxu0 %v3194
        %v3998 = vpop.f32.mrf.mxu0
        %v3999 = vadd.f32 %v3979, %v3998
        %4000 = vdwg.mxu0
        %v4001 = vrcp.pop %v3883
        %v4002 = vmul.f32 %v3883, %v4001
        %v4003 = vsub.f32 1.0, %v4002
        %v4004 = vmul.f32 %v4001, %v4003
        %v4005 = vadd.f32 %v4001, %v4004
        %vm4006 = vweird.f32 %v3883
        %vm4007 = vweird.f32 %v4001
        %vm4008 = vmor %vm4006, %vm4007
        %v4009 = vsel %vm4008, %v4001, %v4005
        %v4010 = vand.u32 2147483647, %v3883
        %vm4011 = vcmp.eq.f32.partialorder %v4010, 8.507059e+37
        %v4012 = vand.u32 %v3883, 2147483648
        %v4013 = vor.u32 1.1754944e-38, %v4012
        %v4014 = vsel %vm4011, %v4013, %v4009
        %v4015 = vmul.f32 1.0, %v4014
        %v4016 = vrcp.pop %v3920
        %v4017 = vmul.f32 %v3920, %v4016
        %v4018 = vsub.f32 1.0, %v4017
        %v4019 = vmul.f32 %v4016, %v4018
        %v4020 = vadd.f32 %v4016, %v4019
        %vm4021 = vweird.f32 %v3920
        %vm4022 = vweird.f32 %v4016
        %vm4023 = vmor %vm4021, %vm4022
        %v4024 = vsel %vm4023, %v4016, %v4020
        %v4025 = vand.u32 2147483647, %v3920
        %vm4026 = vcmp.eq.f32.partialorder %v4025, 8.507059e+37
        %v4027 = vand.u32 %v3920, 2147483648
        %v4028 = vor.u32 1.1754944e-38, %v4027
        %v4029 = vsel %vm4026, %v4028, %v4024
        %v4030 = vmul.f32 1.0, %v4029
        %v4031 = vmul.f32 %v3959, %v4015
        %v4032 = vmul.f32 %v3999, %v4030
        %4033 = vst [vmem:[%s312 + $0x30] sm:$0xff] %v4031
        %4034 = vst [vmem:[%s312 + $0x38] sm:$0xff] %v4032
        %s4035 = sand.u32 %s198, 1
        %s4036 = scalar_lea.sflag [#allocation7], %s4035
        %s4037 = sand.u32 %s198, 1
        %s4038 = smul.addr %s4037, 64
        %s4039 = scalar_lea.vmem [#allocation8], %s4038
        // Predicated region
        $region57: #{tpu_custom_call.1} parent=47 // pred_check
          %p4040 = pneg %p208
        $region58: #{tpu_custom_call.1} parent=47 // pred_check_branch
          %4042 = sbr.rel (%p4040) target = $region60
        $region59: #{tpu_custom_call.1} parent=47 // pred_region
          %s4043 = smul.u32 2, %s29
          %4045 = vsyncadd %s4036, 0
          %s4046 = smul.addr %s28, 8
          %s4047 = sadd.s32 %s4043, %s4046
          %s4048 = smul.addr %s4047, 8
          %s4049 = scalar_lea.hbm %s7, %s4048
          %s4050 = sshll.u32 %s4039, 4
          %s4051 = int_to_ptr.vmem [resolvable:$true] %s4050
          %s4052 = sshll.u32 %s4049, 4
          %s4053 = int_to_ptr.hbm [resolvable:$true] %s4052
          %4058 = dma.vmem_to_hbm [thread:$0]  %s4051, 1024, %s4053, %s4036, 256, 256, 16
        $region60: #{tpu_custom_call.1} parent=47 // pred_fallthru
          _
      $region48: #{tpu_custom_call.1} parent=5 // pred_fallthru
        _
      %p4059 = scmp.le.s32.totalorder 2, %s19
      // Predicated region
      $region61: #{tpu_custom_call.1} parent=5 // pred_check
        %p4060 = pneg %p4059
      $region62: #{tpu_custom_call.1} parent=5 // pred_check_branch
        %4062 = sbr.rel (%p4060) target = $region64
      $region63: #{tpu_custom_call.1} parent=5 // pred_region
        %s4063 = ssub.s32 %s19, 2
        // Predicated region
        $region65: #{tpu_custom_call.1} parent=63 // pred_check
          %p4064 = pneg %p214
        $region66: #{tpu_custom_call.1} parent=63 // pred_check_branch
          %4066 = sbr.rel (%p4064) target = $region68
        $region67: #{tpu_custom_call.1} parent=63 // pred_region
          %s4067 = sand.u32 %s199, 1
          %s4068 = scalar_lea.sflag [#allocation7], %s4067
          %s4069 = sand.u32 %s199, 1
          %s4070 = smul.addr %s4069, 64
          %s4071 = scalar_lea.vmem [#allocation8], %s4070
          %4073 = dma.done %s4068, 1024
        $region68: #{tpu_custom_call.1} parent=63 // pred_fallthru
          _
      $region64: #{tpu_custom_call.1} parent=5 // pred_fallthru
        _
    $region6: #{tpu_custom_call.1} parent=1 // loop_footer
      %s23 = sadd.s32 1, %s19
    $region7: #{tpu_custom_call.1} parent=1 // loop_footer_branch
      %18 = sbr.rel target = $region3
    $region8: #{tpu_custom_call.1} parent=1 // loop_exit
      _
    %4074 = vsyncpa [#allocation6], 1
    %s4075 = scalar_lea.sflag [#allocation6], 1
    %4076 = vsyncpa %s4075, 1
    %4077 = vsyncpa [#allocation7], 1
    %s4078 = scalar_lea.sflag [#allocation7], 1
    %4079 = vsyncpa %s4078, 1

</llo_original>
